<compile_context>
chip_gen: v5e
topology: v5e:2x2
jax: 0.10.0
libtpu: 0.0.40
codegen_flags: <defaults>
</compile_context>

<pallas_src>
import math
from functools import partial

import jax
import jax.numpy as jnp
from jax.experimental import pallas as pl
from jax.experimental.pallas import tpu as pltpu


def _round_up(x: int, m: int) -> int:
    return ((x + m - 1) // m) * m


def _gelu_exact(x):
    # PyTorch nn.GELU() default (approximate='none'): 0.5*x*(1+erf(x/sqrt(2)))
    return 0.5 * x * (1.0 + jax.lax.erf(x * (1.0 / math.sqrt(2.0))))


def _choose_fold(d: int) -> int:
    """How many rows to fold into lanes so the folded width (fold*d) is a
    lane-dense multiple of 128 and reasonably wide (>=512)."""
    base = 128 // math.gcd(d, 128)
    if base > 32:  # block-diag weights would blow up; fall back to no folding
        return 1
    fold = base
    while fold * d < 512 and fold < 64:
        fold *= 2
    return fold


def residual_mlp_kernel(alpha_ref, x_ref, w1_ref, b1_ref, w2_ref, b2_ref, o_ref):
    # alpha_ref: SMEM (1,), already sigmoid()ed in the wrapper.
    # x_ref:  [TILE, W]       (native dtype; cast in-kernel, W = fold*D lane-dense)
    # w1_ref: [W, HBD], b1_ref: [1, HBD]   (block-diagonal, hidden padded to 128 lanes)
    # w2_ref: [HBD, W], b2_ref: [1, W]
    x = x_ref[...].astype(jnp.float32)

    h = jnp.dot(x, w1_ref[...], preferred_element_type=jnp.float32,
                precision=jax.lax.Precision.HIGHEST) + b1_ref[...]
    h = _gelu_exact(h)                                   # [TILE, HBD] fully lane-dense

    y = jnp.dot(h, w2_ref[...], preferred_element_type=jnp.float32,
                precision=jax.lax.Precision.HIGHEST) + b2_ref[...]
    y = _gelu_exact(y)                                   # [TILE, W] lane-dense

    a = alpha_ref[0]
    o_ref[...] = (x + a * (y - x)).astype(o_ref.dtype)   # == a*y + (1-a)*x


@partial(jax.jit, static_argnames=("tile_rows",))
def residual_mlp(x, alpha, w1, b1, w2, b2, *, tile_rows: int = 16384):
    """Forward pass of ResidualMLP.

    x:  [N, D] float (any float dtype; cast to f32 inside the kernel)
    alpha: scalar parameter (pre-sigmoid), float32
    w1: [D, H]  (already transposed from PyTorch's [H, D]);  b1: [H]
    w2: [H, D]  (already transposed from PyTorch's [D, H]);  b2: [D]
    tile_rows: tile size in *original* rows (static).
    """
    n, d = x.shape
    h = w1.shape[1]
    out_dtype = x.dtype

    fold = _choose_fold(d)
    width = fold * d                   # folded lane width (multiple of 128 when fold>1)
    hbd = fold * h
    hbd_pad = _round_up(max(hbd, 128), 128)

    # --- block-diagonal weights (exact; tiny one-time cost) ---
    eye = jnp.eye(fold, dtype=jnp.float32)
    w1_bd = jnp.kron(eye, w1.astype(jnp.float32))        # [W, HBD]
    w2_bd = jnp.kron(eye, w2.astype(jnp.float32))        # [HBD, W]
    if hbd_pad != hbd:
        w1_bd = jnp.pad(w1_bd, ((0, 0), (0, hbd_pad - hbd)))
        w2_bd = jnp.pad(w2_bd, ((0, hbd_pad - hbd), (0, 0)))
    b1_bd = jnp.pad(jnp.tile(b1.astype(jnp.float32), fold),
                    (0, hbd_pad - hbd)).reshape(1, hbd_pad)
    b2_bd = jnp.tile(b2.astype(jnp.float32), fold).reshape(1, width)

    # --- sigmoid(alpha) hoisted out of the (tiled) kernel ---
    alpha_sig = jnp.reshape(jax.nn.sigmoid(alpha.astype(jnp.float32)), (1,))

    # --- fold batch rows into lanes: [N, D] -> [N/fold, fold*D] (free when N%fold==0) ---
    n_pad = _round_up(max(n, 1), fold)
    x_in = x if n_pad == n else jnp.pad(x, ((0, n_pad - n), (0, 0)))
    x_in = x_in.reshape(n_pad // fold, width)
    n_f = n_pad // fold

    # --- tile over folded rows; keep >=2 grid steps when possible (v7x megacore) ---
    tile_req = _round_up(max(pl.cdiv(max(tile_rows, 1), fold), 8), 8)
    if n_f <= 8:
        tile_f = n_f                                   # single full-extent block
    else:
        tile_f = min(tile_req, _round_up(pl.cdiv(n_f, 2), 8))
    grid = (pl.cdiv(n_f, tile_f),)

    # --- VMEM budget: 2x(in)+2x(out) double-buffered + resident weights + headroom ---
    itemsize_in = jnp.dtype(x.dtype).itemsize
    itemsize_out = jnp.dtype(out_dtype).itemsize
    in_bytes = tile_f * width * itemsize_in
    out_bytes = tile_f * width * itemsize_out
    w_bytes = (2 * width * hbd_pad + hbd_pad + width) * 4
    vmem_limit = int(min(max(2 * (in_bytes + out_bytes) + 2 * w_bytes + (4 << 20),
                             16 << 20), 64 << 20))

    cost = pl.CostEstimate(
        flops=4 * n_f * width * hbd_pad + 10 * n_f * (hbd_pad + width),
        transcendentals=n_f * (hbd_pad + width),              # one erf per element
        bytes_accessed=n_f * width * (itemsize_in + itemsize_out)
        + (2 * width * hbd_pad + hbd_pad + width) * 4 + 4,
    )

    out = pl.pallas_call(
        residual_mlp_kernel,
        out_shape=jax.ShapeDtypeStruct((n_f, width), out_dtype),
        grid_spec=pltpu.PrefetchScalarGridSpec(
            num_scalar_prefetch=0,
            grid=grid,
            in_specs=[
                pl.BlockSpec(memory_space=pltpu.SMEM),              # alpha (post-sigmoid)
                pl.BlockSpec((tile_f, width), lambda i: (i, 0)),    # folded x tile
                pl.BlockSpec((width, hbd_pad), lambda i: (0, 0)),   # W1 block-diag (resident)
                pl.BlockSpec((1, hbd_pad), lambda i: (0, 0)),       # b1 (resident)
                pl.BlockSpec((hbd_pad, width), lambda i: (0, 0)),   # W2 block-diag (resident)
                pl.BlockSpec((1, width), lambda i: (0, 0)),         # b2 (resident)
            ],
            out_specs=pl.BlockSpec((tile_f, width), lambda i: (i, 0)),
        ),
        compiler_params=pltpu.CompilerParams(
            dimension_semantics=("parallel",),      # megacore-shardable row axis
            vmem_limit_bytes=vmem_limit,
        ),
        cost_estimate=cost,
    )(alpha_sig, x_in, w1_bd, b1_bd, w2_bd, b2_bd)

    out = out.reshape(n_pad, d)
    if n_pad != n:
        out = out[:n]
    return out


def _reference(x, alpha, w1, b1, w2, b2):
    hp = jax.lax.Precision.HIGHEST
    h = _gelu_exact(jnp.dot(x, w1, precision=hp) + b1)
    y = _gelu_exact(jnp.dot(h, w2, precision=hp) + b2)
    a = jax.nn.sigmoid(alpha)
    return a * y + (1.0 - a) * x


if __name__ == "__main__":
    # Module config: input_dim=32, scale=4 -> hidden=8, init_alpha=0.5
    input_dim = 32
    scale = 4
    hidden = input_dim // scale
    init_alpha = 0.5

    key = jax.random.PRNGKey(0)
    kx, kw1, kb1, kw2, kb2, kx2 = jax.random.split(key, 6)

    # Deterministic init mirroring nn.Linear shapes (stored transposed: [in, out]).
    bound1 = 1.0 / math.sqrt(input_dim)
    w1 = jax.random.uniform(kw1, (input_dim, hidden), minval=-bound1, maxval=bound1)
    b1 = jax.random.uniform(kb1, (hidden,), minval=-bound1, maxval=bound1)
    bound2 = 1.0 / math.sqrt(hidden)
    w2 = jax.random.uniform(kw2, (hidden, input_dim), minval=-bound2, maxval=bound2)
    b2 = jax.random.uniform(kb2, (input_dim,), minval=-bound2, maxval=bound2)
    alpha = jnp.asarray(init_alpha, dtype=jnp.float32)

    # Case 1: small fold-aligned batch (single-block path).
    batch = 32
    x = jax.random.normal(kx, (batch, input_dim), dtype=jnp.float32)
    out = residual_mlp(x, alpha, w1, b1, w2, b2)
    jax.block_until_ready(out)
    ref = _reference(x, alpha, w1, b1, w2, b2)
    assert out.shape == (batch, input_dim)
    assert jnp.allclose(out, ref, atol=1e-5, rtol=1e-5), "mismatch vs reference (small)"

    # Case 2: batch not a multiple of fold/tile -> exercises fold padding,
    # multi-step grid and the ragged last block.
    batch2 = 200
    x2 = jax.random.normal(kx2, (batch2, input_dim), dtype=jnp.float32)
    out2 = residual_mlp(x2, alpha, w1, b1, w2, b2, tile_rows=128)
    jax.block_until_ready(out2)
    ref2 = _reference(x2, alpha, w1, b1, w2, b2)
    assert out2.shape == (batch2, input_dim)
    assert jnp.allclose(out2, ref2, atol=1e-5, rtol=1e-5), "mismatch vs reference (tiled)"

    print("KERNEL_OK")
</pallas_src>

<mosaic_0001>
module attributes {stable_mosaic.version = 11 : i64} {
  func.func @residual_mlp_kernel(%arg0: i32, %arg1: memref<1xf32, #tpu.memory_space<smem>>, %arg2: memref<2x512xf32, #tpu.memory_space<vmem>>, %arg3: memref<512x128xf32, #tpu.memory_space<vmem>>, %arg4: memref<1x128xf32, #tpu.memory_space<vmem>>, %arg5: memref<128x512xf32, #tpu.memory_space<vmem>>, %arg6: memref<1x512xf32, #tpu.memory_space<vmem>>, %arg7: memref<2x512xf32, #tpu.memory_space<vmem>>) attributes {dimension_semantics = [#tpu.dimension_semantics<parallel>], iteration_bounds = array<i64: 1>, scalar_prefetch = 0 : i64, scratch_operands = 0 : i64, tpu.core_type = #tpu.core_type<tc>, window_params = [{transform_indices = @transform_0, window_bounds = array<i64: 1>}, {transform_indices = @transform_1, window_bounds = array<i64: 2, 512>}, {pipeline_mode = #tpu.pipeline_mode<synchronous>, transform_indices = @transform_2, window_bounds = array<i64: 512, 128>}, {pipeline_mode = #tpu.pipeline_mode<synchronous>, transform_indices = @transform_3, window_bounds = array<i64: 1, 128>}, {pipeline_mode = #tpu.pipeline_mode<synchronous>, transform_indices = @transform_4, window_bounds = array<i64: 128, 512>}, {pipeline_mode = #tpu.pipeline_mode<synchronous>, transform_indices = @transform_5, window_bounds = array<i64: 1, 512>}, {transform_indices = @transform_6, window_bounds = array<i64: 2, 512>}]} {
    %c0 = arith.constant 0 : index
    %c0_0 = arith.constant 0 : index
    %0 = vector.load %arg2[%c0, %c0_0] : memref<2x512xf32, #tpu.memory_space<vmem>>, vector<2x512xf32>
    %c0_1 = arith.constant 0 : index
    %c0_2 = arith.constant 0 : index
    %1 = vector.load %arg3[%c0_1, %c0_2] : memref<512x128xf32, #tpu.memory_space<vmem>>, vector<512x128xf32>
    %cst = arith.constant dense<0.000000e+00> : vector<2x128xf32>
    %2 = tpu.matmul %0, %1, %cst {dimension_numbers = #tpu.dot_dimension_numbers<[1], [0], [0], [1], [0, 0, 1, 1], [], []>, precision = #tpu.contract_precision<fp32>} : vector<2x512xf32>, vector<512x128xf32>, vector<2x128xf32> -> vector<2x128xf32>
    %c0_3 = arith.constant 0 : index
    %c0_4 = arith.constant 0 : index
    %3 = vector.load %arg4[%c0_3, %c0_4] : memref<1x128xf32, #tpu.memory_space<vmem>>, vector<1x128xf32>
    %4 = vector.broadcast %3 : vector<1x128xf32> to vector<2x128xf32>
    %5 = arith.addf %2, %4 : vector<2x128xf32>
    %cst_5 = arith.constant 5.000000e-01 : f32
    %6 = vector.broadcast %cst_5 : f32 to vector<2x128xf32>
    %7 = arith.mulf %6, %5 : vector<2x128xf32>
    %cst_6 = arith.constant 0.707106769 : f32
    %8 = vector.broadcast %cst_6 : f32 to vector<2x128xf32>
    %9 = arith.mulf %5, %8 : vector<2x128xf32>
    %10 = math.erf %9 : vector<2x128xf32>
    %cst_7 = arith.constant 1.000000e+00 : f32
    %11 = vector.broadcast %cst_7 : f32 to vector<2x128xf32>
    %12 = arith.addf %11, %10 : vector<2x128xf32>
    %13 = arith.mulf %7, %12 : vector<2x128xf32>
    %c0_8 = arith.constant 0 : index
    %c0_9 = arith.constant 0 : index
    %14 = vector.load %arg5[%c0_8, %c0_9] : memref<128x512xf32, #tpu.memory_space<vmem>>, vector<128x512xf32>
    %cst_10 = arith.constant dense<0.000000e+00> : vector<2x512xf32>
    %15 = tpu.matmul %13, %14, %cst_10 {dimension_numbers = #tpu.dot_dimension_numbers<[1], [0], [0], [1], [0, 0, 1, 1], [], []>, precision = #tpu.contract_precision<fp32>} : vector<2x128xf32>, vector<128x512xf32>, vector<2x512xf32> -> vector<2x512xf32>
    %c0_11 = arith.constant 0 : index
    %c0_12 = arith.constant 0 : index
    %16 = vector.load %arg6[%c0_11, %c0_12] : memref<1x512xf32, #tpu.memory_space<vmem>>, vector<1x512xf32>
    %17 = vector.broadcast %16 : vector<1x512xf32> to vector<2x512xf32>
    %18 = arith.addf %15, %17 : vector<2x512xf32>
    %cst_13 = arith.constant 5.000000e-01 : f32
    %19 = vector.broadcast %cst_13 : f32 to vector<2x512xf32>
    %20 = arith.mulf %19, %18 : vector<2x512xf32>
    %cst_14 = arith.constant 0.707106769 : f32
    %21 = vector.broadcast %cst_14 : f32 to vector<2x512xf32>
    %22 = arith.mulf %18, %21 : vector<2x512xf32>
    %23 = math.erf %22 : vector<2x512xf32>
    %cst_15 = arith.constant 1.000000e+00 : f32
    %24 = vector.broadcast %cst_15 : f32 to vector<2x512xf32>
    %25 = arith.addf %24, %23 : vector<2x512xf32>
    %26 = arith.mulf %20, %25 : vector<2x512xf32>
    %c0_16 = arith.constant 0 : index
    %27 = memref.load %arg1[%c0_16] : memref<1xf32, #tpu.memory_space<smem>>
    %28 = arith.subf %26, %0 : vector<2x512xf32>
    %29 = vector.broadcast %27 : f32 to vector<2x512xf32>
    %30 = arith.mulf %29, %28 : vector<2x512xf32>
    %31 = arith.addf %0, %30 : vector<2x512xf32>
    %c0_17 = arith.constant 0 : index
    %c0_18 = arith.constant 0 : index
    %32 = vector.load %arg7[%c0_17, %c0_18] : memref<2x512xf32, #tpu.memory_space<vmem>>, vector<2x512xf32>
    tpu.vector_store %arg7[%c0_17, %c0_18], %31 {strides = array<i32>} : memref<2x512xf32, #tpu.memory_space<vmem>>, vector<2x512xf32>,
    return
  }
  func.func @transform_0(%arg0: i32) -> i32 {
    %c0_i32 = arith.constant 0 : i32
    %c0_i32_0 = arith.constant 0 : i32
    return %c0_i32 : i32
  }
  func.func @transform_1(%arg0: i32) -> (i32, i32) {
    %c0_i32 = arith.constant 0 : i32
    %c0_i32_0 = arith.constant 0 : i32
    return %arg0, %c0_i32 : i32, i32
  }
  func.func @transform_2(%arg0: i32) -> (i32, i32) {
    %c0_i32 = arith.constant 0 : i32
    %c0_i32_0 = arith.constant 0 : i32
    %c0_i32_1 = arith.constant 0 : i32
    return %c0_i32, %c0_i32_0 : i32, i32
  }
  func.func @transform_3(%arg0: i32) -> (i32, i32) {
    %c0_i32 = arith.constant 0 : i32
    %c0_i32_0 = arith.constant 0 : i32
    %c0_i32_1 = arith.constant 0 : i32
    return %c0_i32, %c0_i32_0 : i32, i32
  }
  func.func @transform_4(%arg0: i32) -> (i32, i32) {
    %c0_i32 = arith.constant 0 : i32
    %c0_i32_0 = arith.constant 0 : i32
    %c0_i32_1 = arith.constant 0 : i32
    return %c0_i32, %c0_i32_0 : i32, i32
  }
  func.func @transform_5(%arg0: i32) -> (i32, i32) {
    %c0_i32 = arith.constant 0 : i32
    %c0_i32_0 = arith.constant 0 : i32
    %c0_i32_1 = arith.constant 0 : i32
    return %c0_i32, %c0_i32_0 : i32, i32
  }
  func.func @transform_6(%arg0: i32) -> (i32, i32) {
    %c0_i32 = arith.constant 0 : i32
    %c0_i32_0 = arith.constant 0 : i32
    return %arg0, %c0_i32 : i32, i32
  }
}

</mosaic_0001>

<llo_original>
// kernel: tile.18
$region0: #{tile.18}
  #allocation0 [shape = 's32[1]{0}', space=sflag, size = 0x4, scoped, tag = 'scoped memory for tile.18']
  %s0 = inlined_call_operand.vmem [shape: f32[32], index: 0, kind: input, shape index: {}]
  %s1 = inlined_call_operand.vmem [shape: f32[16,32], index: 1, kind: output, shape index: {}]
  // Predicated region
  $region2: #{tile.18} parent=0 // pred_check
    _
  $region3: #{tile.18} parent=0 // pred_check_branch
    %3 = sbr.rel (0) target = $region5
  $region4: #{tile.18} parent=0 // pred_region
    _
  $region5: #{tile.18} parent=0 // pred_fallthru
    _
  %v4 = vld [vmem:[%s0] ss:$0 sm:$0xff]
  %5 = vst [vmem:[%s1] sm:$0xff] %v4
  %s6 = scalar_lea.vmem %s1, 8
  %7 = vst [vmem:[%s6] sm:$0xff] %v4

// kernel: tile.19
$region0: #{tile.19}
  %s0 = inlined_call_operand.vmem [shape: f32[16,32], index: 0, kind: input, shape index: {}]
  %s1 = inlined_call_operand.vmem [shape: f32[1,512], index: 1, kind: output, shape index: {}]
  $region1: #{tile.19} parent=0
    #allocation0 [shape = 'u8[16384]{0}', space=vmem, size = 0x4000, scoped, tag = 'scoped mem for output reshape']
    %v2 = vld [vmem:[%s0] ss:$4 sm:$0xf]
    %vm3 = vcmask 261120
    %4 = vst.msk [vmem:[#allocation0] ss:$8 sm:$0xf] %vm3, %v2
    %s5 = scalar_lea.vmem %s0, 3
    %v6 = vld [vmem:[%s5] ss:$4 sm:$0xf]
    %7 = vrot.lane.b32.xlu0 %v6, 96
    %v8 = vpop.permute.xlu0 %7
    %vm9 = vcmask 1048320
    %10 = vst.msk [vmem:[#allocation0] ss:$8 sm:$0xf] %vm9, %v8
    %s11 = scalar_lea.vmem %s0, 2
    %v12 = vld [vmem:[%s11] ss:$4 sm:$0xf]
    %13 = vrot.lane.b32.xlu0 %v12, 64
    %v14 = vpop.permute.xlu0 %13
    %vm15 = vcmask 785920
    %16 = vst.msk [vmem:[#allocation0] ss:$8 sm:$0xf] %vm15, %v14
    %s17 = scalar_lea.vmem %s0, 1
    %v18 = vld [vmem:[%s17] ss:$4 sm:$0xf]
    %19 = vrot.lane.b32.xlu0 %v18, 32
    %v20 = vpop.permute.xlu0 %19
    %vm21 = vcmask 523520
    %22 = vst.msk [vmem:[#allocation0] ss:$8 sm:$0xf] %vm21, %v20
    %s24 = ssub.s32 2, 1
    %v25 = vld [vmem:[#allocation0] sm:%s24]
    %s27 = ssub.s32 2, 1
    %28 = vst [vmem:[%s1] sm:%s27] %v25
    %s29 = scalar_lea.vmem [#allocation0], 8
    %v30 = vld [vmem:[%s29] sm:%s24]
    %s32 = ssub.s32 2, 1
    %s33 = scalar_lea.vmem %s1, 1
    %34 = vst [vmem:[%s33] sm:%s32] %v30
    %s35 = scalar_lea.vmem [#allocation0], 16
    %v36 = vld [vmem:[%s35] sm:%s24]
    %s38 = ssub.s32 2, 1
    %s39 = scalar_lea.vmem %s1, 2
    %40 = vst [vmem:[%s39] sm:%s38] %v36
    %s41 = scalar_lea.vmem [#allocation0], 24
    %v42 = vld [vmem:[%s41] sm:%s24]
    %s44 = ssub.s32 2, 1
    %s45 = scalar_lea.vmem %s1, 3
    %46 = vst [vmem:[%s45] sm:%s44] %v42

// kernel: tile.13
$region0: #{tile.13}
  #allocation0 [shape = 's32[1]{0}', space=sflag, size = 0x4, scoped, tag = 'scoped memory for tile.13']
  %s0 = inlined_call_operand.vmem [shape: f32[8], index: 0, kind: input, shape index: {}]
  %s1 = inlined_call_operand.vmem [shape: f32[16,8], index: 1, kind: output, shape index: {}]
  // Predicated region
  $region2: #{tile.13} parent=0 // pred_check
    _
  $region3: #{tile.13} parent=0 // pred_check_branch
    %3 = sbr.rel (0) target = $region5
  $region4: #{tile.13} parent=0 // pred_region
    _
  $region5: #{tile.13} parent=0 // pred_fallthru
    _
  %v4 = vld [vmem:[%s0] ss:$0 sm:$0xff]
  %5 = vst [vmem:[%s1] sm:$0xff] %v4
  %s6 = scalar_lea.vmem %s1, 8
  %7 = vst [vmem:[%s6] sm:$0xff] %v4

// kernel: residual_mlp.1
$region0: #{residual_mlp.1}
  #allocation0 [shape = 'u32[]', space=smem, size = 0x4, offset = 0x4, fixed_abs, tag = 'smem constant byte address 0x4 - core index']
  #allocation1 [shape = 'u32[72,128]{1,0:T(1,128)}', space=vmem, size = 0x9000, scoped, tag = 'internal scratch']
  #allocation2 [shape = 'f32[1]{0:T(128)S(6)}', space=smem, size = 0x200, scoped, tag = 'scoped memory for residual_mlp.1']
  %s0 = inlined_call_operand.<no memory space> [shape: f32[1], index: 0, kind: input, shape index: {}]
  %s1 = inlined_call_operand.vmem [shape: f32[2,512], index: 1, kind: input, shape index: {}]
  %s2 = inlined_call_operand.vmem [shape: f32[512,128], index: 2, kind: input, shape index: {}]
  %s3 = inlined_call_operand.vmem [shape: f32[1,128], index: 3, kind: input, shape index: {}]
  %s4 = inlined_call_operand.vmem [shape: f32[128,512], index: 4, kind: input, shape index: {}]
  %s5 = inlined_call_operand.vmem [shape: f32[1,512], index: 5, kind: input, shape index: {}]
  %s6 = inlined_call_operand.vmem [shape: f32[2,512], index: 6, kind: output, shape index: {}]
  %s7 = sld [smem:[#allocation0]]
  $region34: #{residual_mlp.1} parent=0
    _
  %s9 = ssub.s32 1, %s7
  %s10 = scalar_select 0, %s9, %s7
  %11 = sst [smem:[#allocation2]] %s0
  // Predicated region
  $region2: #{residual_mlp.1} parent=0 // pred_check
    _
  $region3: #{residual_mlp.1} parent=0 // pred_check_branch
    %13 = sbr.rel (0) target = $region5
  $region4: #{residual_mlp.1} parent=0 // pred_region
    _
  $region5: #{residual_mlp.1} parent=0 // pred_fallthru
    _
  // Predicated region
  $region6: #{residual_mlp.1} parent=0 // pred_check
    _
  $region7: #{residual_mlp.1} parent=0 // pred_check_branch
    %15 = sbr.rel (0) target = $region9
  $region8: #{residual_mlp.1} parent=0 // pred_region
    _
  $region9: #{residual_mlp.1} parent=0 // pred_fallthru
    _
  // Predicated region
  $region10: #{residual_mlp.1} parent=0 // pred_check
    _
  $region11: #{residual_mlp.1} parent=0 // pred_check_branch
    %17 = sbr.rel (0) target = $region13
  $region12: #{residual_mlp.1} parent=0 // pred_region
    _
  $region13: #{residual_mlp.1} parent=0 // pred_fallthru
    _
  // Predicated region
  $region14: #{residual_mlp.1} parent=0 // pred_check
    _
  $region15: #{residual_mlp.1} parent=0 // pred_check_branch
    %19 = sbr.rel (0) target = $region17
  $region16: #{residual_mlp.1} parent=0 // pred_region
    _
  $region17: #{residual_mlp.1} parent=0 // pred_fallthru
    _
  // Predicated region
  $region18: #{residual_mlp.1} parent=0 // pred_check
    _
  $region19: #{residual_mlp.1} parent=0 // pred_check_branch
    %21 = sbr.rel (0) target = $region21
  $region20: #{residual_mlp.1} parent=0 // pred_region
    _
  $region21: #{residual_mlp.1} parent=0 // pred_fallthru
    _
  // Predicated region
  $region22: #{residual_mlp.1} parent=0 // pred_check
    _
  $region23: #{residual_mlp.1} parent=0 // pred_check_branch
    %23 = sbr.rel (0) target = $region25
  $region24: #{residual_mlp.1} parent=0 // pred_region
    _
  $region25: #{residual_mlp.1} parent=0 // pred_fallthru
    _
  %v24 = vld [vmem:[%s1] sm:$0xff]
  %v25 = vld [vmem:[%s2] sm:$0xff]
  %v26 = vld [vmem:[%s2 + $0x8] sm:$0xff]
  %v27 = vld [vmem:[%s2 + $0x10] sm:$0xff]
  %v28 = vld [vmem:[%s2 + $0x18] sm:$0xff]
  %v29 = vld [vmem:[%s2 + $0x20] sm:$0xff]
  %v30 = vld [vmem:[%s2 + $0x28] sm:$0xff]
  %v31 = vld [vmem:[%s2 + $0x30] sm:$0xff]
  %v32 = vld [vmem:[%s2 + $0x38] sm:$0xff]
  %v33 = vld [vmem:[%s2 + $0x40] sm:$0xff]
  %v34 = vld [vmem:[%s2 + $0x48] sm:$0xff]
  %v35 = vld [vmem:[%s2 + $0x50] sm:$0xff]
  %v36 = vld [vmem:[%s2 + $0x58] sm:$0xff]
  %v37 = vld [vmem:[%s2 + $0x60] sm:$0xff]
  %v38 = vld [vmem:[%s2 + $0x68] sm:$0xff]
  %v39 = vld [vmem:[%s2 + $0x70] sm:$0xff]
  %v40 = vld [vmem:[%s2 + $0x78] sm:$0xff]
  %v41 = vld [vmem:[%s2 + $0x80] sm:$0xff]
  %v42 = vld [vmem:[%s2 + $0x88] sm:$0xff]
  %v43 = vld [vmem:[%s2 + $0x90] sm:$0xff]
  %v44 = vld [vmem:[%s2 + $0x98] sm:$0xff]
  %v45 = vld [vmem:[%s2 + $0xa0] sm:$0xff]
  %v46 = vld [vmem:[%s2 + $0xa8] sm:$0xff]
  %v47 = vld [vmem:[%s2 + $0xb0] sm:$0xff]
  %v48 = vld [vmem:[%s2 + $0xb8] sm:$0xff]
  %v49 = vld [vmem:[%s2 + $0xc0] sm:$0xff]
  %v50 = vld [vmem:[%s2 + $0xc8] sm:$0xff]
  %v51 = vld [vmem:[%s2 + $0xd0] sm:$0xff]
  %v52 = vld [vmem:[%s2 + $0xd8] sm:$0xff]
  %v53 = vld [vmem:[%s2 + $0xe0] sm:$0xff]
  %v54 = vld [vmem:[%s2 + $0xe8] sm:$0xff]
  %v55 = vld [vmem:[%s2 + $0xf0] sm:$0xff]
  %v56 = vld [vmem:[%s2 + $0xf8] sm:$0xff]
  %v57 = vld [vmem:[%s2 + $0x100] sm:$0xff]
  %v58 = vld [vmem:[%s2 + $0x108] sm:$0xff]
  %v59 = vld [vmem:[%s2 + $0x110] sm:$0xff]
  %v60 = vld [vmem:[%s2 + $0x118] sm:$0xff]
  %v61 = vld [vmem:[%s2 + $0x120] sm:$0xff]
  %v62 = vld [vmem:[%s2 + $0x128] sm:$0xff]
  %v63 = vld [vmem:[%s2 + $0x130] sm:$0xff]
  %v64 = vld [vmem:[%s2 + $0x138] sm:$0xff]
  %v65 = vld [vmem:[%s2 + $0x140] sm:$0xff]
  %v66 = vld [vmem:[%s2 + $0x148] sm:$0xff]
  %v67 = vld [vmem:[%s2 + $0x150] sm:$0xff]
  %v68 = vld [vmem:[%s2 + $0x158] sm:$0xff]
  %v69 = vld [vmem:[%s2 + $0x160] sm:$0xff]
  %v70 = vld [vmem:[%s2 + $0x168] sm:$0xff]
  %v71 = vld [vmem:[%s2 + $0x170] sm:$0xff]
  %v72 = vld [vmem:[%s2 + $0x178] sm:$0xff]
  %v73 = vld [vmem:[%s2 + $0x180] sm:$0xff]
  %v74 = vld [vmem:[%s2 + $0x188] sm:$0xff]
  %v75 = vld [vmem:[%s2 + $0x190] sm:$0xff]
  %v76 = vld [vmem:[%s2 + $0x198] sm:$0xff]
  %v77 = vld [vmem:[%s2 + $0x1a0] sm:$0xff]
  %v78 = vld [vmem:[%s2 + $0x1a8] sm:$0xff]
  %v79 = vld [vmem:[%s2 + $0x1b0] sm:$0xff]
  %v80 = vld [vmem:[%s2 + $0x1b8] sm:$0xff]
  %v81 = vld [vmem:[%s2 + $0x1c0] sm:$0xff]
  %v82 = vld [vmem:[%s2 + $0x1c8] sm:$0xff]
  %v83 = vld [vmem:[%s2 + $0x1d0] sm:$0xff]
  %v84 = vld [vmem:[%s2 + $0x1d8] sm:$0xff]
  %v85 = vld [vmem:[%s2 + $0x1e0] sm:$0xff]
  %v86 = vld [vmem:[%s2 + $0x1e8] sm:$0xff]
  %v87 = vld [vmem:[%s2 + $0x1f0] sm:$0xff]
  %v88 = vld [vmem:[%s2 + $0x1f8] sm:$0xff]
  %v89 = vld [vmem:[%s3] sm:$0x1]
  %v91 = vperm.slane %v89, 0
  %94 = vst [vmem:[#allocation1] ss:$4 sm:$0xff] %v24
  %v95 = vld.sshfl [vmem:[#allocation1] sm:$0xff pattern:$0x73625140]
  %v96 = vld.sshfl [vmem:[#allocation1 + $0x8] sm:$0xff pattern:$0x73625140]
  %v97 = vld.sshfl [vmem:[#allocation1 + $0x10] sm:$0xff pattern:$0x73625140]
  %v98 = vld.sshfl [vmem:[#allocation1 + $0x18] sm:$0xff pattern:$0x73625140]
  %v103 = vand.u32 %v40, 4294901760
  %104 = vmatpush.msra.mxu0 %v103
  %v105 = vand.u32 %v39, 4294901760
  %106 = vmatpush.msra.mxu0 %v105
  %v107 = vand.u32 %v38, 4294901760
  %108 = vmatpush.msra.mxu0 %v107
  %v109 = vand.u32 %v37, 4294901760
  %110 = vmatpush.msra.mxu0 %v109
  %v111 = vand.u32 %v36, 4294901760
  %112 = vmatpush.msra.mxu0 %v111
  %v113 = vand.u32 %v35, 4294901760
  %114 = vmatpush.msra.mxu0 %v113
  %v115 = vand.u32 %v34, 4294901760
  %116 = vmatpush.msra.mxu0 %v115
  %v117 = vand.u32 %v33, 4294901760
  %118 = vmatpush.msra.mxu0 %v117
  %v119 = vand.u32 %v32, 4294901760
  %120 = vmatpush.msra.mxu0 %v119
  %v121 = vand.u32 %v31, 4294901760
  %122 = vmatpush.msra.mxu0 %v121
  %v123 = vand.u32 %v30, 4294901760
  %124 = vmatpush.msra.mxu0 %v123
  %v125 = vand.u32 %v29, 4294901760
  %126 = vmatpush.msra.mxu0 %v125
  %v127 = vand.u32 %v28, 4294901760
  %128 = vmatpush.msra.mxu0 %v127
  %v129 = vand.u32 %v27, 4294901760
  %130 = vmatpush.msra.mxu0 %v129
  %v131 = vand.u32 %v26, 4294901760
  %132 = vmatpush.msra.mxu0 %v131
  %v133 = vand.u32 %v25, 4294901760
  %134 = vmatpush.msra.mxu0 %v133
  %v135 = vand.u32 %v95, 4294901760
  %v136 = vsub.f32 %v95, %v135
  %v137 = vand.u32 %v136, 4294901760
  %v138 = vsub.f32 %v136, %v137
  %v139 = vand.u32 %v138, 4294901760
  %140 = vmatmul.f32.gmra.mxu0 %v139
  %v141 = vpop.f32.mrf.mxu0
  %v142 = vadd.f32 %v91, %v141
  %143 = vdwg.mxu0
  %v144 = vand.u32 %v40, 4294901760
  %v145 = vsub.f32 %v40, %v144
  %v146 = vand.u32 %v145, 4294901760
  %v147 = vsub.f32 %v145, %v146
  %v148 = vand.u32 %v147, 4294901760
  %149 = vmatpush.msra.mxu0 %v148
  %v150 = vand.u32 %v39, 4294901760
  %v151 = vsub.f32 %v39, %v150
  %v152 = vand.u32 %v151, 4294901760
  %v153 = vsub.f32 %v151, %v152
  %v154 = vand.u32 %v153, 4294901760
  %155 = vmatpush.msra.mxu0 %v154
  %v156 = vand.u32 %v38, 4294901760
  %v157 = vsub.f32 %v38, %v156
  %v158 = vand.u32 %v157, 4294901760
  %v159 = vsub.f32 %v157, %v158
  %v160 = vand.u32 %v159, 4294901760
  %161 = vmatpush.msra.mxu0 %v160
  %v162 = vand.u32 %v37, 4294901760
  %v163 = vsub.f32 %v37, %v162
  %v164 = vand.u32 %v163, 4294901760
  %v165 = vsub.f32 %v163, %v164
  %v166 = vand.u32 %v165, 4294901760
  %167 = vmatpush.msra.mxu0 %v166
  %v168 = vand.u32 %v36, 4294901760
  %v169 = vsub.f32 %v36, %v168
  %v170 = vand.u32 %v169, 4294901760
  %v171 = vsub.f32 %v169, %v170
  %v172 = vand.u32 %v171, 4294901760
  %173 = vmatpush.msra.mxu0 %v172
  %v174 = vand.u32 %v35, 4294901760
  %v175 = vsub.f32 %v35, %v174
  %v176 = vand.u32 %v175, 4294901760
  %v177 = vsub.f32 %v175, %v176
  %v178 = vand.u32 %v177, 4294901760
  %179 = vmatpush.msra.mxu0 %v178
  %v180 = vand.u32 %v34, 4294901760
  %v181 = vsub.f32 %v34, %v180
  %v182 = vand.u32 %v181, 4294901760
  %v183 = vsub.f32 %v181, %v182
  %v184 = vand.u32 %v183, 4294901760
  %185 = vmatpush.msra.mxu0 %v184
  %v186 = vand.u32 %v33, 4294901760
  %v187 = vsub.f32 %v33, %v186
  %v188 = vand.u32 %v187, 4294901760
  %v189 = vsub.f32 %v187, %v188
  %v190 = vand.u32 %v189, 4294901760
  %191 = vmatpush.msra.mxu0 %v190
  %v192 = vand.u32 %v32, 4294901760
  %v193 = vsub.f32 %v32, %v192
  %v194 = vand.u32 %v193, 4294901760
  %v195 = vsub.f32 %v193, %v194
  %v196 = vand.u32 %v195, 4294901760
  %197 = vmatpush.msra.mxu0 %v196
  %v198 = vand.u32 %v31, 4294901760
  %v199 = vsub.f32 %v31, %v198
  %v200 = vand.u32 %v199, 4294901760
  %v201 = vsub.f32 %v199, %v200
  %v202 = vand.u32 %v201, 4294901760
  %203 = vmatpush.msra.mxu0 %v202
  %v204 = vand.u32 %v30, 4294901760
  %v205 = vsub.f32 %v30, %v204
  %v206 = vand.u32 %v205, 4294901760
  %v207 = vsub.f32 %v205, %v206
  %v208 = vand.u32 %v207, 4294901760
  %209 = vmatpush.msra.mxu0 %v208
  %v210 = vand.u32 %v29, 4294901760
  %v211 = vsub.f32 %v29, %v210
  %v212 = vand.u32 %v211, 4294901760
  %v213 = vsub.f32 %v211, %v212
  %v214 = vand.u32 %v213, 4294901760
  %215 = vmatpush.msra.mxu0 %v214
  %v216 = vand.u32 %v28, 4294901760
  %v217 = vsub.f32 %v28, %v216
  %v218 = vand.u32 %v217, 4294901760
  %v219 = vsub.f32 %v217, %v218
  %v220 = vand.u32 %v219, 4294901760
  %221 = vmatpush.msra.mxu0 %v220
  %v222 = vand.u32 %v27, 4294901760
  %v223 = vsub.f32 %v27, %v222
  %v224 = vand.u32 %v223, 4294901760
  %v225 = vsub.f32 %v223, %v224
  %v226 = vand.u32 %v225, 4294901760
  %227 = vmatpush.msra.mxu0 %v226
  %v228 = vand.u32 %v26, 4294901760
  %v229 = vsub.f32 %v26, %v228
  %v230 = vand.u32 %v229, 4294901760
  %v231 = vsub.f32 %v229, %v230
  %v232 = vand.u32 %v231, 4294901760
  %233 = vmatpush.msra.mxu0 %v232
  %v234 = vand.u32 %v25, 4294901760
  %v235 = vsub.f32 %v25, %v234
  %v236 = vand.u32 %v235, 4294901760
  %v237 = vsub.f32 %v235, %v236
  %v238 = vand.u32 %v237, 4294901760
  %239 = vmatpush.msra.mxu0 %v238
  %v240 = vand.u32 %v95, 4294901760
  %241 = vmatmul.f32.gmra.mxu0 %v240
  %v242 = vpop.f32.mrf.mxu0
  %v243 = vadd.f32 %v142, %v242
  %244 = vdwg.mxu0
  %v245 = vand.u32 %v40, 4294901760
  %v246 = vsub.f32 %v40, %v245
  %247 = vmatpush.msra.mxu0 %v246
  %v248 = vand.u32 %v39, 4294901760
  %v249 = vsub.f32 %v39, %v248
  %250 = vmatpush.msra.mxu0 %v249
  %v251 = vand.u32 %v38, 4294901760
  %v252 = vsub.f32 %v38, %v251
  %253 = vmatpush.msra.mxu0 %v252
  %v254 = vand.u32 %v37, 4294901760
  %v255 = vsub.f32 %v37, %v254
  %256 = vmatpush.msra.mxu0 %v255
  %v257 = vand.u32 %v36, 4294901760
  %v258 = vsub.f32 %v36, %v257
  %259 = vmatpush.msra.mxu0 %v258
  %v260 = vand.u32 %v35, 4294901760
  %v261 = vsub.f32 %v35, %v260
  %262 = vmatpush.msra.mxu0 %v261
  %v263 = vand.u32 %v34, 4294901760
  %v264 = vsub.f32 %v34, %v263
  %265 = vmatpush.msra.mxu0 %v264
  %v266 = vand.u32 %v33, 4294901760
  %v267 = vsub.f32 %v33, %v266
  %268 = vmatpush.msra.mxu0 %v267
  %v269 = vand.u32 %v32, 4294901760
  %v270 = vsub.f32 %v32, %v269
  %271 = vmatpush.msra.mxu0 %v270
  %v272 = vand.u32 %v31, 4294901760
  %v273 = vsub.f32 %v31, %v272
  %274 = vmatpush.msra.mxu0 %v273
  %v275 = vand.u32 %v30, 4294901760
  %v276 = vsub.f32 %v30, %v275
  %277 = vmatpush.msra.mxu0 %v276
  %v278 = vand.u32 %v29, 4294901760
  %v279 = vsub.f32 %v29, %v278
  %280 = vmatpush.msra.mxu0 %v279
  %v281 = vand.u32 %v28, 4294901760
  %v282 = vsub.f32 %v28, %v281
  %283 = vmatpush.msra.mxu0 %v282
  %v284 = vand.u32 %v27, 4294901760
  %v285 = vsub.f32 %v27, %v284
  %286 = vmatpush.msra.mxu0 %v285
  %v287 = vand.u32 %v26, 4294901760
  %v288 = vsub.f32 %v26, %v287
  %289 = vmatpush.msra.mxu0 %v288
  %v290 = vand.u32 %v25, 4294901760
  %v291 = vsub.f32 %v25, %v290
  %292 = vmatpush.msra.mxu0 %v291
  %v293 = vand.u32 %v95, 4294901760
  %v294 = vsub.f32 %v95, %v293
  %295 = vmatmul.f32.gmra.mxu0 %v294
  %v296 = vpop.f32.mrf.mxu0
  %v297 = vadd.f32 %v243, %v296
  %298 = vdwg.mxu0
  %v299 = vand.u32 %v40, 4294901760
  %300 = vmatpush.msra.mxu0 %v299
  %v301 = vand.u32 %v39, 4294901760
  %302 = vmatpush.msra.mxu0 %v301
  %v303 = vand.u32 %v38, 4294901760
  %304 = vmatpush.msra.mxu0 %v303
  %v305 = vand.u32 %v37, 4294901760
  %306 = vmatpush.msra.mxu0 %v305
  %v307 = vand.u32 %v36, 4294901760
  %308 = vmatpush.msra.mxu0 %v307
  %v309 = vand.u32 %v35, 4294901760
  %310 = vmatpush.msra.mxu0 %v309
  %v311 = vand.u32 %v34, 4294901760
  %312 = vmatpush.msra.mxu0 %v311
  %v313 = vand.u32 %v33, 4294901760
  %314 = vmatpush.msra.mxu0 %v313
  %v315 = vand.u32 %v32, 4294901760
  %316 = vmatpush.msra.mxu0 %v315
  %v317 = vand.u32 %v31, 4294901760
  %318 = vmatpush.msra.mxu0 %v317
  %v319 = vand.u32 %v30, 4294901760
  %320 = vmatpush.msra.mxu0 %v319
  %v321 = vand.u32 %v29, 4294901760
  %322 = vmatpush.msra.mxu0 %v321
  %v323 = vand.u32 %v28, 4294901760
  %324 = vmatpush.msra.mxu0 %v323
  %v325 = vand.u32 %v27, 4294901760
  %326 = vmatpush.msra.mxu0 %v325
  %v327 = vand.u32 %v26, 4294901760
  %328 = vmatpush.msra.mxu0 %v327
  %v329 = vand.u32 %v25, 4294901760
  %330 = vmatpush.msra.mxu0 %v329
  %v331 = vand.u32 %v95, 4294901760
  %v332 = vsub.f32 %v95, %v331
  %v333 = vand.u32 %v332, 4294901760
  %334 = vmatmul.f32.gmra.mxu0 %v333
  %v335 = vpop.f32.mrf.mxu0
  %v336 = vadd.f32 %v297, %v335
  %337 = vdwg.mxu0
  %v338 = vand.u32 %v40, 4294901760
  %v339 = vsub.f32 %v40, %v338
  %v340 = vand.u32 %v339, 4294901760
  %341 = vmatpush.msra.mxu0 %v340
  %v342 = vand.u32 %v39, 4294901760
  %v343 = vsub.f32 %v39, %v342
  %v344 = vand.u32 %v343, 4294901760
  %345 = vmatpush.msra.mxu0 %v344
  %v346 = vand.u32 %v38, 4294901760
  %v347 = vsub.f32 %v38, %v346
  %v348 = vand.u32 %v347, 4294901760
  %349 = vmatpush.msra.mxu0 %v348
  %v350 = vand.u32 %v37, 4294901760
  %v351 = vsub.f32 %v37, %v350
  %v352 = vand.u32 %v351, 4294901760
  %353 = vmatpush.msra.mxu0 %v352
  %v354 = vand.u32 %v36, 4294901760
  %v355 = vsub.f32 %v36, %v354
  %v356 = vand.u32 %v355, 4294901760
  %357 = vmatpush.msra.mxu0 %v356
  %v358 = vand.u32 %v35, 4294901760
  %v359 = vsub.f32 %v35, %v358
  %v360 = vand.u32 %v359, 4294901760
  %361 = vmatpush.msra.mxu0 %v360
  %v362 = vand.u32 %v34, 4294901760
  %v363 = vsub.f32 %v34, %v362
  %v364 = vand.u32 %v363, 4294901760
  %365 = vmatpush.msra.mxu0 %v364
  %v366 = vand.u32 %v33, 4294901760
  %v367 = vsub.f32 %v33, %v366
  %v368 = vand.u32 %v367, 4294901760
  %369 = vmatpush.msra.mxu0 %v368
  %v370 = vand.u32 %v32, 4294901760
  %v371 = vsub.f32 %v32, %v370
  %v372 = vand.u32 %v371, 4294901760
  %373 = vmatpush.msra.mxu0 %v372
  %v374 = vand.u32 %v31, 4294901760
  %v375 = vsub.f32 %v31, %v374
  %v376 = vand.u32 %v375, 4294901760
  %377 = vmatpush.msra.mxu0 %v376
  %v378 = vand.u32 %v30, 4294901760
  %v379 = vsub.f32 %v30, %v378
  %v380 = vand.u32 %v379, 4294901760
  %381 = vmatpush.msra.mxu0 %v380
  %v382 = vand.u32 %v29, 4294901760
  %v383 = vsub.f32 %v29, %v382
  %v384 = vand.u32 %v383, 4294901760
  %385 = vmatpush.msra.mxu0 %v384
  %v386 = vand.u32 %v28, 4294901760
  %v387 = vsub.f32 %v28, %v386
  %v388 = vand.u32 %v387, 4294901760
  %389 = vmatpush.msra.mxu0 %v388
  %v390 = vand.u32 %v27, 4294901760
  %v391 = vsub.f32 %v27, %v390
  %v392 = vand.u32 %v391, 4294901760
  %393 = vmatpush.msra.mxu0 %v392
  %v394 = vand.u32 %v26, 4294901760
  %v395 = vsub.f32 %v26, %v394
  %v396 = vand.u32 %v395, 4294901760
  %397 = vmatpush.msra.mxu0 %v396
  %v398 = vand.u32 %v25, 4294901760
  %v399 = vsub.f32 %v25, %v398
  %v400 = vand.u32 %v399, 4294901760
  %401 = vmatpush.msra.mxu0 %v400
  %v402 = vand.u32 %v95, 4294901760
  %403 = vmatmul.f32.gmra.mxu0 %v402
  %v404 = vpop.f32.mrf.mxu0
  %v405 = vadd.f32 %v336, %v404
  %406 = vdwg.mxu0
  %v407 = vand.u32 %v40, 4294901760
  %408 = vmatpush.msra.mxu0 %v407
  %v409 = vand.u32 %v39, 4294901760
  %410 = vmatpush.msra.mxu0 %v409
  %v411 = vand.u32 %v38, 4294901760
  %412 = vmatpush.msra.mxu0 %v411
  %v413 = vand.u32 %v37, 4294901760
  %414 = vmatpush.msra.mxu0 %v413
  %v415 = vand.u32 %v36, 4294901760
  %416 = vmatpush.msra.mxu0 %v415
  %v417 = vand.u32 %v35, 4294901760
  %418 = vmatpush.msra.mxu0 %v417
  %v419 = vand.u32 %v34, 4294901760
  %420 = vmatpush.msra.mxu0 %v419
  %v421 = vand.u32 %v33, 4294901760
  %422 = vmatpush.msra.mxu0 %v421
  %v423 = vand.u32 %v32, 4294901760
  %424 = vmatpush.msra.mxu0 %v423
  %v425 = vand.u32 %v31, 4294901760
  %426 = vmatpush.msra.mxu0 %v425
  %v427 = vand.u32 %v30, 4294901760
  %428 = vmatpush.msra.mxu0 %v427
  %v429 = vand.u32 %v29, 4294901760
  %430 = vmatpush.msra.mxu0 %v429
  %v431 = vand.u32 %v28, 4294901760
  %432 = vmatpush.msra.mxu0 %v431
  %v433 = vand.u32 %v27, 4294901760
  %434 = vmatpush.msra.mxu0 %v433
  %v435 = vand.u32 %v26, 4294901760
  %436 = vmatpush.msra.mxu0 %v435
  %v437 = vand.u32 %v25, 4294901760
  %438 = vmatpush.msra.mxu0 %v437
  %v439 = vand.u32 %v95, 4294901760
  %440 = vmatmul.f32.gmra.mxu0 %v439
  %v441 = vpop.f32.mrf.mxu0
  %v442 = vadd.f32 %v405, %v441
  %443 = vdwg.mxu0
  %v444 = vand.u32 %v56, 4294901760
  %445 = vmatpush.msra.mxu0 %v444
  %v446 = vand.u32 %v55, 4294901760
  %447 = vmatpush.msra.mxu0 %v446
  %v448 = vand.u32 %v54, 4294901760
  %449 = vmatpush.msra.mxu0 %v448
  %v450 = vand.u32 %v53, 4294901760
  %451 = vmatpush.msra.mxu0 %v450
  %v452 = vand.u32 %v52, 4294901760
  %453 = vmatpush.msra.mxu0 %v452
  %v454 = vand.u32 %v51, 4294901760
  %455 = vmatpush.msra.mxu0 %v454
  %v456 = vand.u32 %v50, 4294901760
  %457 = vmatpush.msra.mxu0 %v456
  %v458 = vand.u32 %v49, 4294901760
  %459 = vmatpush.msra.mxu0 %v458
  %v460 = vand.u32 %v48, 4294901760
  %461 = vmatpush.msra.mxu0 %v460
  %v462 = vand.u32 %v47, 4294901760
  %463 = vmatpush.msra.mxu0 %v462
  %v464 = vand.u32 %v46, 4294901760
  %465 = vmatpush.msra.mxu0 %v464
  %v466 = vand.u32 %v45, 4294901760
  %467 = vmatpush.msra.mxu0 %v466
  %v468 = vand.u32 %v44, 4294901760
  %469 = vmatpush.msra.mxu0 %v468
  %v470 = vand.u32 %v43, 4294901760
  %471 = vmatpush.msra.mxu0 %v470
  %v472 = vand.u32 %v42, 4294901760
  %473 = vmatpush.msra.mxu0 %v472
  %v474 = vand.u32 %v41, 4294901760
  %475 = vmatpush.msra.mxu0 %v474
  %v476 = vand.u32 %v96, 4294901760
  %v477 = vsub.f32 %v96, %v476
  %v478 = vand.u32 %v477, 4294901760
  %v479 = vsub.f32 %v477, %v478
  %v480 = vand.u32 %v479, 4294901760
  %481 = vmatmul.f32.gmra.mxu0 %v480
  %v482 = vpop.f32.mrf.mxu0
  %v483 = vadd.f32 %v442, %v482
  %484 = vdwg.mxu0
  %v485 = vand.u32 %v56, 4294901760
  %v486 = vsub.f32 %v56, %v485
  %v487 = vand.u32 %v486, 4294901760
  %v488 = vsub.f32 %v486, %v487
  %v489 = vand.u32 %v488, 4294901760
  %490 = vmatpush.msra.mxu0 %v489
  %v491 = vand.u32 %v55, 4294901760
  %v492 = vsub.f32 %v55, %v491
  %v493 = vand.u32 %v492, 4294901760
  %v494 = vsub.f32 %v492, %v493
  %v495 = vand.u32 %v494, 4294901760
  %496 = vmatpush.msra.mxu0 %v495
  %v497 = vand.u32 %v54, 4294901760
  %v498 = vsub.f32 %v54, %v497
  %v499 = vand.u32 %v498, 4294901760
  %v500 = vsub.f32 %v498, %v499
  %v501 = vand.u32 %v500, 4294901760
  %502 = vmatpush.msra.mxu0 %v501
  %v503 = vand.u32 %v53, 4294901760
  %v504 = vsub.f32 %v53, %v503
  %v505 = vand.u32 %v504, 4294901760
  %v506 = vsub.f32 %v504, %v505
  %v507 = vand.u32 %v506, 4294901760
  %508 = vmatpush.msra.mxu0 %v507
  %v509 = vand.u32 %v52, 4294901760
  %v510 = vsub.f32 %v52, %v509
  %v511 = vand.u32 %v510, 4294901760
  %v512 = vsub.f32 %v510, %v511
  %v513 = vand.u32 %v512, 4294901760
  %514 = vmatpush.msra.mxu0 %v513
  %v515 = vand.u32 %v51, 4294901760
  %v516 = vsub.f32 %v51, %v515
  %v517 = vand.u32 %v516, 4294901760
  %v518 = vsub.f32 %v516, %v517
  %v519 = vand.u32 %v518, 4294901760
  %520 = vmatpush.msra.mxu0 %v519
  %v521 = vand.u32 %v50, 4294901760
  %v522 = vsub.f32 %v50, %v521
  %v523 = vand.u32 %v522, 4294901760
  %v524 = vsub.f32 %v522, %v523
  %v525 = vand.u32 %v524, 4294901760
  %526 = vmatpush.msra.mxu0 %v525
  %v527 = vand.u32 %v49, 4294901760
  %v528 = vsub.f32 %v49, %v527
  %v529 = vand.u32 %v528, 4294901760
  %v530 = vsub.f32 %v528, %v529
  %v531 = vand.u32 %v530, 4294901760
  %532 = vmatpush.msra.mxu0 %v531
  %v533 = vand.u32 %v48, 4294901760
  %v534 = vsub.f32 %v48, %v533
  %v535 = vand.u32 %v534, 4294901760
  %v536 = vsub.f32 %v534, %v535
  %v537 = vand.u32 %v536, 4294901760
  %538 = vmatpush.msra.mxu0 %v537
  %v539 = vand.u32 %v47, 4294901760
  %v540 = vsub.f32 %v47, %v539
  %v541 = vand.u32 %v540, 4294901760
  %v542 = vsub.f32 %v540, %v541
  %v543 = vand.u32 %v542, 4294901760
  %544 = vmatpush.msra.mxu0 %v543
  %v545 = vand.u32 %v46, 4294901760
  %v546 = vsub.f32 %v46, %v545
  %v547 = vand.u32 %v546, 4294901760
  %v548 = vsub.f32 %v546, %v547
  %v549 = vand.u32 %v548, 4294901760
  %550 = vmatpush.msra.mxu0 %v549
  %v551 = vand.u32 %v45, 4294901760
  %v552 = vsub.f32 %v45, %v551
  %v553 = vand.u32 %v552, 4294901760
  %v554 = vsub.f32 %v552, %v553
  %v555 = vand.u32 %v554, 4294901760
  %556 = vmatpush.msra.mxu0 %v555
  %v557 = vand.u32 %v44, 4294901760
  %v558 = vsub.f32 %v44, %v557
  %v559 = vand.u32 %v558, 4294901760
  %v560 = vsub.f32 %v558, %v559
  %v561 = vand.u32 %v560, 4294901760
  %562 = vmatpush.msra.mxu0 %v561
  %v563 = vand.u32 %v43, 4294901760
  %v564 = vsub.f32 %v43, %v563
  %v565 = vand.u32 %v564, 4294901760
  %v566 = vsub.f32 %v564, %v565
  %v567 = vand.u32 %v566, 4294901760
  %568 = vmatpush.msra.mxu0 %v567
  %v569 = vand.u32 %v42, 4294901760
  %v570 = vsub.f32 %v42, %v569
  %v571 = vand.u32 %v570, 4294901760
  %v572 = vsub.f32 %v570, %v571
  %v573 = vand.u32 %v572, 4294901760
  %574 = vmatpush.msra.mxu0 %v573
  %v575 = vand.u32 %v41, 4294901760
  %v576 = vsub.f32 %v41, %v575
  %v577 = vand.u32 %v576, 4294901760
  %v578 = vsub.f32 %v576, %v577
  %v579 = vand.u32 %v578, 4294901760
  %580 = vmatpush.msra.mxu0 %v579
  %v581 = vand.u32 %v96, 4294901760
  %582 = vmatmul.f32.gmra.mxu0 %v581
  %v583 = vpop.f32.mrf.mxu0
  %v584 = vadd.f32 %v483, %v583
  %585 = vdwg.mxu0
  %v586 = vand.u32 %v56, 4294901760
  %v587 = vsub.f32 %v56, %v586
  %588 = vmatpush.msra.mxu0 %v587
  %v589 = vand.u32 %v55, 4294901760
  %v590 = vsub.f32 %v55, %v589
  %591 = vmatpush.msra.mxu0 %v590
  %v592 = vand.u32 %v54, 4294901760
  %v593 = vsub.f32 %v54, %v592
  %594 = vmatpush.msra.mxu0 %v593
  %v595 = vand.u32 %v53, 4294901760
  %v596 = vsub.f32 %v53, %v595
  %597 = vmatpush.msra.mxu0 %v596
  %v598 = vand.u32 %v52, 4294901760
  %v599 = vsub.f32 %v52, %v598
  %600 = vmatpush.msra.mxu0 %v599
  %v601 = vand.u32 %v51, 4294901760
  %v602 = vsub.f32 %v51, %v601
  %603 = vmatpush.msra.mxu0 %v602
  %v604 = vand.u32 %v50, 4294901760
  %v605 = vsub.f32 %v50, %v604
  %606 = vmatpush.msra.mxu0 %v605
  %v607 = vand.u32 %v49, 4294901760
  %v608 = vsub.f32 %v49, %v607
  %609 = vmatpush.msra.mxu0 %v608
  %v610 = vand.u32 %v48, 4294901760
  %v611 = vsub.f32 %v48, %v610
  %612 = vmatpush.msra.mxu0 %v611
  %v613 = vand.u32 %v47, 4294901760
  %v614 = vsub.f32 %v47, %v613
  %615 = vmatpush.msra.mxu0 %v614
  %v616 = vand.u32 %v46, 4294901760
  %v617 = vsub.f32 %v46, %v616
  %618 = vmatpush.msra.mxu0 %v617
  %v619 = vand.u32 %v45, 4294901760
  %v620 = vsub.f32 %v45, %v619
  %621 = vmatpush.msra.mxu0 %v620
  %v622 = vand.u32 %v44, 4294901760
  %v623 = vsub.f32 %v44, %v622
  %624 = vmatpush.msra.mxu0 %v623
  %v625 = vand.u32 %v43, 4294901760
  %v626 = vsub.f32 %v43, %v625
  %627 = vmatpush.msra.mxu0 %v626
  %v628 = vand.u32 %v42, 4294901760
  %v629 = vsub.f32 %v42, %v628
  %630 = vmatpush.msra.mxu0 %v629
  %v631 = vand.u32 %v41, 4294901760
  %v632 = vsub.f32 %v41, %v631
  %633 = vmatpush.msra.mxu0 %v632
  %v634 = vand.u32 %v96, 4294901760
  %v635 = vsub.f32 %v96, %v634
  %636 = vmatmul.f32.gmra.mxu0 %v635
  %v637 = vpop.f32.mrf.mxu0
  %v638 = vadd.f32 %v584, %v637
  %639 = vdwg.mxu0
  %v640 = vand.u32 %v56, 4294901760
  %641 = vmatpush.msra.mxu0 %v640
  %v642 = vand.u32 %v55, 4294901760
  %643 = vmatpush.msra.mxu0 %v642
  %v644 = vand.u32 %v54, 4294901760
  %645 = vmatpush.msra.mxu0 %v644
  %v646 = vand.u32 %v53, 4294901760
  %647 = vmatpush.msra.mxu0 %v646
  %v648 = vand.u32 %v52, 4294901760
  %649 = vmatpush.msra.mxu0 %v648
  %v650 = vand.u32 %v51, 4294901760
  %651 = vmatpush.msra.mxu0 %v650
  %v652 = vand.u32 %v50, 4294901760
  %653 = vmatpush.msra.mxu0 %v652
  %v654 = vand.u32 %v49, 4294901760
  %655 = vmatpush.msra.mxu0 %v654
  %v656 = vand.u32 %v48, 4294901760
  %657 = vmatpush.msra.mxu0 %v656
  %v658 = vand.u32 %v47, 4294901760
  %659 = vmatpush.msra.mxu0 %v658
  %v660 = vand.u32 %v46, 4294901760
  %661 = vmatpush.msra.mxu0 %v660
  %v662 = vand.u32 %v45, 4294901760
  %663 = vmatpush.msra.mxu0 %v662
  %v664 = vand.u32 %v44, 4294901760
  %665 = vmatpush.msra.mxu0 %v664
  %v666 = vand.u32 %v43, 4294901760
  %667 = vmatpush.msra.mxu0 %v666
  %v668 = vand.u32 %v42, 4294901760
  %669 = vmatpush.msra.mxu0 %v668
  %v670 = vand.u32 %v41, 4294901760
  %671 = vmatpush.msra.mxu0 %v670
  %v672 = vand.u32 %v96, 4294901760
  %v673 = vsub.f32 %v96, %v672
  %v674 = vand.u32 %v673, 4294901760
  %675 = vmatmul.f32.gmra.mxu0 %v674
  %v676 = vpop.f32.mrf.mxu0
  %v677 = vadd.f32 %v638, %v676
  %678 = vdwg.mxu0
  %v679 = vand.u32 %v56, 4294901760
  %v680 = vsub.f32 %v56, %v679
  %v681 = vand.u32 %v680, 4294901760
  %682 = vmatpush.msra.mxu0 %v681
  %v683 = vand.u32 %v55, 4294901760
  %v684 = vsub.f32 %v55, %v683
  %v685 = vand.u32 %v684, 4294901760
  %686 = vmatpush.msra.mxu0 %v685
  %v687 = vand.u32 %v54, 4294901760
  %v688 = vsub.f32 %v54, %v687
  %v689 = vand.u32 %v688, 4294901760
  %690 = vmatpush.msra.mxu0 %v689
  %v691 = vand.u32 %v53, 4294901760
  %v692 = vsub.f32 %v53, %v691
  %v693 = vand.u32 %v692, 4294901760
  %694 = vmatpush.msra.mxu0 %v693
  %v695 = vand.u32 %v52, 4294901760
  %v696 = vsub.f32 %v52, %v695
  %v697 = vand.u32 %v696, 4294901760
  %698 = vmatpush.msra.mxu0 %v697
  %v699 = vand.u32 %v51, 4294901760
  %v700 = vsub.f32 %v51, %v699
  %v701 = vand.u32 %v700, 4294901760
  %702 = vmatpush.msra.mxu0 %v701
  %v703 = vand.u32 %v50, 4294901760
  %v704 = vsub.f32 %v50, %v703
  %v705 = vand.u32 %v704, 4294901760
  %706 = vmatpush.msra.mxu0 %v705
  %v707 = vand.u32 %v49, 4294901760
  %v708 = vsub.f32 %v49, %v707
  %v709 = vand.u32 %v708, 4294901760
  %710 = vmatpush.msra.mxu0 %v709
  %v711 = vand.u32 %v48, 4294901760
  %v712 = vsub.f32 %v48, %v711
  %v713 = vand.u32 %v712, 4294901760
  %714 = vmatpush.msra.mxu0 %v713
  %v715 = vand.u32 %v47, 4294901760
  %v716 = vsub.f32 %v47, %v715
  %v717 = vand.u32 %v716, 4294901760
  %718 = vmatpush.msra.mxu0 %v717
  %v719 = vand.u32 %v46, 4294901760
  %v720 = vsub.f32 %v46, %v719
  %v721 = vand.u32 %v720, 4294901760
  %722 = vmatpush.msra.mxu0 %v721
  %v723 = vand.u32 %v45, 4294901760
  %v724 = vsub.f32 %v45, %v723
  %v725 = vand.u32 %v724, 4294901760
  %726 = vmatpush.msra.mxu0 %v725
  %v727 = vand.u32 %v44, 4294901760
  %v728 = vsub.f32 %v44, %v727
  %v729 = vand.u32 %v728, 4294901760
  %730 = vmatpush.msra.mxu0 %v729
  %v731 = vand.u32 %v43, 4294901760
  %v732 = vsub.f32 %v43, %v731
  %v733 = vand.u32 %v732, 4294901760
  %734 = vmatpush.msra.mxu0 %v733
  %v735 = vand.u32 %v42, 4294901760
  %v736 = vsub.f32 %v42, %v735
  %v737 = vand.u32 %v736, 4294901760
  %738 = vmatpush.msra.mxu0 %v737
  %v739 = vand.u32 %v41, 4294901760
  %v740 = vsub.f32 %v41, %v739
  %v741 = vand.u32 %v740, 4294901760
  %742 = vmatpush.msra.mxu0 %v741
  %v743 = vand.u32 %v96, 4294901760
  %744 = vmatmul.f32.gmra.mxu0 %v743
  %v745 = vpop.f32.mrf.mxu0
  %v746 = vadd.f32 %v677, %v745
  %747 = vdwg.mxu0
  %v748 = vand.u32 %v56, 4294901760
  %749 = vmatpush.msra.mxu0 %v748
  %v750 = vand.u32 %v55, 4294901760
  %751 = vmatpush.msra.mxu0 %v750
  %v752 = vand.u32 %v54, 4294901760
  %753 = vmatpush.msra.mxu0 %v752
  %v754 = vand.u32 %v53, 4294901760
  %755 = vmatpush.msra.mxu0 %v754
  %v756 = vand.u32 %v52, 4294901760
  %757 = vmatpush.msra.mxu0 %v756
  %v758 = vand.u32 %v51, 4294901760
  %759 = vmatpush.msra.mxu0 %v758
  %v760 = vand.u32 %v50, 4294901760
  %761 = vmatpush.msra.mxu0 %v760
  %v762 = vand.u32 %v49, 4294901760
  %763 = vmatpush.msra.mxu0 %v762
  %v764 = vand.u32 %v48, 4294901760
  %765 = vmatpush.msra.mxu0 %v764
  %v766 = vand.u32 %v47, 4294901760
  %767 = vmatpush.msra.mxu0 %v766
  %v768 = vand.u32 %v46, 4294901760
  %769 = vmatpush.msra.mxu0 %v768
  %v770 = vand.u32 %v45, 4294901760
  %771 = vmatpush.msra.mxu0 %v770
  %v772 = vand.u32 %v44, 4294901760
  %773 = vmatpush.msra.mxu0 %v772
  %v774 = vand.u32 %v43, 4294901760
  %775 = vmatpush.msra.mxu0 %v774
  %v776 = vand.u32 %v42, 4294901760
  %777 = vmatpush.msra.mxu0 %v776
  %v778 = vand.u32 %v41, 4294901760
  %779 = vmatpush.msra.mxu0 %v778
  %v780 = vand.u32 %v96, 4294901760
  %781 = vmatmul.f32.gmra.mxu0 %v780
  %v782 = vpop.f32.mrf.mxu0
  %v783 = vadd.f32 %v746, %v782
  %784 = vdwg.mxu0
  %v785 = vand.u32 %v72, 4294901760
  %786 = vmatpush.msra.mxu0 %v785
  %v787 = vand.u32 %v71, 4294901760
  %788 = vmatpush.msra.mxu0 %v787
  %v789 = vand.u32 %v70, 4294901760
  %790 = vmatpush.msra.mxu0 %v789
  %v791 = vand.u32 %v69, 4294901760
  %792 = vmatpush.msra.mxu0 %v791
  %v793 = vand.u32 %v68, 4294901760
  %794 = vmatpush.msra.mxu0 %v793
  %v795 = vand.u32 %v67, 4294901760
  %796 = vmatpush.msra.mxu0 %v795
  %v797 = vand.u32 %v66, 4294901760
  %798 = vmatpush.msra.mxu0 %v797
  %v799 = vand.u32 %v65, 4294901760
  %800 = vmatpush.msra.mxu0 %v799
  %v801 = vand.u32 %v64, 4294901760
  %802 = vmatpush.msra.mxu0 %v801
  %v803 = vand.u32 %v63, 4294901760
  %804 = vmatpush.msra.mxu0 %v803
  %v805 = vand.u32 %v62, 4294901760
  %806 = vmatpush.msra.mxu0 %v805
  %v807 = vand.u32 %v61, 4294901760
  %808 = vmatpush.msra.mxu0 %v807
  %v809 = vand.u32 %v60, 4294901760
  %810 = vmatpush.msra.mxu0 %v809
  %v811 = vand.u32 %v59, 4294901760
  %812 = vmatpush.msra.mxu0 %v811
  %v813 = vand.u32 %v58, 4294901760
  %814 = vmatpush.msra.mxu0 %v813
  %v815 = vand.u32 %v57, 4294901760
  %816 = vmatpush.msra.mxu0 %v815
  %v817 = vand.u32 %v97, 4294901760
  %v818 = vsub.f32 %v97, %v817
  %v819 = vand.u32 %v818, 4294901760
  %v820 = vsub.f32 %v818, %v819
  %v821 = vand.u32 %v820, 4294901760
  %822 = vmatmul.f32.gmra.mxu0 %v821
  %v823 = vpop.f32.mrf.mxu0
  %v824 = vadd.f32 %v783, %v823
  %825 = vdwg.mxu0
  %v826 = vand.u32 %v72, 4294901760
  %v827 = vsub.f32 %v72, %v826
  %v828 = vand.u32 %v827, 4294901760
  %v829 = vsub.f32 %v827, %v828
  %v830 = vand.u32 %v829, 4294901760
  %831 = vmatpush.msra.mxu0 %v830
  %v832 = vand.u32 %v71, 4294901760
  %v833 = vsub.f32 %v71, %v832
  %v834 = vand.u32 %v833, 4294901760
  %v835 = vsub.f32 %v833, %v834
  %v836 = vand.u32 %v835, 4294901760
  %837 = vmatpush.msra.mxu0 %v836
  %v838 = vand.u32 %v70, 4294901760
  %v839 = vsub.f32 %v70, %v838
  %v840 = vand.u32 %v839, 4294901760
  %v841 = vsub.f32 %v839, %v840
  %v842 = vand.u32 %v841, 4294901760
  %843 = vmatpush.msra.mxu0 %v842
  %v844 = vand.u32 %v69, 4294901760
  %v845 = vsub.f32 %v69, %v844
  %v846 = vand.u32 %v845, 4294901760
  %v847 = vsub.f32 %v845, %v846
  %v848 = vand.u32 %v847, 4294901760
  %849 = vmatpush.msra.mxu0 %v848
  %v850 = vand.u32 %v68, 4294901760
  %v851 = vsub.f32 %v68, %v850
  %v852 = vand.u32 %v851, 4294901760
  %v853 = vsub.f32 %v851, %v852
  %v854 = vand.u32 %v853, 4294901760
  %855 = vmatpush.msra.mxu0 %v854
  %v856 = vand.u32 %v67, 4294901760
  %v857 = vsub.f32 %v67, %v856
  %v858 = vand.u32 %v857, 4294901760
  %v859 = vsub.f32 %v857, %v858
  %v860 = vand.u32 %v859, 4294901760
  %861 = vmatpush.msra.mxu0 %v860
  %v862 = vand.u32 %v66, 4294901760
  %v863 = vsub.f32 %v66, %v862
  %v864 = vand.u32 %v863, 4294901760
  %v865 = vsub.f32 %v863, %v864
  %v866 = vand.u32 %v865, 4294901760
  %867 = vmatpush.msra.mxu0 %v866
  %v868 = vand.u32 %v65, 4294901760
  %v869 = vsub.f32 %v65, %v868
  %v870 = vand.u32 %v869, 4294901760
  %v871 = vsub.f32 %v869, %v870
  %v872 = vand.u32 %v871, 4294901760
  %873 = vmatpush.msra.mxu0 %v872
  %v874 = vand.u32 %v64, 4294901760
  %v875 = vsub.f32 %v64, %v874
  %v876 = vand.u32 %v875, 4294901760
  %v877 = vsub.f32 %v875, %v876
  %v878 = vand.u32 %v877, 4294901760
  %879 = vmatpush.msra.mxu0 %v878
  %v880 = vand.u32 %v63, 4294901760
  %v881 = vsub.f32 %v63, %v880
  %v882 = vand.u32 %v881, 4294901760
  %v883 = vsub.f32 %v881, %v882
  %v884 = vand.u32 %v883, 4294901760
  %885 = vmatpush.msra.mxu0 %v884
  %v886 = vand.u32 %v62, 4294901760
  %v887 = vsub.f32 %v62, %v886
  %v888 = vand.u32 %v887, 4294901760
  %v889 = vsub.f32 %v887, %v888
  %v890 = vand.u32 %v889, 4294901760
  %891 = vmatpush.msra.mxu0 %v890
  %v892 = vand.u32 %v61, 4294901760
  %v893 = vsub.f32 %v61, %v892
  %v894 = vand.u32 %v893, 4294901760
  %v895 = vsub.f32 %v893, %v894
  %v896 = vand.u32 %v895, 4294901760
  %897 = vmatpush.msra.mxu0 %v896
  %v898 = vand.u32 %v60, 4294901760
  %v899 = vsub.f32 %v60, %v898
  %v900 = vand.u32 %v899, 4294901760
  %v901 = vsub.f32 %v899, %v900
  %v902 = vand.u32 %v901, 4294901760
  %903 = vmatpush.msra.mxu0 %v902
  %v904 = vand.u32 %v59, 4294901760
  %v905 = vsub.f32 %v59, %v904
  %v906 = vand.u32 %v905, 4294901760
  %v907 = vsub.f32 %v905, %v906
  %v908 = vand.u32 %v907, 4294901760
  %909 = vmatpush.msra.mxu0 %v908
  %v910 = vand.u32 %v58, 4294901760
  %v911 = vsub.f32 %v58, %v910
  %v912 = vand.u32 %v911, 4294901760
  %v913 = vsub.f32 %v911, %v912
  %v914 = vand.u32 %v913, 4294901760
  %915 = vmatpush.msra.mxu0 %v914
  %v916 = vand.u32 %v57, 4294901760
  %v917 = vsub.f32 %v57, %v916
  %v918 = vand.u32 %v917, 4294901760
  %v919 = vsub.f32 %v917, %v918
  %v920 = vand.u32 %v919, 4294901760
  %921 = vmatpush.msra.mxu0 %v920
  %v922 = vand.u32 %v97, 4294901760
  %923 = vmatmul.f32.gmra.mxu0 %v922
  %v924 = vpop.f32.mrf.mxu0
  %v925 = vadd.f32 %v824, %v924
  %926 = vdwg.mxu0
  %v927 = vand.u32 %v72, 4294901760
  %v928 = vsub.f32 %v72, %v927
  %929 = vmatpush.msra.mxu0 %v928
  %v930 = vand.u32 %v71, 4294901760
  %v931 = vsub.f32 %v71, %v930
  %932 = vmatpush.msra.mxu0 %v931
  %v933 = vand.u32 %v70, 4294901760
  %v934 = vsub.f32 %v70, %v933
  %935 = vmatpush.msra.mxu0 %v934
  %v936 = vand.u32 %v69, 4294901760
  %v937 = vsub.f32 %v69, %v936
  %938 = vmatpush.msra.mxu0 %v937
  %v939 = vand.u32 %v68, 4294901760
  %v940 = vsub.f32 %v68, %v939
  %941 = vmatpush.msra.mxu0 %v940
  %v942 = vand.u32 %v67, 4294901760
  %v943 = vsub.f32 %v67, %v942
  %944 = vmatpush.msra.mxu0 %v943
  %v945 = vand.u32 %v66, 4294901760
  %v946 = vsub.f32 %v66, %v945
  %947 = vmatpush.msra.mxu0 %v946
  %v948 = vand.u32 %v65, 4294901760
  %v949 = vsub.f32 %v65, %v948
  %950 = vmatpush.msra.mxu0 %v949
  %v951 = vand.u32 %v64, 4294901760
  %v952 = vsub.f32 %v64, %v951
  %953 = vmatpush.msra.mxu0 %v952
  %v954 = vand.u32 %v63, 4294901760
  %v955 = vsub.f32 %v63, %v954
  %956 = vmatpush.msra.mxu0 %v955
  %v957 = vand.u32 %v62, 4294901760
  %v958 = vsub.f32 %v62, %v957
  %959 = vmatpush.msra.mxu0 %v958
  %v960 = vand.u32 %v61, 4294901760
  %v961 = vsub.f32 %v61, %v960
  %962 = vmatpush.msra.mxu0 %v961
  %v963 = vand.u32 %v60, 4294901760
  %v964 = vsub.f32 %v60, %v963
  %965 = vmatpush.msra.mxu0 %v964
  %v966 = vand.u32 %v59, 4294901760
  %v967 = vsub.f32 %v59, %v966
  %968 = vmatpush.msra.mxu0 %v967
  %v969 = vand.u32 %v58, 4294901760
  %v970 = vsub.f32 %v58, %v969
  %971 = vmatpush.msra.mxu0 %v970
  %v972 = vand.u32 %v57, 4294901760
  %v973 = vsub.f32 %v57, %v972
  %974 = vmatpush.msra.mxu0 %v973
  %v975 = vand.u32 %v97, 4294901760
  %v976 = vsub.f32 %v97, %v975
  %977 = vmatmul.f32.gmra.mxu0 %v976
  %v978 = vpop.f32.mrf.mxu0
  %v979 = vadd.f32 %v925, %v978
  %980 = vdwg.mxu0
  %v981 = vand.u32 %v72, 4294901760
  %982 = vmatpush.msra.mxu0 %v981
  %v983 = vand.u32 %v71, 4294901760
  %984 = vmatpush.msra.mxu0 %v983
  %v985 = vand.u32 %v70, 4294901760
  %986 = vmatpush.msra.mxu0 %v985
  %v987 = vand.u32 %v69, 4294901760
  %988 = vmatpush.msra.mxu0 %v987
  %v989 = vand.u32 %v68, 4294901760
  %990 = vmatpush.msra.mxu0 %v989
  %v991 = vand.u32 %v67, 4294901760
  %992 = vmatpush.msra.mxu0 %v991
  %v993 = vand.u32 %v66, 4294901760
  %994 = vmatpush.msra.mxu0 %v993
  %v995 = vand.u32 %v65, 4294901760
  %996 = vmatpush.msra.mxu0 %v995
  %v997 = vand.u32 %v64, 4294901760
  %998 = vmatpush.msra.mxu0 %v997
  %v999 = vand.u32 %v63, 4294901760
  %1000 = vmatpush.msra.mxu0 %v999
  %v1001 = vand.u32 %v62, 4294901760
  %1002 = vmatpush.msra.mxu0 %v1001
  %v1003 = vand.u32 %v61, 4294901760
  %1004 = vmatpush.msra.mxu0 %v1003
  %v1005 = vand.u32 %v60, 4294901760
  %1006 = vmatpush.msra.mxu0 %v1005
  %v1007 = vand.u32 %v59, 4294901760
  %1008 = vmatpush.msra.mxu0 %v1007
  %v1009 = vand.u32 %v58, 4294901760
  %1010 = vmatpush.msra.mxu0 %v1009
  %v1011 = vand.u32 %v57, 4294901760
  %1012 = vmatpush.msra.mxu0 %v1011
  %v1013 = vand.u32 %v97, 4294901760
  %v1014 = vsub.f32 %v97, %v1013
  %v1015 = vand.u32 %v1014, 4294901760
  %1016 = vmatmul.f32.gmra.mxu0 %v1015
  %v1017 = vpop.f32.mrf.mxu0
  %v1018 = vadd.f32 %v979, %v1017
  %1019 = vdwg.mxu0
  %v1020 = vand.u32 %v72, 4294901760
  %v1021 = vsub.f32 %v72, %v1020
  %v1022 = vand.u32 %v1021, 4294901760
  %1023 = vmatpush.msra.mxu0 %v1022
  %v1024 = vand.u32 %v71, 4294901760
  %v1025 = vsub.f32 %v71, %v1024
  %v1026 = vand.u32 %v1025, 4294901760
  %1027 = vmatpush.msra.mxu0 %v1026
  %v1028 = vand.u32 %v70, 4294901760
  %v1029 = vsub.f32 %v70, %v1028
  %v1030 = vand.u32 %v1029, 4294901760
  %1031 = vmatpush.msra.mxu0 %v1030
  %v1032 = vand.u32 %v69, 4294901760
  %v1033 = vsub.f32 %v69, %v1032
  %v1034 = vand.u32 %v1033, 4294901760
  %1035 = vmatpush.msra.mxu0 %v1034
  %v1036 = vand.u32 %v68, 4294901760
  %v1037 = vsub.f32 %v68, %v1036
  %v1038 = vand.u32 %v1037, 4294901760
  %1039 = vmatpush.msra.mxu0 %v1038
  %v1040 = vand.u32 %v67, 4294901760
  %v1041 = vsub.f32 %v67, %v1040
  %v1042 = vand.u32 %v1041, 4294901760
  %1043 = vmatpush.msra.mxu0 %v1042
  %v1044 = vand.u32 %v66, 4294901760
  %v1045 = vsub.f32 %v66, %v1044
  %v1046 = vand.u32 %v1045, 4294901760
  %1047 = vmatpush.msra.mxu0 %v1046
  %v1048 = vand.u32 %v65, 4294901760
  %v1049 = vsub.f32 %v65, %v1048
  %v1050 = vand.u32 %v1049, 4294901760
  %1051 = vmatpush.msra.mxu0 %v1050
  %v1052 = vand.u32 %v64, 4294901760
  %v1053 = vsub.f32 %v64, %v1052
  %v1054 = vand.u32 %v1053, 4294901760
  %1055 = vmatpush.msra.mxu0 %v1054
  %v1056 = vand.u32 %v63, 4294901760
  %v1057 = vsub.f32 %v63, %v1056
  %v1058 = vand.u32 %v1057, 4294901760
  %1059 = vmatpush.msra.mxu0 %v1058
  %v1060 = vand.u32 %v62, 4294901760
  %v1061 = vsub.f32 %v62, %v1060
  %v1062 = vand.u32 %v1061, 4294901760
  %1063 = vmatpush.msra.mxu0 %v1062
  %v1064 = vand.u32 %v61, 4294901760
  %v1065 = vsub.f32 %v61, %v1064
  %v1066 = vand.u32 %v1065, 4294901760
  %1067 = vmatpush.msra.mxu0 %v1066
  %v1068 = vand.u32 %v60, 4294901760
  %v1069 = vsub.f32 %v60, %v1068
  %v1070 = vand.u32 %v1069, 4294901760
  %1071 = vmatpush.msra.mxu0 %v1070
  %v1072 = vand.u32 %v59, 4294901760
  %v1073 = vsub.f32 %v59, %v1072
  %v1074 = vand.u32 %v1073, 4294901760
  %1075 = vmatpush.msra.mxu0 %v1074
  %v1076 = vand.u32 %v58, 4294901760
  %v1077 = vsub.f32 %v58, %v1076
  %v1078 = vand.u32 %v1077, 4294901760
  %1079 = vmatpush.msra.mxu0 %v1078
  %v1080 = vand.u32 %v57, 4294901760
  %v1081 = vsub.f32 %v57, %v1080
  %v1082 = vand.u32 %v1081, 4294901760
  %1083 = vmatpush.msra.mxu0 %v1082
  %v1084 = vand.u32 %v97, 4294901760
  %1085 = vmatmul.f32.gmra.mxu0 %v1084
  %v1086 = vpop.f32.mrf.mxu0
  %v1087 = vadd.f32 %v1018, %v1086
  %1088 = vdwg.mxu0
  %v1089 = vand.u32 %v72, 4294901760
  %1090 = vmatpush.msra.mxu0 %v1089
  %v1091 = vand.u32 %v71, 4294901760
  %1092 = vmatpush.msra.mxu0 %v1091
  %v1093 = vand.u32 %v70, 4294901760
  %1094 = vmatpush.msra.mxu0 %v1093
  %v1095 = vand.u32 %v69, 4294901760
  %1096 = vmatpush.msra.mxu0 %v1095
  %v1097 = vand.u32 %v68, 4294901760
  %1098 = vmatpush.msra.mxu0 %v1097
  %v1099 = vand.u32 %v67, 4294901760
  %1100 = vmatpush.msra.mxu0 %v1099
  %v1101 = vand.u32 %v66, 4294901760
  %1102 = vmatpush.msra.mxu0 %v1101
  %v1103 = vand.u32 %v65, 4294901760
  %1104 = vmatpush.msra.mxu0 %v1103
  %v1105 = vand.u32 %v64, 4294901760
  %1106 = vmatpush.msra.mxu0 %v1105
  %v1107 = vand.u32 %v63, 4294901760
  %1108 = vmatpush.msra.mxu0 %v1107
  %v1109 = vand.u32 %v62, 4294901760
  %1110 = vmatpush.msra.mxu0 %v1109
  %v1111 = vand.u32 %v61, 4294901760
  %1112 = vmatpush.msra.mxu0 %v1111
  %v1113 = vand.u32 %v60, 4294901760
  %1114 = vmatpush.msra.mxu0 %v1113
  %v1115 = vand.u32 %v59, 4294901760
  %1116 = vmatpush.msra.mxu0 %v1115
  %v1117 = vand.u32 %v58, 4294901760
  %1118 = vmatpush.msra.mxu0 %v1117
  %v1119 = vand.u32 %v57, 4294901760
  %1120 = vmatpush.msra.mxu0 %v1119
  %v1121 = vand.u32 %v97, 4294901760
  %1122 = vmatmul.f32.gmra.mxu0 %v1121
  %v1123 = vpop.f32.mrf.mxu0
  %v1124 = vadd.f32 %v1087, %v1123
  %1125 = vdwg.mxu0
  %v1126 = vand.u32 %v88, 4294901760
  %1127 = vmatpush.msra.mxu0 %v1126
  %v1128 = vand.u32 %v87, 4294901760
  %1129 = vmatpush.msra.mxu0 %v1128
  %v1130 = vand.u32 %v86, 4294901760
  %1131 = vmatpush.msra.mxu0 %v1130
  %v1132 = vand.u32 %v85, 4294901760
  %1133 = vmatpush.msra.mxu0 %v1132
  %v1134 = vand.u32 %v84, 4294901760
  %1135 = vmatpush.msra.mxu0 %v1134
  %v1136 = vand.u32 %v83, 4294901760
  %1137 = vmatpush.msra.mxu0 %v1136
  %v1138 = vand.u32 %v82, 4294901760
  %1139 = vmatpush.msra.mxu0 %v1138
  %v1140 = vand.u32 %v81, 4294901760
  %1141 = vmatpush.msra.mxu0 %v1140
  %v1142 = vand.u32 %v80, 4294901760
  %1143 = vmatpush.msra.mxu0 %v1142
  %v1144 = vand.u32 %v79, 4294901760
  %1145 = vmatpush.msra.mxu0 %v1144
  %v1146 = vand.u32 %v78, 4294901760
  %1147 = vmatpush.msra.mxu0 %v1146
  %v1148 = vand.u32 %v77, 4294901760
  %1149 = vmatpush.msra.mxu0 %v1148
  %v1150 = vand.u32 %v76, 4294901760
  %1151 = vmatpush.msra.mxu0 %v1150
  %v1152 = vand.u32 %v75, 4294901760
  %1153 = vmatpush.msra.mxu0 %v1152
  %v1154 = vand.u32 %v74, 4294901760
  %1155 = vmatpush.msra.mxu0 %v1154
  %v1156 = vand.u32 %v73, 4294901760
  %1157 = vmatpush.msra.mxu0 %v1156
  %v1158 = vand.u32 %v98, 4294901760
  %v1159 = vsub.f32 %v98, %v1158
  %v1160 = vand.u32 %v1159, 4294901760
  %v1161 = vsub.f32 %v1159, %v1160
  %v1162 = vand.u32 %v1161, 4294901760
  %1163 = vmatmul.f32.gmra.mxu0 %v1162
  %v1164 = vpop.f32.mrf.mxu0
  %v1165 = vadd.f32 %v1124, %v1164
  %1166 = vdwg.mxu0
  %v1167 = vand.u32 %v88, 4294901760
  %v1168 = vsub.f32 %v88, %v1167
  %v1169 = vand.u32 %v1168, 4294901760
  %v1170 = vsub.f32 %v1168, %v1169
  %v1171 = vand.u32 %v1170, 4294901760
  %1172 = vmatpush.msra.mxu0 %v1171
  %v1173 = vand.u32 %v87, 4294901760
  %v1174 = vsub.f32 %v87, %v1173
  %v1175 = vand.u32 %v1174, 4294901760
  %v1176 = vsub.f32 %v1174, %v1175
  %v1177 = vand.u32 %v1176, 4294901760
  %1178 = vmatpush.msra.mxu0 %v1177
  %v1179 = vand.u32 %v86, 4294901760
  %v1180 = vsub.f32 %v86, %v1179
  %v1181 = vand.u32 %v1180, 4294901760
  %v1182 = vsub.f32 %v1180, %v1181
  %v1183 = vand.u32 %v1182, 4294901760
  %1184 = vmatpush.msra.mxu0 %v1183
  %v1185 = vand.u32 %v85, 4294901760
  %v1186 = vsub.f32 %v85, %v1185
  %v1187 = vand.u32 %v1186, 4294901760
  %v1188 = vsub.f32 %v1186, %v1187
  %v1189 = vand.u32 %v1188, 4294901760
  %1190 = vmatpush.msra.mxu0 %v1189
  %v1191 = vand.u32 %v84, 4294901760
  %v1192 = vsub.f32 %v84, %v1191
  %v1193 = vand.u32 %v1192, 4294901760
  %v1194 = vsub.f32 %v1192, %v1193
  %v1195 = vand.u32 %v1194, 4294901760
  %1196 = vmatpush.msra.mxu0 %v1195
  %v1197 = vand.u32 %v83, 4294901760
  %v1198 = vsub.f32 %v83, %v1197
  %v1199 = vand.u32 %v1198, 4294901760
  %v1200 = vsub.f32 %v1198, %v1199
  %v1201 = vand.u32 %v1200, 4294901760
  %1202 = vmatpush.msra.mxu0 %v1201
  %v1203 = vand.u32 %v82, 4294901760
  %v1204 = vsub.f32 %v82, %v1203
  %v1205 = vand.u32 %v1204, 4294901760
  %v1206 = vsub.f32 %v1204, %v1205
  %v1207 = vand.u32 %v1206, 4294901760
  %1208 = vmatpush.msra.mxu0 %v1207
  %v1209 = vand.u32 %v81, 4294901760
  %v1210 = vsub.f32 %v81, %v1209
  %v1211 = vand.u32 %v1210, 4294901760
  %v1212 = vsub.f32 %v1210, %v1211
  %v1213 = vand.u32 %v1212, 4294901760
  %1214 = vmatpush.msra.mxu0 %v1213
  %v1215 = vand.u32 %v80, 4294901760
  %v1216 = vsub.f32 %v80, %v1215
  %v1217 = vand.u32 %v1216, 4294901760
  %v1218 = vsub.f32 %v1216, %v1217
  %v1219 = vand.u32 %v1218, 4294901760
  %1220 = vmatpush.msra.mxu0 %v1219
  %v1221 = vand.u32 %v79, 4294901760
  %v1222 = vsub.f32 %v79, %v1221
  %v1223 = vand.u32 %v1222, 4294901760
  %v1224 = vsub.f32 %v1222, %v1223
  %v1225 = vand.u32 %v1224, 4294901760
  %1226 = vmatpush.msra.mxu0 %v1225
  %v1227 = vand.u32 %v78, 4294901760
  %v1228 = vsub.f32 %v78, %v1227
  %v1229 = vand.u32 %v1228, 4294901760
  %v1230 = vsub.f32 %v1228, %v1229
  %v1231 = vand.u32 %v1230, 4294901760
  %1232 = vmatpush.msra.mxu0 %v1231
  %v1233 = vand.u32 %v77, 4294901760
  %v1234 = vsub.f32 %v77, %v1233
  %v1235 = vand.u32 %v1234, 4294901760
  %v1236 = vsub.f32 %v1234, %v1235
  %v1237 = vand.u32 %v1236, 4294901760
  %1238 = vmatpush.msra.mxu0 %v1237
  %v1239 = vand.u32 %v76, 4294901760
  %v1240 = vsub.f32 %v76, %v1239
  %v1241 = vand.u32 %v1240, 4294901760
  %v1242 = vsub.f32 %v1240, %v1241
  %v1243 = vand.u32 %v1242, 4294901760
  %1244 = vmatpush.msra.mxu0 %v1243
  %v1245 = vand.u32 %v75, 4294901760
  %v1246 = vsub.f32 %v75, %v1245
  %v1247 = vand.u32 %v1246, 4294901760
  %v1248 = vsub.f32 %v1246, %v1247
  %v1249 = vand.u32 %v1248, 4294901760
  %1250 = vmatpush.msra.mxu0 %v1249
  %v1251 = vand.u32 %v74, 4294901760
  %v1252 = vsub.f32 %v74, %v1251
  %v1253 = vand.u32 %v1252, 4294901760
  %v1254 = vsub.f32 %v1252, %v1253
  %v1255 = vand.u32 %v1254, 4294901760
  %1256 = vmatpush.msra.mxu0 %v1255
  %v1257 = vand.u32 %v73, 4294901760
  %v1258 = vsub.f32 %v73, %v1257
  %v1259 = vand.u32 %v1258, 4294901760
  %v1260 = vsub.f32 %v1258, %v1259
  %v1261 = vand.u32 %v1260, 4294901760
  %1262 = vmatpush.msra.mxu0 %v1261
  %v1263 = vand.u32 %v98, 4294901760
  %1264 = vmatmul.f32.gmra.mxu0 %v1263
  %v1265 = vpop.f32.mrf.mxu0
  %v1266 = vadd.f32 %v1165, %v1265
  %1267 = vdwg.mxu0
  %v1268 = vand.u32 %v88, 4294901760
  %v1269 = vsub.f32 %v88, %v1268
  %1270 = vmatpush.msra.mxu0 %v1269
  %v1271 = vand.u32 %v87, 4294901760
  %v1272 = vsub.f32 %v87, %v1271
  %1273 = vmatpush.msra.mxu0 %v1272
  %v1274 = vand.u32 %v86, 4294901760
  %v1275 = vsub.f32 %v86, %v1274
  %1276 = vmatpush.msra.mxu0 %v1275
  %v1277 = vand.u32 %v85, 4294901760
  %v1278 = vsub.f32 %v85, %v1277
  %1279 = vmatpush.msra.mxu0 %v1278
  %v1280 = vand.u32 %v84, 4294901760
  %v1281 = vsub.f32 %v84, %v1280
  %1282 = vmatpush.msra.mxu0 %v1281
  %v1283 = vand.u32 %v83, 4294901760
  %v1284 = vsub.f32 %v83, %v1283
  %1285 = vmatpush.msra.mxu0 %v1284
  %v1286 = vand.u32 %v82, 4294901760
  %v1287 = vsub.f32 %v82, %v1286
  %1288 = vmatpush.msra.mxu0 %v1287
  %v1289 = vand.u32 %v81, 4294901760
  %v1290 = vsub.f32 %v81, %v1289
  %1291 = vmatpush.msra.mxu0 %v1290
  %v1292 = vand.u32 %v80, 4294901760
  %v1293 = vsub.f32 %v80, %v1292
  %1294 = vmatpush.msra.mxu0 %v1293
  %v1295 = vand.u32 %v79, 4294901760
  %v1296 = vsub.f32 %v79, %v1295
  %1297 = vmatpush.msra.mxu0 %v1296
  %v1298 = vand.u32 %v78, 4294901760
  %v1299 = vsub.f32 %v78, %v1298
  %1300 = vmatpush.msra.mxu0 %v1299
  %v1301 = vand.u32 %v77, 4294901760
  %v1302 = vsub.f32 %v77, %v1301
  %1303 = vmatpush.msra.mxu0 %v1302
  %v1304 = vand.u32 %v76, 4294901760
  %v1305 = vsub.f32 %v76, %v1304
  %1306 = vmatpush.msra.mxu0 %v1305
  %v1307 = vand.u32 %v75, 4294901760
  %v1308 = vsub.f32 %v75, %v1307
  %1309 = vmatpush.msra.mxu0 %v1308
  %v1310 = vand.u32 %v74, 4294901760
  %v1311 = vsub.f32 %v74, %v1310
  %1312 = vmatpush.msra.mxu0 %v1311
  %v1313 = vand.u32 %v73, 4294901760
  %v1314 = vsub.f32 %v73, %v1313
  %1315 = vmatpush.msra.mxu0 %v1314
  %v1316 = vand.u32 %v98, 4294901760
  %v1317 = vsub.f32 %v98, %v1316
  %1318 = vmatmul.f32.gmra.mxu0 %v1317
  %v1319 = vpop.f32.mrf.mxu0
  %v1320 = vadd.f32 %v1266, %v1319
  %1321 = vdwg.mxu0
  %v1322 = vand.u32 %v88, 4294901760
  %1323 = vmatpush.msra.mxu0 %v1322
  %v1324 = vand.u32 %v87, 4294901760
  %1325 = vmatpush.msra.mxu0 %v1324
  %v1326 = vand.u32 %v86, 4294901760
  %1327 = vmatpush.msra.mxu0 %v1326
  %v1328 = vand.u32 %v85, 4294901760
  %1329 = vmatpush.msra.mxu0 %v1328
  %v1330 = vand.u32 %v84, 4294901760
  %1331 = vmatpush.msra.mxu0 %v1330
  %v1332 = vand.u32 %v83, 4294901760
  %1333 = vmatpush.msra.mxu0 %v1332
  %v1334 = vand.u32 %v82, 4294901760
  %1335 = vmatpush.msra.mxu0 %v1334
  %v1336 = vand.u32 %v81, 4294901760
  %1337 = vmatpush.msra.mxu0 %v1336
  %v1338 = vand.u32 %v80, 4294901760
  %1339 = vmatpush.msra.mxu0 %v1338
  %v1340 = vand.u32 %v79, 4294901760
  %1341 = vmatpush.msra.mxu0 %v1340
  %v1342 = vand.u32 %v78, 4294901760
  %1343 = vmatpush.msra.mxu0 %v1342
  %v1344 = vand.u32 %v77, 4294901760
  %1345 = vmatpush.msra.mxu0 %v1344
  %v1346 = vand.u32 %v76, 4294901760
  %1347 = vmatpush.msra.mxu0 %v1346
  %v1348 = vand.u32 %v75, 4294901760
  %1349 = vmatpush.msra.mxu0 %v1348
  %v1350 = vand.u32 %v74, 4294901760
  %1351 = vmatpush.msra.mxu0 %v1350
  %v1352 = vand.u32 %v73, 4294901760
  %1353 = vmatpush.msra.mxu0 %v1352
  %v1354 = vand.u32 %v98, 4294901760
  %v1355 = vsub.f32 %v98, %v1354
  %v1356 = vand.u32 %v1355, 4294901760
  %1357 = vmatmul.f32.gmra.mxu0 %v1356
  %v1358 = vpop.f32.mrf.mxu0
  %v1359 = vadd.f32 %v1320, %v1358
  %1360 = vdwg.mxu0
  %v1361 = vand.u32 %v88, 4294901760
  %v1362 = vsub.f32 %v88, %v1361
  %v1363 = vand.u32 %v1362, 4294901760
  %1364 = vmatpush.msra.mxu0 %v1363
  %v1365 = vand.u32 %v87, 4294901760
  %v1366 = vsub.f32 %v87, %v1365
  %v1367 = vand.u32 %v1366, 4294901760
  %1368 = vmatpush.msra.mxu0 %v1367
  %v1369 = vand.u32 %v86, 4294901760
  %v1370 = vsub.f32 %v86, %v1369
  %v1371 = vand.u32 %v1370, 4294901760
  %1372 = vmatpush.msra.mxu0 %v1371
  %v1373 = vand.u32 %v85, 4294901760
  %v1374 = vsub.f32 %v85, %v1373
  %v1375 = vand.u32 %v1374, 4294901760
  %1376 = vmatpush.msra.mxu0 %v1375
  %v1377 = vand.u32 %v84, 4294901760
  %v1378 = vsub.f32 %v84, %v1377
  %v1379 = vand.u32 %v1378, 4294901760
  %1380 = vmatpush.msra.mxu0 %v1379
  %v1381 = vand.u32 %v83, 4294901760
  %v1382 = vsub.f32 %v83, %v1381
  %v1383 = vand.u32 %v1382, 4294901760
  %1384 = vmatpush.msra.mxu0 %v1383
  %v1385 = vand.u32 %v82, 4294901760
  %v1386 = vsub.f32 %v82, %v1385
  %v1387 = vand.u32 %v1386, 4294901760
  %1388 = vmatpush.msra.mxu0 %v1387
  %v1389 = vand.u32 %v81, 4294901760
  %v1390 = vsub.f32 %v81, %v1389
  %v1391 = vand.u32 %v1390, 4294901760
  %1392 = vmatpush.msra.mxu0 %v1391
  %v1393 = vand.u32 %v80, 4294901760
  %v1394 = vsub.f32 %v80, %v1393
  %v1395 = vand.u32 %v1394, 4294901760
  %1396 = vmatpush.msra.mxu0 %v1395
  %v1397 = vand.u32 %v79, 4294901760
  %v1398 = vsub.f32 %v79, %v1397
  %v1399 = vand.u32 %v1398, 4294901760
  %1400 = vmatpush.msra.mxu0 %v1399
  %v1401 = vand.u32 %v78, 4294901760
  %v1402 = vsub.f32 %v78, %v1401
  %v1403 = vand.u32 %v1402, 4294901760
  %1404 = vmatpush.msra.mxu0 %v1403
  %v1405 = vand.u32 %v77, 4294901760
  %v1406 = vsub.f32 %v77, %v1405
  %v1407 = vand.u32 %v1406, 4294901760
  %1408 = vmatpush.msra.mxu0 %v1407
  %v1409 = vand.u32 %v76, 4294901760
  %v1410 = vsub.f32 %v76, %v1409
  %v1411 = vand.u32 %v1410, 4294901760
  %1412 = vmatpush.msra.mxu0 %v1411
  %v1413 = vand.u32 %v75, 4294901760
  %v1414 = vsub.f32 %v75, %v1413
  %v1415 = vand.u32 %v1414, 4294901760
  %1416 = vmatpush.msra.mxu0 %v1415
  %v1417 = vand.u32 %v74, 4294901760
  %v1418 = vsub.f32 %v74, %v1417
  %v1419 = vand.u32 %v1418, 4294901760
  %1420 = vmatpush.msra.mxu0 %v1419
  %v1421 = vand.u32 %v73, 4294901760
  %v1422 = vsub.f32 %v73, %v1421
  %v1423 = vand.u32 %v1422, 4294901760
  %1424 = vmatpush.msra.mxu0 %v1423
  %v1425 = vand.u32 %v98, 4294901760
  %1426 = vmatmul.f32.gmra.mxu0 %v1425
  %v1427 = vpop.f32.mrf.mxu0
  %v1428 = vadd.f32 %v1359, %v1427
  %1429 = vdwg.mxu0
  %v1430 = vand.u32 %v88, 4294901760
  %1431 = vmatpush.msra.mxu0 %v1430
  %v1432 = vand.u32 %v87, 4294901760
  %1433 = vmatpush.msra.mxu0 %v1432
  %v1434 = vand.u32 %v86, 4294901760
  %1435 = vmatpush.msra.mxu0 %v1434
  %v1436 = vand.u32 %v85, 4294901760
  %1437 = vmatpush.msra.mxu0 %v1436
  %v1438 = vand.u32 %v84, 4294901760
  %1439 = vmatpush.msra.mxu0 %v1438
  %v1440 = vand.u32 %v83, 4294901760
  %1441 = vmatpush.msra.mxu0 %v1440
  %v1442 = vand.u32 %v82, 4294901760
  %1443 = vmatpush.msra.mxu0 %v1442
  %v1444 = vand.u32 %v81, 4294901760
  %1445 = vmatpush.msra.mxu0 %v1444
  %v1446 = vand.u32 %v80, 4294901760
  %1447 = vmatpush.msra.mxu0 %v1446
  %v1448 = vand.u32 %v79, 4294901760
  %1449 = vmatpush.msra.mxu0 %v1448
  %v1450 = vand.u32 %v78, 4294901760
  %1451 = vmatpush.msra.mxu0 %v1450
  %v1452 = vand.u32 %v77, 4294901760
  %1453 = vmatpush.msra.mxu0 %v1452
  %v1454 = vand.u32 %v76, 4294901760
  %1455 = vmatpush.msra.mxu0 %v1454
  %v1456 = vand.u32 %v75, 4294901760
  %1457 = vmatpush.msra.mxu0 %v1456
  %v1458 = vand.u32 %v74, 4294901760
  %1459 = vmatpush.msra.mxu0 %v1458
  %v1460 = vand.u32 %v73, 4294901760
  %1461 = vmatpush.msra.mxu0 %v1460
  %v1462 = vand.u32 %v98, 4294901760
  %1463 = vmatmul.f32.gmra.mxu0 %v1462
  %v1464 = vpop.f32.mrf.mxu0
  %v1465 = vadd.f32 %v1428, %v1464
  %1466 = vdwg.mxu0
  %v1467 = vmul.f32 %v1465, 0.5
  %v1468 = vmul.f32 %v1465, 0.70710677
  %v1469 = vmul.f32 %v1468, %v1468
  %v1470 = vmin.f32 16.0, %v1469
  %v1471 = vmul.f32 %v1470, 2.1237322e-06
  %v1472 = vadd.f32 %v1471, 0.00028619796
  %v1473 = vmul.f32 %v1470, %v1472
  %v1474 = vadd.f32 %v1473, 0.0036580483
  %v1475 = vmul.f32 %v1470, %v1474
  %v1476 = vadd.f32 %v1475, 0.05243302
  %v1477 = vmul.f32 %v1470, %v1476
  %v1478 = vadd.f32 %v1477, 0.18741608
  %v1479 = vmul.f32 %v1470, %v1478
  %v1480 = vadd.f32 %v1479, 1.1283791
  %v1481 = vmul.f32 %v1468, %v1480
  %v1482 = vmul.f32 %v1470, 3.8918573e-05
  %v1483 = vadd.f32 %v1482, 0.001143296
  %v1484 = vmul.f32 %v1470, %v1483
  %v1485 = vadd.f32 %v1484, 0.014752088
  %v1486 = vmul.f32 %v1470, %v1485
  %v1487 = vadd.f32 %v1486, 0.112945676
  %v1488 = vmul.f32 %v1470, %v1487
  %v1489 = vadd.f32 %v1488, 0.4994258
  %v1490 = vmul.f32 %v1470, %v1489
  %v1491 = vadd.f32 %v1490, 1.0
  %v1492 = vrcp.pop %v1491
  %v1493 = vmul.f32 %v1491, %v1492
  %v1494 = vsub.f32 1.0, %v1493
  %v1495 = vmul.f32 %v1492, %v1494
  %v1496 = vadd.f32 %v1492, %v1495
  %vm1497 = vweird.f32 %v1491
  %vm1498 = vweird.f32 %v1492
  %vm1499 = vmor %vm1497, %vm1498
  %v1500 = vsel %vm1499, %v1492, %v1496
  %v1501 = vand.u32 2147483647, %v1491
  %vm1502 = vcmp.eq.f32.partialorder %v1501, 8.507059e+37
  %v1503 = vand.u32 %v1491, 2147483648
  %v1504 = vor.u32 1.1754944e-38, %v1503
  %v1505 = vsel %vm1502, %v1504, %v1500
  %v1506 = vmul.f32 %v1481, %v1505
  %v1507 = vmin.f32 %v1506, 1.0
  %v1508 = vmax.f32 %v1507, -1.0
  %v1509 = vadd.f32 %v1508, 1.0
  %v1510 = vmul.f32 %v1467, %v1509
  %v1511 = vld [vmem:[%s4] sm:$0xff]
  %v1512 = vld [vmem:[%s4 + $0x8] sm:$0xff]
  %v1513 = vld [vmem:[%s4 + $0x10] sm:$0xff]
  %v1514 = vld [vmem:[%s4 + $0x18] sm:$0xff]
  %v1515 = vld [vmem:[%s4 + $0x20] sm:$0xff]
  %v1516 = vld [vmem:[%s4 + $0x28] sm:$0xff]
  %v1517 = vld [vmem:[%s4 + $0x30] sm:$0xff]
  %v1518 = vld [vmem:[%s4 + $0x38] sm:$0xff]
  %v1519 = vld [vmem:[%s4 + $0x40] sm:$0xff]
  %v1520 = vld [vmem:[%s4 + $0x48] sm:$0xff]
  %v1521 = vld [vmem:[%s4 + $0x50] sm:$0xff]
  %v1522 = vld [vmem:[%s4 + $0x58] sm:$0xff]
  %v1523 = vld [vmem:[%s4 + $0x60] sm:$0xff]
  %v1524 = vld [vmem:[%s4 + $0x68] sm:$0xff]
  %v1525 = vld [vmem:[%s4 + $0x70] sm:$0xff]
  %v1526 = vld [vmem:[%s4 + $0x78] sm:$0xff]
  %v1527 = vld [vmem:[%s4 + $0x80] sm:$0xff]
  %v1528 = vld [vmem:[%s4 + $0x88] sm:$0xff]
  %v1529 = vld [vmem:[%s4 + $0x90] sm:$0xff]
  %v1530 = vld [vmem:[%s4 + $0x98] sm:$0xff]
  %v1531 = vld [vmem:[%s4 + $0xa0] sm:$0xff]
  %v1532 = vld [vmem:[%s4 + $0xa8] sm:$0xff]
  %v1533 = vld [vmem:[%s4 + $0xb0] sm:$0xff]
  %v1534 = vld [vmem:[%s4 + $0xb8] sm:$0xff]
  %v1535 = vld [vmem:[%s4 + $0xc0] sm:$0xff]
  %v1536 = vld [vmem:[%s4 + $0xc8] sm:$0xff]
  %v1537 = vld [vmem:[%s4 + $0xd0] sm:$0xff]
  %v1538 = vld [vmem:[%s4 + $0xd8] sm:$0xff]
  %v1539 = vld [vmem:[%s4 + $0xe0] sm:$0xff]
  %v1540 = vld [vmem:[%s4 + $0xe8] sm:$0xff]
  %v1541 = vld [vmem:[%s4 + $0xf0] sm:$0xff]
  %v1542 = vld [vmem:[%s4 + $0xf8] sm:$0xff]
  %v1543 = vld [vmem:[%s4 + $0x100] sm:$0xff]
  %v1544 = vld [vmem:[%s4 + $0x108] sm:$0xff]
  %v1545 = vld [vmem:[%s4 + $0x110] sm:$0xff]
  %v1546 = vld [vmem:[%s4 + $0x118] sm:$0xff]
  %v1547 = vld [vmem:[%s4 + $0x120] sm:$0xff]
  %v1548 = vld [vmem:[%s4 + $0x128] sm:$0xff]
  %v1549 = vld [vmem:[%s4 + $0x130] sm:$0xff]
  %v1550 = vld [vmem:[%s4 + $0x138] sm:$0xff]
  %v1551 = vld [vmem:[%s4 + $0x140] sm:$0xff]
  %v1552 = vld [vmem:[%s4 + $0x148] sm:$0xff]
  %v1553 = vld [vmem:[%s4 + $0x150] sm:$0xff]
  %v1554 = vld [vmem:[%s4 + $0x158] sm:$0xff]
  %v1555 = vld [vmem:[%s4 + $0x160] sm:$0xff]
  %v1556 = vld [vmem:[%s4 + $0x168] sm:$0xff]
  %v1557 = vld [vmem:[%s4 + $0x170] sm:$0xff]
  %v1558 = vld [vmem:[%s4 + $0x178] sm:$0xff]
  %v1559 = vld [vmem:[%s4 + $0x180] sm:$0xff]
  %v1560 = vld [vmem:[%s4 + $0x188] sm:$0xff]
  %v1561 = vld [vmem:[%s4 + $0x190] sm:$0xff]
  %v1562 = vld [vmem:[%s4 + $0x198] sm:$0xff]
  %v1563 = vld [vmem:[%s4 + $0x1a0] sm:$0xff]
  %v1564 = vld [vmem:[%s4 + $0x1a8] sm:$0xff]
  %v1565 = vld [vmem:[%s4 + $0x1b0] sm:$0xff]
  %v1566 = vld [vmem:[%s4 + $0x1b8] sm:$0xff]
  %v1567 = vld [vmem:[%s4 + $0x1c0] sm:$0xff]
  %v1568 = vld [vmem:[%s4 + $0x1c8] sm:$0xff]
  %v1569 = vld [vmem:[%s4 + $0x1d0] sm:$0xff]
  %v1570 = vld [vmem:[%s4 + $0x1d8] sm:$0xff]
  %v1571 = vld [vmem:[%s4 + $0x1e0] sm:$0xff]
  %v1572 = vld [vmem:[%s4 + $0x1e8] sm:$0xff]
  %v1573 = vld [vmem:[%s4 + $0x1f0] sm:$0xff]
  %v1574 = vld [vmem:[%s4 + $0x1f8] sm:$0xff]
  %v1575 = vld [vmem:[%s5] sm:$0xf]
  %v1577 = vperm.slane %v1575, 0
  %v1578 = vperm.slane %v1575, 1
  %v1579 = vperm.slane %v1575, 2
  %v1580 = vperm.slane %v1575, 3
  %v1585 = vand.u32 %v1571, 4294901760
  %1586 = vmatpush.msra.mxu0 %v1585
  %v1587 = vand.u32 %v1567, 4294901760
  %1588 = vmatpush.msra.mxu0 %v1587
  %v1589 = vand.u32 %v1563, 4294901760
  %1590 = vmatpush.msra.mxu0 %v1589
  %v1591 = vand.u32 %v1559, 4294901760
  %1592 = vmatpush.msra.mxu0 %v1591
  %v1593 = vand.u32 %v1555, 4294901760
  %1594 = vmatpush.msra.mxu0 %v1593
  %v1595 = vand.u32 %v1551, 4294901760
  %1596 = vmatpush.msra.mxu0 %v1595
  %v1597 = vand.u32 %v1547, 4294901760
  %1598 = vmatpush.msra.mxu0 %v1597
  %v1599 = vand.u32 %v1543, 4294901760
  %1600 = vmatpush.msra.mxu0 %v1599
  %v1601 = vand.u32 %v1539, 4294901760
  %1602 = vmatpush.msra.mxu0 %v1601
  %v1603 = vand.u32 %v1535, 4294901760
  %1604 = vmatpush.msra.mxu0 %v1603
  %v1605 = vand.u32 %v1531, 4294901760
  %1606 = vmatpush.msra.mxu0 %v1605
  %v1607 = vand.u32 %v1527, 4294901760
  %1608 = vmatpush.msra.mxu0 %v1607
  %v1609 = vand.u32 %v1523, 4294901760
  %1610 = vmatpush.msra.mxu0 %v1609
  %v1611 = vand.u32 %v1519, 4294901760
  %1612 = vmatpush.msra.mxu0 %v1611
  %v1613 = vand.u32 %v1515, 4294901760
  %1614 = vmatpush.msra.mxu0 %v1613
  %v1615 = vand.u32 %v1511, 4294901760
  %1616 = vmatpush.msra.mxu0 %v1615
  %v1617 = vand.u32 %v1510, 4294901760
  %v1618 = vsub.f32 %v1510, %v1617
  %v1619 = vand.u32 %v1618, 4294901760
  %v1620 = vsub.f32 %v1618, %v1619
  %v1621 = vand.u32 %v1620, 4294901760
  %1622 = vmatmul.f32.gmra.mxu0 %v1621
  %v1623 = vpop.f32.mrf.mxu0
  %v1624 = vadd.f32 %v1577, %v1623
  %1625 = vdwg.mxu0
  %v1626 = vand.u32 %v1571, 4294901760
  %v1627 = vsub.f32 %v1571, %v1626
  %v1628 = vand.u32 %v1627, 4294901760
  %v1629 = vsub.f32 %v1627, %v1628
  %v1630 = vand.u32 %v1629, 4294901760
  %1631 = vmatpush.msra.mxu0 %v1630
  %v1632 = vand.u32 %v1567, 4294901760
  %v1633 = vsub.f32 %v1567, %v1632
  %v1634 = vand.u32 %v1633, 4294901760
  %v1635 = vsub.f32 %v1633, %v1634
  %v1636 = vand.u32 %v1635, 4294901760
  %1637 = vmatpush.msra.mxu0 %v1636
  %v1638 = vand.u32 %v1563, 4294901760
  %v1639 = vsub.f32 %v1563, %v1638
  %v1640 = vand.u32 %v1639, 4294901760
  %v1641 = vsub.f32 %v1639, %v1640
  %v1642 = vand.u32 %v1641, 4294901760
  %1643 = vmatpush.msra.mxu0 %v1642
  %v1644 = vand.u32 %v1559, 4294901760
  %v1645 = vsub.f32 %v1559, %v1644
  %v1646 = vand.u32 %v1645, 4294901760
  %v1647 = vsub.f32 %v1645, %v1646
  %v1648 = vand.u32 %v1647, 4294901760
  %1649 = vmatpush.msra.mxu0 %v1648
  %v1650 = vand.u32 %v1555, 4294901760
  %v1651 = vsub.f32 %v1555, %v1650
  %v1652 = vand.u32 %v1651, 4294901760
  %v1653 = vsub.f32 %v1651, %v1652
  %v1654 = vand.u32 %v1653, 4294901760
  %1655 = vmatpush.msra.mxu0 %v1654
  %v1656 = vand.u32 %v1551, 4294901760
  %v1657 = vsub.f32 %v1551, %v1656
  %v1658 = vand.u32 %v1657, 4294901760
  %v1659 = vsub.f32 %v1657, %v1658
  %v1660 = vand.u32 %v1659, 4294901760
  %1661 = vmatpush.msra.mxu0 %v1660
  %v1662 = vand.u32 %v1547, 4294901760
  %v1663 = vsub.f32 %v1547, %v1662
  %v1664 = vand.u32 %v1663, 4294901760
  %v1665 = vsub.f32 %v1663, %v1664
  %v1666 = vand.u32 %v1665, 4294901760
  %1667 = vmatpush.msra.mxu0 %v1666
  %v1668 = vand.u32 %v1543, 4294901760
  %v1669 = vsub.f32 %v1543, %v1668
  %v1670 = vand.u32 %v1669, 4294901760
  %v1671 = vsub.f32 %v1669, %v1670
  %v1672 = vand.u32 %v1671, 4294901760
  %1673 = vmatpush.msra.mxu0 %v1672
  %v1674 = vand.u32 %v1539, 4294901760
  %v1675 = vsub.f32 %v1539, %v1674
  %v1676 = vand.u32 %v1675, 4294901760
  %v1677 = vsub.f32 %v1675, %v1676
  %v1678 = vand.u32 %v1677, 4294901760
  %1679 = vmatpush.msra.mxu0 %v1678
  %v1680 = vand.u32 %v1535, 4294901760
  %v1681 = vsub.f32 %v1535, %v1680
  %v1682 = vand.u32 %v1681, 4294901760
  %v1683 = vsub.f32 %v1681, %v1682
  %v1684 = vand.u32 %v1683, 4294901760
  %1685 = vmatpush.msra.mxu0 %v1684
  %v1686 = vand.u32 %v1531, 4294901760
  %v1687 = vsub.f32 %v1531, %v1686
  %v1688 = vand.u32 %v1687, 4294901760
  %v1689 = vsub.f32 %v1687, %v1688
  %v1690 = vand.u32 %v1689, 4294901760
  %1691 = vmatpush.msra.mxu0 %v1690
  %v1692 = vand.u32 %v1527, 4294901760
  %v1693 = vsub.f32 %v1527, %v1692
  %v1694 = vand.u32 %v1693, 4294901760
  %v1695 = vsub.f32 %v1693, %v1694
  %v1696 = vand.u32 %v1695, 4294901760
  %1697 = vmatpush.msra.mxu0 %v1696
  %v1698 = vand.u32 %v1523, 4294901760
  %v1699 = vsub.f32 %v1523, %v1698
  %v1700 = vand.u32 %v1699, 4294901760
  %v1701 = vsub.f32 %v1699, %v1700
  %v1702 = vand.u32 %v1701, 4294901760
  %1703 = vmatpush.msra.mxu0 %v1702
  %v1704 = vand.u32 %v1519, 4294901760
  %v1705 = vsub.f32 %v1519, %v1704
  %v1706 = vand.u32 %v1705, 4294901760
  %v1707 = vsub.f32 %v1705, %v1706
  %v1708 = vand.u32 %v1707, 4294901760
  %1709 = vmatpush.msra.mxu0 %v1708
  %v1710 = vand.u32 %v1515, 4294901760
  %v1711 = vsub.f32 %v1515, %v1710
  %v1712 = vand.u32 %v1711, 4294901760
  %v1713 = vsub.f32 %v1711, %v1712
  %v1714 = vand.u32 %v1713, 4294901760
  %1715 = vmatpush.msra.mxu0 %v1714
  %v1716 = vand.u32 %v1511, 4294901760
  %v1717 = vsub.f32 %v1511, %v1716
  %v1718 = vand.u32 %v1717, 4294901760
  %v1719 = vsub.f32 %v1717, %v1718
  %v1720 = vand.u32 %v1719, 4294901760
  %1721 = vmatpush.msra.mxu0 %v1720
  %v1722 = vand.u32 %v1510, 4294901760
  %1723 = vmatmul.f32.gmra.mxu0 %v1722
  %v1724 = vpop.f32.mrf.mxu0
  %v1725 = vadd.f32 %v1624, %v1724
  %1726 = vdwg.mxu0
  %v1727 = vand.u32 %v1571, 4294901760
  %v1728 = vsub.f32 %v1571, %v1727
  %1729 = vmatpush.msra.mxu0 %v1728
  %v1730 = vand.u32 %v1567, 4294901760
  %v1731 = vsub.f32 %v1567, %v1730
  %1732 = vmatpush.msra.mxu0 %v1731
  %v1733 = vand.u32 %v1563, 4294901760
  %v1734 = vsub.f32 %v1563, %v1733
  %1735 = vmatpush.msra.mxu0 %v1734
  %v1736 = vand.u32 %v1559, 4294901760
  %v1737 = vsub.f32 %v1559, %v1736
  %1738 = vmatpush.msra.mxu0 %v1737
  %v1739 = vand.u32 %v1555, 4294901760
  %v1740 = vsub.f32 %v1555, %v1739
  %1741 = vmatpush.msra.mxu0 %v1740
  %v1742 = vand.u32 %v1551, 4294901760
  %v1743 = vsub.f32 %v1551, %v1742
  %1744 = vmatpush.msra.mxu0 %v1743
  %v1745 = vand.u32 %v1547, 4294901760
  %v1746 = vsub.f32 %v1547, %v1745
  %1747 = vmatpush.msra.mxu0 %v1746
  %v1748 = vand.u32 %v1543, 4294901760
  %v1749 = vsub.f32 %v1543, %v1748
  %1750 = vmatpush.msra.mxu0 %v1749
  %v1751 = vand.u32 %v1539, 4294901760
  %v1752 = vsub.f32 %v1539, %v1751
  %1753 = vmatpush.msra.mxu0 %v1752
  %v1754 = vand.u32 %v1535, 4294901760
  %v1755 = vsub.f32 %v1535, %v1754
  %1756 = vmatpush.msra.mxu0 %v1755
  %v1757 = vand.u32 %v1531, 4294901760
  %v1758 = vsub.f32 %v1531, %v1757
  %1759 = vmatpush.msra.mxu0 %v1758
  %v1760 = vand.u32 %v1527, 4294901760
  %v1761 = vsub.f32 %v1527, %v1760
  %1762 = vmatpush.msra.mxu0 %v1761
  %v1763 = vand.u32 %v1523, 4294901760
  %v1764 = vsub.f32 %v1523, %v1763
  %1765 = vmatpush.msra.mxu0 %v1764
  %v1766 = vand.u32 %v1519, 4294901760
  %v1767 = vsub.f32 %v1519, %v1766
  %1768 = vmatpush.msra.mxu0 %v1767
  %v1769 = vand.u32 %v1515, 4294901760
  %v1770 = vsub.f32 %v1515, %v1769
  %1771 = vmatpush.msra.mxu0 %v1770
  %v1772 = vand.u32 %v1511, 4294901760
  %v1773 = vsub.f32 %v1511, %v1772
  %1774 = vmatpush.msra.mxu0 %v1773
  %v1775 = vand.u32 %v1510, 4294901760
  %v1776 = vsub.f32 %v1510, %v1775
  %1777 = vmatmul.f32.gmra.mxu0 %v1776
  %v1778 = vpop.f32.mrf.mxu0
  %v1779 = vadd.f32 %v1725, %v1778
  %1780 = vdwg.mxu0
  %v1781 = vand.u32 %v1571, 4294901760
  %1782 = vmatpush.msra.mxu0 %v1781
  %v1783 = vand.u32 %v1567, 4294901760
  %1784 = vmatpush.msra.mxu0 %v1783
  %v1785 = vand.u32 %v1563, 4294901760
  %1786 = vmatpush.msra.mxu0 %v1785
  %v1787 = vand.u32 %v1559, 4294901760
  %1788 = vmatpush.msra.mxu0 %v1787
  %v1789 = vand.u32 %v1555, 4294901760
  %1790 = vmatpush.msra.mxu0 %v1789
  %v1791 = vand.u32 %v1551, 4294901760
  %1792 = vmatpush.msra.mxu0 %v1791
  %v1793 = vand.u32 %v1547, 4294901760
  %1794 = vmatpush.msra.mxu0 %v1793
  %v1795 = vand.u32 %v1543, 4294901760
  %1796 = vmatpush.msra.mxu0 %v1795
  %v1797 = vand.u32 %v1539, 4294901760
  %1798 = vmatpush.msra.mxu0 %v1797
  %v1799 = vand.u32 %v1535, 4294901760
  %1800 = vmatpush.msra.mxu0 %v1799
  %v1801 = vand.u32 %v1531, 4294901760
  %1802 = vmatpush.msra.mxu0 %v1801
  %v1803 = vand.u32 %v1527, 4294901760
  %1804 = vmatpush.msra.mxu0 %v1803
  %v1805 = vand.u32 %v1523, 4294901760
  %1806 = vmatpush.msra.mxu0 %v1805
  %v1807 = vand.u32 %v1519, 4294901760
  %1808 = vmatpush.msra.mxu0 %v1807
  %v1809 = vand.u32 %v1515, 4294901760
  %1810 = vmatpush.msra.mxu0 %v1809
  %v1811 = vand.u32 %v1511, 4294901760
  %1812 = vmatpush.msra.mxu0 %v1811
  %v1813 = vand.u32 %v1510, 4294901760
  %v1814 = vsub.f32 %v1510, %v1813
  %v1815 = vand.u32 %v1814, 4294901760
  %1816 = vmatmul.f32.gmra.mxu0 %v1815
  %v1817 = vpop.f32.mrf.mxu0
  %v1818 = vadd.f32 %v1779, %v1817
  %1819 = vdwg.mxu0
  %v1820 = vand.u32 %v1571, 4294901760
  %v1821 = vsub.f32 %v1571, %v1820
  %v1822 = vand.u32 %v1821, 4294901760
  %1823 = vmatpush.msra.mxu0 %v1822
  %v1824 = vand.u32 %v1567, 4294901760
  %v1825 = vsub.f32 %v1567, %v1824
  %v1826 = vand.u32 %v1825, 4294901760
  %1827 = vmatpush.msra.mxu0 %v1826
  %v1828 = vand.u32 %v1563, 4294901760
  %v1829 = vsub.f32 %v1563, %v1828
  %v1830 = vand.u32 %v1829, 4294901760
  %1831 = vmatpush.msra.mxu0 %v1830
  %v1832 = vand.u32 %v1559, 4294901760
  %v1833 = vsub.f32 %v1559, %v1832
  %v1834 = vand.u32 %v1833, 4294901760
  %1835 = vmatpush.msra.mxu0 %v1834
  %v1836 = vand.u32 %v1555, 4294901760
  %v1837 = vsub.f32 %v1555, %v1836
  %v1838 = vand.u32 %v1837, 4294901760
  %1839 = vmatpush.msra.mxu0 %v1838
  %v1840 = vand.u32 %v1551, 4294901760
  %v1841 = vsub.f32 %v1551, %v1840
  %v1842 = vand.u32 %v1841, 4294901760
  %1843 = vmatpush.msra.mxu0 %v1842
  %v1844 = vand.u32 %v1547, 4294901760
  %v1845 = vsub.f32 %v1547, %v1844
  %v1846 = vand.u32 %v1845, 4294901760
  %1847 = vmatpush.msra.mxu0 %v1846
  %v1848 = vand.u32 %v1543, 4294901760
  %v1849 = vsub.f32 %v1543, %v1848
  %v1850 = vand.u32 %v1849, 4294901760
  %1851 = vmatpush.msra.mxu0 %v1850
  %v1852 = vand.u32 %v1539, 4294901760
  %v1853 = vsub.f32 %v1539, %v1852
  %v1854 = vand.u32 %v1853, 4294901760
  %1855 = vmatpush.msra.mxu0 %v1854
  %v1856 = vand.u32 %v1535, 4294901760
  %v1857 = vsub.f32 %v1535, %v1856
  %v1858 = vand.u32 %v1857, 4294901760
  %1859 = vmatpush.msra.mxu0 %v1858
  %v1860 = vand.u32 %v1531, 4294901760
  %v1861 = vsub.f32 %v1531, %v1860
  %v1862 = vand.u32 %v1861, 4294901760
  %1863 = vmatpush.msra.mxu0 %v1862
  %v1864 = vand.u32 %v1527, 4294901760
  %v1865 = vsub.f32 %v1527, %v1864
  %v1866 = vand.u32 %v1865, 4294901760
  %1867 = vmatpush.msra.mxu0 %v1866
  %v1868 = vand.u32 %v1523, 4294901760
  %v1869 = vsub.f32 %v1523, %v1868
  %v1870 = vand.u32 %v1869, 4294901760
  %1871 = vmatpush.msra.mxu0 %v1870
  %v1872 = vand.u32 %v1519, 4294901760
  %v1873 = vsub.f32 %v1519, %v1872
  %v1874 = vand.u32 %v1873, 4294901760
  %1875 = vmatpush.msra.mxu0 %v1874
  %v1876 = vand.u32 %v1515, 4294901760
  %v1877 = vsub.f32 %v1515, %v1876
  %v1878 = vand.u32 %v1877, 4294901760
  %1879 = vmatpush.msra.mxu0 %v1878
  %v1880 = vand.u32 %v1511, 4294901760
  %v1881 = vsub.f32 %v1511, %v1880
  %v1882 = vand.u32 %v1881, 4294901760
  %1883 = vmatpush.msra.mxu0 %v1882
  %v1884 = vand.u32 %v1510, 4294901760
  %1885 = vmatmul.f32.gmra.mxu0 %v1884
  %v1886 = vpop.f32.mrf.mxu0
  %v1887 = vadd.f32 %v1818, %v1886
  %1888 = vdwg.mxu0
  %v1889 = vand.u32 %v1571, 4294901760
  %1890 = vmatpush.msra.mxu0 %v1889
  %v1891 = vand.u32 %v1567, 4294901760
  %1892 = vmatpush.msra.mxu0 %v1891
  %v1893 = vand.u32 %v1563, 4294901760
  %1894 = vmatpush.msra.mxu0 %v1893
  %v1895 = vand.u32 %v1559, 4294901760
  %1896 = vmatpush.msra.mxu0 %v1895
  %v1897 = vand.u32 %v1555, 4294901760
  %1898 = vmatpush.msra.mxu0 %v1897
  %v1899 = vand.u32 %v1551, 4294901760
  %1900 = vmatpush.msra.mxu0 %v1899
  %v1901 = vand.u32 %v1547, 4294901760
  %1902 = vmatpush.msra.mxu0 %v1901
  %v1903 = vand.u32 %v1543, 4294901760
  %1904 = vmatpush.msra.mxu0 %v1903
  %v1905 = vand.u32 %v1539, 4294901760
  %1906 = vmatpush.msra.mxu0 %v1905
  %v1907 = vand.u32 %v1535, 4294901760
  %1908 = vmatpush.msra.mxu0 %v1907
  %v1909 = vand.u32 %v1531, 4294901760
  %1910 = vmatpush.msra.mxu0 %v1909
  %v1911 = vand.u32 %v1527, 4294901760
  %1912 = vmatpush.msra.mxu0 %v1911
  %v1913 = vand.u32 %v1523, 4294901760
  %1914 = vmatpush.msra.mxu0 %v1913
  %v1915 = vand.u32 %v1519, 4294901760
  %1916 = vmatpush.msra.mxu0 %v1915
  %v1917 = vand.u32 %v1515, 4294901760
  %1918 = vmatpush.msra.mxu0 %v1917
  %v1919 = vand.u32 %v1511, 4294901760
  %1920 = vmatpush.msra.mxu0 %v1919
  %v1921 = vand.u32 %v1510, 4294901760
  %1922 = vmatmul.f32.gmra.mxu0 %v1921
  %v1923 = vpop.f32.mrf.mxu0
  %v1924 = vadd.f32 %v1887, %v1923
  %1925 = vdwg.mxu0
  %v1926 = vand.u32 %v1572, 4294901760
  %1927 = vmatpush.msra.mxu0 %v1926
  %v1928 = vand.u32 %v1568, 4294901760
  %1929 = vmatpush.msra.mxu0 %v1928
  %v1930 = vand.u32 %v1564, 4294901760
  %1931 = vmatpush.msra.mxu0 %v1930
  %v1932 = vand.u32 %v1560, 4294901760
  %1933 = vmatpush.msra.mxu0 %v1932
  %v1934 = vand.u32 %v1556, 4294901760
  %1935 = vmatpush.msra.mxu0 %v1934
  %v1936 = vand.u32 %v1552, 4294901760
  %1937 = vmatpush.msra.mxu0 %v1936
  %v1938 = vand.u32 %v1548, 4294901760
  %1939 = vmatpush.msra.mxu0 %v1938
  %v1940 = vand.u32 %v1544, 4294901760
  %1941 = vmatpush.msra.mxu0 %v1940
  %v1942 = vand.u32 %v1540, 4294901760
  %1943 = vmatpush.msra.mxu0 %v1942
  %v1944 = vand.u32 %v1536, 4294901760
  %1945 = vmatpush.msra.mxu0 %v1944
  %v1946 = vand.u32 %v1532, 4294901760
  %1947 = vmatpush.msra.mxu0 %v1946
  %v1948 = vand.u32 %v1528, 4294901760
  %1949 = vmatpush.msra.mxu0 %v1948
  %v1950 = vand.u32 %v1524, 4294901760
  %1951 = vmatpush.msra.mxu0 %v1950
  %v1952 = vand.u32 %v1520, 4294901760
  %1953 = vmatpush.msra.mxu0 %v1952
  %v1954 = vand.u32 %v1516, 4294901760
  %1955 = vmatpush.msra.mxu0 %v1954
  %v1956 = vand.u32 %v1512, 4294901760
  %1957 = vmatpush.msra.mxu0 %v1956
  %v1958 = vand.u32 %v1510, 4294901760
  %v1959 = vsub.f32 %v1510, %v1958
  %v1960 = vand.u32 %v1959, 4294901760
  %v1961 = vsub.f32 %v1959, %v1960
  %v1962 = vand.u32 %v1961, 4294901760
  %1963 = vmatmul.f32.gmra.mxu0 %v1962
  %v1964 = vpop.f32.mrf.mxu0
  %v1965 = vadd.f32 %v1578, %v1964
  %1966 = vdwg.mxu0
  %v1967 = vand.u32 %v1572, 4294901760
  %v1968 = vsub.f32 %v1572, %v1967
  %v1969 = vand.u32 %v1968, 4294901760
  %v1970 = vsub.f32 %v1968, %v1969
  %v1971 = vand.u32 %v1970, 4294901760
  %1972 = vmatpush.msra.mxu0 %v1971
  %v1973 = vand.u32 %v1568, 4294901760
  %v1974 = vsub.f32 %v1568, %v1973
  %v1975 = vand.u32 %v1974, 4294901760
  %v1976 = vsub.f32 %v1974, %v1975
  %v1977 = vand.u32 %v1976, 4294901760
  %1978 = vmatpush.msra.mxu0 %v1977
  %v1979 = vand.u32 %v1564, 4294901760
  %v1980 = vsub.f32 %v1564, %v1979
  %v1981 = vand.u32 %v1980, 4294901760
  %v1982 = vsub.f32 %v1980, %v1981
  %v1983 = vand.u32 %v1982, 4294901760
  %1984 = vmatpush.msra.mxu0 %v1983
  %v1985 = vand.u32 %v1560, 4294901760
  %v1986 = vsub.f32 %v1560, %v1985
  %v1987 = vand.u32 %v1986, 4294901760
  %v1988 = vsub.f32 %v1986, %v1987
  %v1989 = vand.u32 %v1988, 4294901760
  %1990 = vmatpush.msra.mxu0 %v1989
  %v1991 = vand.u32 %v1556, 4294901760
  %v1992 = vsub.f32 %v1556, %v1991
  %v1993 = vand.u32 %v1992, 4294901760
  %v1994 = vsub.f32 %v1992, %v1993
  %v1995 = vand.u32 %v1994, 4294901760
  %1996 = vmatpush.msra.mxu0 %v1995
  %v1997 = vand.u32 %v1552, 4294901760
  %v1998 = vsub.f32 %v1552, %v1997
  %v1999 = vand.u32 %v1998, 4294901760
  %v2000 = vsub.f32 %v1998, %v1999
  %v2001 = vand.u32 %v2000, 4294901760
  %2002 = vmatpush.msra.mxu0 %v2001
  %v2003 = vand.u32 %v1548, 4294901760
  %v2004 = vsub.f32 %v1548, %v2003
  %v2005 = vand.u32 %v2004, 4294901760
  %v2006 = vsub.f32 %v2004, %v2005
  %v2007 = vand.u32 %v2006, 4294901760
  %2008 = vmatpush.msra.mxu0 %v2007
  %v2009 = vand.u32 %v1544, 4294901760
  %v2010 = vsub.f32 %v1544, %v2009
  %v2011 = vand.u32 %v2010, 4294901760
  %v2012 = vsub.f32 %v2010, %v2011
  %v2013 = vand.u32 %v2012, 4294901760
  %2014 = vmatpush.msra.mxu0 %v2013
  %v2015 = vand.u32 %v1540, 4294901760
  %v2016 = vsub.f32 %v1540, %v2015
  %v2017 = vand.u32 %v2016, 4294901760
  %v2018 = vsub.f32 %v2016, %v2017
  %v2019 = vand.u32 %v2018, 4294901760
  %2020 = vmatpush.msra.mxu0 %v2019
  %v2021 = vand.u32 %v1536, 4294901760
  %v2022 = vsub.f32 %v1536, %v2021
  %v2023 = vand.u32 %v2022, 4294901760
  %v2024 = vsub.f32 %v2022, %v2023
  %v2025 = vand.u32 %v2024, 4294901760
  %2026 = vmatpush.msra.mxu0 %v2025
  %v2027 = vand.u32 %v1532, 4294901760
  %v2028 = vsub.f32 %v1532, %v2027
  %v2029 = vand.u32 %v2028, 4294901760
  %v2030 = vsub.f32 %v2028, %v2029
  %v2031 = vand.u32 %v2030, 4294901760
  %2032 = vmatpush.msra.mxu0 %v2031
  %v2033 = vand.u32 %v1528, 4294901760
  %v2034 = vsub.f32 %v1528, %v2033
  %v2035 = vand.u32 %v2034, 4294901760
  %v2036 = vsub.f32 %v2034, %v2035
  %v2037 = vand.u32 %v2036, 4294901760
  %2038 = vmatpush.msra.mxu0 %v2037
  %v2039 = vand.u32 %v1524, 4294901760
  %v2040 = vsub.f32 %v1524, %v2039
  %v2041 = vand.u32 %v2040, 4294901760
  %v2042 = vsub.f32 %v2040, %v2041
  %v2043 = vand.u32 %v2042, 4294901760
  %2044 = vmatpush.msra.mxu0 %v2043
  %v2045 = vand.u32 %v1520, 4294901760
  %v2046 = vsub.f32 %v1520, %v2045
  %v2047 = vand.u32 %v2046, 4294901760
  %v2048 = vsub.f32 %v2046, %v2047
  %v2049 = vand.u32 %v2048, 4294901760
  %2050 = vmatpush.msra.mxu0 %v2049
  %v2051 = vand.u32 %v1516, 4294901760
  %v2052 = vsub.f32 %v1516, %v2051
  %v2053 = vand.u32 %v2052, 4294901760
  %v2054 = vsub.f32 %v2052, %v2053
  %v2055 = vand.u32 %v2054, 4294901760
  %2056 = vmatpush.msra.mxu0 %v2055
  %v2057 = vand.u32 %v1512, 4294901760
  %v2058 = vsub.f32 %v1512, %v2057
  %v2059 = vand.u32 %v2058, 4294901760
  %v2060 = vsub.f32 %v2058, %v2059
  %v2061 = vand.u32 %v2060, 4294901760
  %2062 = vmatpush.msra.mxu0 %v2061
  %v2063 = vand.u32 %v1510, 4294901760
  %2064 = vmatmul.f32.gmra.mxu0 %v2063
  %v2065 = vpop.f32.mrf.mxu0
  %v2066 = vadd.f32 %v1965, %v2065
  %2067 = vdwg.mxu0
  %v2068 = vand.u32 %v1572, 4294901760
  %v2069 = vsub.f32 %v1572, %v2068
  %2070 = vmatpush.msra.mxu0 %v2069
  %v2071 = vand.u32 %v1568, 4294901760
  %v2072 = vsub.f32 %v1568, %v2071
  %2073 = vmatpush.msra.mxu0 %v2072
  %v2074 = vand.u32 %v1564, 4294901760
  %v2075 = vsub.f32 %v1564, %v2074
  %2076 = vmatpush.msra.mxu0 %v2075
  %v2077 = vand.u32 %v1560, 4294901760
  %v2078 = vsub.f32 %v1560, %v2077
  %2079 = vmatpush.msra.mxu0 %v2078
  %v2080 = vand.u32 %v1556, 4294901760
  %v2081 = vsub.f32 %v1556, %v2080
  %2082 = vmatpush.msra.mxu0 %v2081
  %v2083 = vand.u32 %v1552, 4294901760
  %v2084 = vsub.f32 %v1552, %v2083
  %2085 = vmatpush.msra.mxu0 %v2084
  %v2086 = vand.u32 %v1548, 4294901760
  %v2087 = vsub.f32 %v1548, %v2086
  %2088 = vmatpush.msra.mxu0 %v2087
  %v2089 = vand.u32 %v1544, 4294901760
  %v2090 = vsub.f32 %v1544, %v2089
  %2091 = vmatpush.msra.mxu0 %v2090
  %v2092 = vand.u32 %v1540, 4294901760
  %v2093 = vsub.f32 %v1540, %v2092
  %2094 = vmatpush.msra.mxu0 %v2093
  %v2095 = vand.u32 %v1536, 4294901760
  %v2096 = vsub.f32 %v1536, %v2095
  %2097 = vmatpush.msra.mxu0 %v2096
  %v2098 = vand.u32 %v1532, 4294901760
  %v2099 = vsub.f32 %v1532, %v2098
  %2100 = vmatpush.msra.mxu0 %v2099
  %v2101 = vand.u32 %v1528, 4294901760
  %v2102 = vsub.f32 %v1528, %v2101
  %2103 = vmatpush.msra.mxu0 %v2102
  %v2104 = vand.u32 %v1524, 4294901760
  %v2105 = vsub.f32 %v1524, %v2104
  %2106 = vmatpush.msra.mxu0 %v2105
  %v2107 = vand.u32 %v1520, 4294901760
  %v2108 = vsub.f32 %v1520, %v2107
  %2109 = vmatpush.msra.mxu0 %v2108
  %v2110 = vand.u32 %v1516, 4294901760
  %v2111 = vsub.f32 %v1516, %v2110
  %2112 = vmatpush.msra.mxu0 %v2111
  %v2113 = vand.u32 %v1512, 4294901760
  %v2114 = vsub.f32 %v1512, %v2113
  %2115 = vmatpush.msra.mxu0 %v2114
  %v2116 = vand.u32 %v1510, 4294901760
  %v2117 = vsub.f32 %v1510, %v2116
  %2118 = vmatmul.f32.gmra.mxu0 %v2117
  %v2119 = vpop.f32.mrf.mxu0
  %v2120 = vadd.f32 %v2066, %v2119
  %2121 = vdwg.mxu0
  %v2122 = vand.u32 %v1572, 4294901760
  %2123 = vmatpush.msra.mxu0 %v2122
  %v2124 = vand.u32 %v1568, 4294901760
  %2125 = vmatpush.msra.mxu0 %v2124
  %v2126 = vand.u32 %v1564, 4294901760
  %2127 = vmatpush.msra.mxu0 %v2126
  %v2128 = vand.u32 %v1560, 4294901760
  %2129 = vmatpush.msra.mxu0 %v2128
  %v2130 = vand.u32 %v1556, 4294901760
  %2131 = vmatpush.msra.mxu0 %v2130
  %v2132 = vand.u32 %v1552, 4294901760
  %2133 = vmatpush.msra.mxu0 %v2132
  %v2134 = vand.u32 %v1548, 4294901760
  %2135 = vmatpush.msra.mxu0 %v2134
  %v2136 = vand.u32 %v1544, 4294901760
  %2137 = vmatpush.msra.mxu0 %v2136
  %v2138 = vand.u32 %v1540, 4294901760
  %2139 = vmatpush.msra.mxu0 %v2138
  %v2140 = vand.u32 %v1536, 4294901760
  %2141 = vmatpush.msra.mxu0 %v2140
  %v2142 = vand.u32 %v1532, 4294901760
  %2143 = vmatpush.msra.mxu0 %v2142
  %v2144 = vand.u32 %v1528, 4294901760
  %2145 = vmatpush.msra.mxu0 %v2144
  %v2146 = vand.u32 %v1524, 4294901760
  %2147 = vmatpush.msra.mxu0 %v2146
  %v2148 = vand.u32 %v1520, 4294901760
  %2149 = vmatpush.msra.mxu0 %v2148
  %v2150 = vand.u32 %v1516, 4294901760
  %2151 = vmatpush.msra.mxu0 %v2150
  %v2152 = vand.u32 %v1512, 4294901760
  %2153 = vmatpush.msra.mxu0 %v2152
  %v2154 = vand.u32 %v1510, 4294901760
  %v2155 = vsub.f32 %v1510, %v2154
  %v2156 = vand.u32 %v2155, 4294901760
  %2157 = vmatmul.f32.gmra.mxu0 %v2156
  %v2158 = vpop.f32.mrf.mxu0
  %v2159 = vadd.f32 %v2120, %v2158
  %2160 = vdwg.mxu0
  %v2161 = vand.u32 %v1572, 4294901760
  %v2162 = vsub.f32 %v1572, %v2161
  %v2163 = vand.u32 %v2162, 4294901760
  %2164 = vmatpush.msra.mxu0 %v2163
  %v2165 = vand.u32 %v1568, 4294901760
  %v2166 = vsub.f32 %v1568, %v2165
  %v2167 = vand.u32 %v2166, 4294901760
  %2168 = vmatpush.msra.mxu0 %v2167
  %v2169 = vand.u32 %v1564, 4294901760
  %v2170 = vsub.f32 %v1564, %v2169
  %v2171 = vand.u32 %v2170, 4294901760
  %2172 = vmatpush.msra.mxu0 %v2171
  %v2173 = vand.u32 %v1560, 4294901760
  %v2174 = vsub.f32 %v1560, %v2173
  %v2175 = vand.u32 %v2174, 4294901760
  %2176 = vmatpush.msra.mxu0 %v2175
  %v2177 = vand.u32 %v1556, 4294901760
  %v2178 = vsub.f32 %v1556, %v2177
  %v2179 = vand.u32 %v2178, 4294901760
  %2180 = vmatpush.msra.mxu0 %v2179
  %v2181 = vand.u32 %v1552, 4294901760
  %v2182 = vsub.f32 %v1552, %v2181
  %v2183 = vand.u32 %v2182, 4294901760
  %2184 = vmatpush.msra.mxu0 %v2183
  %v2185 = vand.u32 %v1548, 4294901760
  %v2186 = vsub.f32 %v1548, %v2185
  %v2187 = vand.u32 %v2186, 4294901760
  %2188 = vmatpush.msra.mxu0 %v2187
  %v2189 = vand.u32 %v1544, 4294901760
  %v2190 = vsub.f32 %v1544, %v2189
  %v2191 = vand.u32 %v2190, 4294901760
  %2192 = vmatpush.msra.mxu0 %v2191
  %v2193 = vand.u32 %v1540, 4294901760
  %v2194 = vsub.f32 %v1540, %v2193
  %v2195 = vand.u32 %v2194, 4294901760
  %2196 = vmatpush.msra.mxu0 %v2195
  %v2197 = vand.u32 %v1536, 4294901760
  %v2198 = vsub.f32 %v1536, %v2197
  %v2199 = vand.u32 %v2198, 4294901760
  %2200 = vmatpush.msra.mxu0 %v2199
  %v2201 = vand.u32 %v1532, 4294901760
  %v2202 = vsub.f32 %v1532, %v2201
  %v2203 = vand.u32 %v2202, 4294901760
  %2204 = vmatpush.msra.mxu0 %v2203
  %v2205 = vand.u32 %v1528, 4294901760
  %v2206 = vsub.f32 %v1528, %v2205
  %v2207 = vand.u32 %v2206, 4294901760
  %2208 = vmatpush.msra.mxu0 %v2207
  %v2209 = vand.u32 %v1524, 4294901760
  %v2210 = vsub.f32 %v1524, %v2209
  %v2211 = vand.u32 %v2210, 4294901760
  %2212 = vmatpush.msra.mxu0 %v2211
  %v2213 = vand.u32 %v1520, 4294901760
  %v2214 = vsub.f32 %v1520, %v2213
  %v2215 = vand.u32 %v2214, 4294901760
  %2216 = vmatpush.msra.mxu0 %v2215
  %v2217 = vand.u32 %v1516, 4294901760
  %v2218 = vsub.f32 %v1516, %v2217
  %v2219 = vand.u32 %v2218, 4294901760
  %2220 = vmatpush.msra.mxu0 %v2219
  %v2221 = vand.u32 %v1512, 4294901760
  %v2222 = vsub.f32 %v1512, %v2221
  %v2223 = vand.u32 %v2222, 4294901760
  %2224 = vmatpush.msra.mxu0 %v2223
  %v2225 = vand.u32 %v1510, 4294901760
  %2226 = vmatmul.f32.gmra.mxu0 %v2225
  %v2227 = vpop.f32.mrf.mxu0
  %v2228 = vadd.f32 %v2159, %v2227
  %2229 = vdwg.mxu0
  %v2230 = vand.u32 %v1572, 4294901760
  %2231 = vmatpush.msra.mxu0 %v2230
  %v2232 = vand.u32 %v1568, 4294901760
  %2233 = vmatpush.msra.mxu0 %v2232
  %v2234 = vand.u32 %v1564, 4294901760
  %2235 = vmatpush.msra.mxu0 %v2234
  %v2236 = vand.u32 %v1560, 4294901760
  %2237 = vmatpush.msra.mxu0 %v2236
  %v2238 = vand.u32 %v1556, 4294901760
  %2239 = vmatpush.msra.mxu0 %v2238
  %v2240 = vand.u32 %v1552, 4294901760
  %2241 = vmatpush.msra.mxu0 %v2240
  %v2242 = vand.u32 %v1548, 4294901760
  %2243 = vmatpush.msra.mxu0 %v2242
  %v2244 = vand.u32 %v1544, 4294901760
  %2245 = vmatpush.msra.mxu0 %v2244
  %v2246 = vand.u32 %v1540, 4294901760
  %2247 = vmatpush.msra.mxu0 %v2246
  %v2248 = vand.u32 %v1536, 4294901760
  %2249 = vmatpush.msra.mxu0 %v2248
  %v2250 = vand.u32 %v1532, 4294901760
  %2251 = vmatpush.msra.mxu0 %v2250
  %v2252 = vand.u32 %v1528, 4294901760
  %2253 = vmatpush.msra.mxu0 %v2252
  %v2254 = vand.u32 %v1524, 4294901760
  %2255 = vmatpush.msra.mxu0 %v2254
  %v2256 = vand.u32 %v1520, 4294901760
  %2257 = vmatpush.msra.mxu0 %v2256
  %v2258 = vand.u32 %v1516, 4294901760
  %2259 = vmatpush.msra.mxu0 %v2258
  %v2260 = vand.u32 %v1512, 4294901760
  %2261 = vmatpush.msra.mxu0 %v2260
  %v2262 = vand.u32 %v1510, 4294901760
  %2263 = vmatmul.f32.gmra.mxu0 %v2262
  %v2264 = vpop.f32.mrf.mxu0
  %v2265 = vadd.f32 %v2228, %v2264
  %2266 = vdwg.mxu0
  %v2267 = vand.u32 %v1573, 4294901760
  %2268 = vmatpush.msra.mxu0 %v2267
  %v2269 = vand.u32 %v1569, 4294901760
  %2270 = vmatpush.msra.mxu0 %v2269
  %v2271 = vand.u32 %v1565, 4294901760
  %2272 = vmatpush.msra.mxu0 %v2271
  %v2273 = vand.u32 %v1561, 4294901760
  %2274 = vmatpush.msra.mxu0 %v2273
  %v2275 = vand.u32 %v1557, 4294901760
  %2276 = vmatpush.msra.mxu0 %v2275
  %v2277 = vand.u32 %v1553, 4294901760
  %2278 = vmatpush.msra.mxu0 %v2277
  %v2279 = vand.u32 %v1549, 4294901760
  %2280 = vmatpush.msra.mxu0 %v2279
  %v2281 = vand.u32 %v1545, 4294901760
  %2282 = vmatpush.msra.mxu0 %v2281
  %v2283 = vand.u32 %v1541, 4294901760
  %2284 = vmatpush.msra.mxu0 %v2283
  %v2285 = vand.u32 %v1537, 4294901760
  %2286 = vmatpush.msra.mxu0 %v2285
  %v2287 = vand.u32 %v1533, 4294901760
  %2288 = vmatpush.msra.mxu0 %v2287
  %v2289 = vand.u32 %v1529, 4294901760
  %2290 = vmatpush.msra.mxu0 %v2289
  %v2291 = vand.u32 %v1525, 4294901760
  %2292 = vmatpush.msra.mxu0 %v2291
  %v2293 = vand.u32 %v1521, 4294901760
  %2294 = vmatpush.msra.mxu0 %v2293
  %v2295 = vand.u32 %v1517, 4294901760
  %2296 = vmatpush.msra.mxu0 %v2295
  %v2297 = vand.u32 %v1513, 4294901760
  %2298 = vmatpush.msra.mxu0 %v2297
  %v2299 = vand.u32 %v1510, 4294901760
  %v2300 = vsub.f32 %v1510, %v2299
  %v2301 = vand.u32 %v2300, 4294901760
  %v2302 = vsub.f32 %v2300, %v2301
  %v2303 = vand.u32 %v2302, 4294901760
  %2304 = vmatmul.f32.gmra.mxu0 %v2303
  %v2305 = vpop.f32.mrf.mxu0
  %v2306 = vadd.f32 %v1579, %v2305
  %2307 = vdwg.mxu0
  %v2308 = vand.u32 %v1573, 4294901760
  %v2309 = vsub.f32 %v1573, %v2308
  %v2310 = vand.u32 %v2309, 4294901760
  %v2311 = vsub.f32 %v2309, %v2310
  %v2312 = vand.u32 %v2311, 4294901760
  %2313 = vmatpush.msra.mxu0 %v2312
  %v2314 = vand.u32 %v1569, 4294901760
  %v2315 = vsub.f32 %v1569, %v2314
  %v2316 = vand.u32 %v2315, 4294901760
  %v2317 = vsub.f32 %v2315, %v2316
  %v2318 = vand.u32 %v2317, 4294901760
  %2319 = vmatpush.msra.mxu0 %v2318
  %v2320 = vand.u32 %v1565, 4294901760
  %v2321 = vsub.f32 %v1565, %v2320
  %v2322 = vand.u32 %v2321, 4294901760
  %v2323 = vsub.f32 %v2321, %v2322
  %v2324 = vand.u32 %v2323, 4294901760
  %2325 = vmatpush.msra.mxu0 %v2324
  %v2326 = vand.u32 %v1561, 4294901760
  %v2327 = vsub.f32 %v1561, %v2326
  %v2328 = vand.u32 %v2327, 4294901760
  %v2329 = vsub.f32 %v2327, %v2328
  %v2330 = vand.u32 %v2329, 4294901760
  %2331 = vmatpush.msra.mxu0 %v2330
  %v2332 = vand.u32 %v1557, 4294901760
  %v2333 = vsub.f32 %v1557, %v2332
  %v2334 = vand.u32 %v2333, 4294901760
  %v2335 = vsub.f32 %v2333, %v2334
  %v2336 = vand.u32 %v2335, 4294901760
  %2337 = vmatpush.msra.mxu0 %v2336
  %v2338 = vand.u32 %v1553, 4294901760
  %v2339 = vsub.f32 %v1553, %v2338
  %v2340 = vand.u32 %v2339, 4294901760
  %v2341 = vsub.f32 %v2339, %v2340
  %v2342 = vand.u32 %v2341, 4294901760
  %2343 = vmatpush.msra.mxu0 %v2342
  %v2344 = vand.u32 %v1549, 4294901760
  %v2345 = vsub.f32 %v1549, %v2344
  %v2346 = vand.u32 %v2345, 4294901760
  %v2347 = vsub.f32 %v2345, %v2346
  %v2348 = vand.u32 %v2347, 4294901760
  %2349 = vmatpush.msra.mxu0 %v2348
  %v2350 = vand.u32 %v1545, 4294901760
  %v2351 = vsub.f32 %v1545, %v2350
  %v2352 = vand.u32 %v2351, 4294901760
  %v2353 = vsub.f32 %v2351, %v2352
  %v2354 = vand.u32 %v2353, 4294901760
  %2355 = vmatpush.msra.mxu0 %v2354
  %v2356 = vand.u32 %v1541, 4294901760
  %v2357 = vsub.f32 %v1541, %v2356
  %v2358 = vand.u32 %v2357, 4294901760
  %v2359 = vsub.f32 %v2357, %v2358
  %v2360 = vand.u32 %v2359, 4294901760
  %2361 = vmatpush.msra.mxu0 %v2360
  %v2362 = vand.u32 %v1537, 4294901760
  %v2363 = vsub.f32 %v1537, %v2362
  %v2364 = vand.u32 %v2363, 4294901760
  %v2365 = vsub.f32 %v2363, %v2364
  %v2366 = vand.u32 %v2365, 4294901760
  %2367 = vmatpush.msra.mxu0 %v2366
  %v2368 = vand.u32 %v1533, 4294901760
  %v2369 = vsub.f32 %v1533, %v2368
  %v2370 = vand.u32 %v2369, 4294901760
  %v2371 = vsub.f32 %v2369, %v2370
  %v2372 = vand.u32 %v2371, 4294901760
  %2373 = vmatpush.msra.mxu0 %v2372
  %v2374 = vand.u32 %v1529, 4294901760
  %v2375 = vsub.f32 %v1529, %v2374
  %v2376 = vand.u32 %v2375, 4294901760
  %v2377 = vsub.f32 %v2375, %v2376
  %v2378 = vand.u32 %v2377, 4294901760
  %2379 = vmatpush.msra.mxu0 %v2378
  %v2380 = vand.u32 %v1525, 4294901760
  %v2381 = vsub.f32 %v1525, %v2380
  %v2382 = vand.u32 %v2381, 4294901760
  %v2383 = vsub.f32 %v2381, %v2382
  %v2384 = vand.u32 %v2383, 4294901760
  %2385 = vmatpush.msra.mxu0 %v2384
  %v2386 = vand.u32 %v1521, 4294901760
  %v2387 = vsub.f32 %v1521, %v2386
  %v2388 = vand.u32 %v2387, 4294901760
  %v2389 = vsub.f32 %v2387, %v2388
  %v2390 = vand.u32 %v2389, 4294901760
  %2391 = vmatpush.msra.mxu0 %v2390
  %v2392 = vand.u32 %v1517, 4294901760
  %v2393 = vsub.f32 %v1517, %v2392
  %v2394 = vand.u32 %v2393, 4294901760
  %v2395 = vsub.f32 %v2393, %v2394
  %v2396 = vand.u32 %v2395, 4294901760
  %2397 = vmatpush.msra.mxu0 %v2396
  %v2398 = vand.u32 %v1513, 4294901760
  %v2399 = vsub.f32 %v1513, %v2398
  %v2400 = vand.u32 %v2399, 4294901760
  %v2401 = vsub.f32 %v2399, %v2400
  %v2402 = vand.u32 %v2401, 4294901760
  %2403 = vmatpush.msra.mxu0 %v2402
  %v2404 = vand.u32 %v1510, 4294901760
  %2405 = vmatmul.f32.gmra.mxu0 %v2404
  %v2406 = vpop.f32.mrf.mxu0
  %v2407 = vadd.f32 %v2306, %v2406
  %2408 = vdwg.mxu0
  %v2409 = vand.u32 %v1573, 4294901760
  %v2410 = vsub.f32 %v1573, %v2409
  %2411 = vmatpush.msra.mxu0 %v2410
  %v2412 = vand.u32 %v1569, 4294901760
  %v2413 = vsub.f32 %v1569, %v2412
  %2414 = vmatpush.msra.mxu0 %v2413
  %v2415 = vand.u32 %v1565, 4294901760
  %v2416 = vsub.f32 %v1565, %v2415
  %2417 = vmatpush.msra.mxu0 %v2416
  %v2418 = vand.u32 %v1561, 4294901760
  %v2419 = vsub.f32 %v1561, %v2418
  %2420 = vmatpush.msra.mxu0 %v2419
  %v2421 = vand.u32 %v1557, 4294901760
  %v2422 = vsub.f32 %v1557, %v2421
  %2423 = vmatpush.msra.mxu0 %v2422
  %v2424 = vand.u32 %v1553, 4294901760
  %v2425 = vsub.f32 %v1553, %v2424
  %2426 = vmatpush.msra.mxu0 %v2425
  %v2427 = vand.u32 %v1549, 4294901760
  %v2428 = vsub.f32 %v1549, %v2427
  %2429 = vmatpush.msra.mxu0 %v2428
  %v2430 = vand.u32 %v1545, 4294901760
  %v2431 = vsub.f32 %v1545, %v2430
  %2432 = vmatpush.msra.mxu0 %v2431
  %v2433 = vand.u32 %v1541, 4294901760
  %v2434 = vsub.f32 %v1541, %v2433
  %2435 = vmatpush.msra.mxu0 %v2434
  %v2436 = vand.u32 %v1537, 4294901760
  %v2437 = vsub.f32 %v1537, %v2436
  %2438 = vmatpush.msra.mxu0 %v2437
  %v2439 = vand.u32 %v1533, 4294901760
  %v2440 = vsub.f32 %v1533, %v2439
  %2441 = vmatpush.msra.mxu0 %v2440
  %v2442 = vand.u32 %v1529, 4294901760
  %v2443 = vsub.f32 %v1529, %v2442
  %2444 = vmatpush.msra.mxu0 %v2443
  %v2445 = vand.u32 %v1525, 4294901760
  %v2446 = vsub.f32 %v1525, %v2445
  %2447 = vmatpush.msra.mxu0 %v2446
  %v2448 = vand.u32 %v1521, 4294901760
  %v2449 = vsub.f32 %v1521, %v2448
  %2450 = vmatpush.msra.mxu0 %v2449
  %v2451 = vand.u32 %v1517, 4294901760
  %v2452 = vsub.f32 %v1517, %v2451
  %2453 = vmatpush.msra.mxu0 %v2452
  %v2454 = vand.u32 %v1513, 4294901760
  %v2455 = vsub.f32 %v1513, %v2454
  %2456 = vmatpush.msra.mxu0 %v2455
  %v2457 = vand.u32 %v1510, 4294901760
  %v2458 = vsub.f32 %v1510, %v2457
  %2459 = vmatmul.f32.gmra.mxu0 %v2458
  %v2460 = vpop.f32.mrf.mxu0
  %v2461 = vadd.f32 %v2407, %v2460
  %2462 = vdwg.mxu0
  %v2463 = vand.u32 %v1573, 4294901760
  %2464 = vmatpush.msra.mxu0 %v2463
  %v2465 = vand.u32 %v1569, 4294901760
  %2466 = vmatpush.msra.mxu0 %v2465
  %v2467 = vand.u32 %v1565, 4294901760
  %2468 = vmatpush.msra.mxu0 %v2467
  %v2469 = vand.u32 %v1561, 4294901760
  %2470 = vmatpush.msra.mxu0 %v2469
  %v2471 = vand.u32 %v1557, 4294901760
  %2472 = vmatpush.msra.mxu0 %v2471
  %v2473 = vand.u32 %v1553, 4294901760
  %2474 = vmatpush.msra.mxu0 %v2473
  %v2475 = vand.u32 %v1549, 4294901760
  %2476 = vmatpush.msra.mxu0 %v2475
  %v2477 = vand.u32 %v1545, 4294901760
  %2478 = vmatpush.msra.mxu0 %v2477
  %v2479 = vand.u32 %v1541, 4294901760
  %2480 = vmatpush.msra.mxu0 %v2479
  %v2481 = vand.u32 %v1537, 4294901760
  %2482 = vmatpush.msra.mxu0 %v2481
  %v2483 = vand.u32 %v1533, 4294901760
  %2484 = vmatpush.msra.mxu0 %v2483
  %v2485 = vand.u32 %v1529, 4294901760
  %2486 = vmatpush.msra.mxu0 %v2485
  %v2487 = vand.u32 %v1525, 4294901760
  %2488 = vmatpush.msra.mxu0 %v2487
  %v2489 = vand.u32 %v1521, 4294901760
  %2490 = vmatpush.msra.mxu0 %v2489
  %v2491 = vand.u32 %v1517, 4294901760
  %2492 = vmatpush.msra.mxu0 %v2491
  %v2493 = vand.u32 %v1513, 4294901760
  %2494 = vmatpush.msra.mxu0 %v2493
  %v2495 = vand.u32 %v1510, 4294901760
  %v2496 = vsub.f32 %v1510, %v2495
  %v2497 = vand.u32 %v2496, 4294901760
  %2498 = vmatmul.f32.gmra.mxu0 %v2497
  %v2499 = vpop.f32.mrf.mxu0
  %v2500 = vadd.f32 %v2461, %v2499
  %2501 = vdwg.mxu0
  %v2502 = vand.u32 %v1573, 4294901760
  %v2503 = vsub.f32 %v1573, %v2502
  %v2504 = vand.u32 %v2503, 4294901760
  %2505 = vmatpush.msra.mxu0 %v2504
  %v2506 = vand.u32 %v1569, 4294901760
  %v2507 = vsub.f32 %v1569, %v2506
  %v2508 = vand.u32 %v2507, 4294901760
  %2509 = vmatpush.msra.mxu0 %v2508
  %v2510 = vand.u32 %v1565, 4294901760
  %v2511 = vsub.f32 %v1565, %v2510
  %v2512 = vand.u32 %v2511, 4294901760
  %2513 = vmatpush.msra.mxu0 %v2512
  %v2514 = vand.u32 %v1561, 4294901760
  %v2515 = vsub.f32 %v1561, %v2514
  %v2516 = vand.u32 %v2515, 4294901760
  %2517 = vmatpush.msra.mxu0 %v2516
  %v2518 = vand.u32 %v1557, 4294901760
  %v2519 = vsub.f32 %v1557, %v2518
  %v2520 = vand.u32 %v2519, 4294901760
  %2521 = vmatpush.msra.mxu0 %v2520
  %v2522 = vand.u32 %v1553, 4294901760
  %v2523 = vsub.f32 %v1553, %v2522
  %v2524 = vand.u32 %v2523, 4294901760
  %2525 = vmatpush.msra.mxu0 %v2524
  %v2526 = vand.u32 %v1549, 4294901760
  %v2527 = vsub.f32 %v1549, %v2526
  %v2528 = vand.u32 %v2527, 4294901760
  %2529 = vmatpush.msra.mxu0 %v2528
  %v2530 = vand.u32 %v1545, 4294901760
  %v2531 = vsub.f32 %v1545, %v2530
  %v2532 = vand.u32 %v2531, 4294901760
  %2533 = vmatpush.msra.mxu0 %v2532
  %v2534 = vand.u32 %v1541, 4294901760
  %v2535 = vsub.f32 %v1541, %v2534
  %v2536 = vand.u32 %v2535, 4294901760
  %2537 = vmatpush.msra.mxu0 %v2536
  %v2538 = vand.u32 %v1537, 4294901760
  %v2539 = vsub.f32 %v1537, %v2538
  %v2540 = vand.u32 %v2539, 4294901760
  %2541 = vmatpush.msra.mxu0 %v2540
  %v2542 = vand.u32 %v1533, 4294901760
  %v2543 = vsub.f32 %v1533, %v2542
  %v2544 = vand.u32 %v2543, 4294901760
  %2545 = vmatpush.msra.mxu0 %v2544
  %v2546 = vand.u32 %v1529, 4294901760
  %v2547 = vsub.f32 %v1529, %v2546
  %v2548 = vand.u32 %v2547, 4294901760
  %2549 = vmatpush.msra.mxu0 %v2548
  %v2550 = vand.u32 %v1525, 4294901760
  %v2551 = vsub.f32 %v1525, %v2550
  %v2552 = vand.u32 %v2551, 4294901760
  %2553 = vmatpush.msra.mxu0 %v2552
  %v2554 = vand.u32 %v1521, 4294901760
  %v2555 = vsub.f32 %v1521, %v2554
  %v2556 = vand.u32 %v2555, 4294901760
  %2557 = vmatpush.msra.mxu0 %v2556
  %v2558 = vand.u32 %v1517, 4294901760
  %v2559 = vsub.f32 %v1517, %v2558
  %v2560 = vand.u32 %v2559, 4294901760
  %2561 = vmatpush.msra.mxu0 %v2560
  %v2562 = vand.u32 %v1513, 4294901760
  %v2563 = vsub.f32 %v1513, %v2562
  %v2564 = vand.u32 %v2563, 4294901760
  %2565 = vmatpush.msra.mxu0 %v2564
  %v2566 = vand.u32 %v1510, 4294901760
  %2567 = vmatmul.f32.gmra.mxu0 %v2566
  %v2568 = vpop.f32.mrf.mxu0
  %v2569 = vadd.f32 %v2500, %v2568
  %2570 = vdwg.mxu0
  %v2571 = vand.u32 %v1573, 4294901760
  %2572 = vmatpush.msra.mxu0 %v2571
  %v2573 = vand.u32 %v1569, 4294901760
  %2574 = vmatpush.msra.mxu0 %v2573
  %v2575 = vand.u32 %v1565, 4294901760
  %2576 = vmatpush.msra.mxu0 %v2575
  %v2577 = vand.u32 %v1561, 4294901760
  %2578 = vmatpush.msra.mxu0 %v2577
  %v2579 = vand.u32 %v1557, 4294901760
  %2580 = vmatpush.msra.mxu0 %v2579
  %v2581 = vand.u32 %v1553, 4294901760
  %2582 = vmatpush.msra.mxu0 %v2581
  %v2583 = vand.u32 %v1549, 4294901760
  %2584 = vmatpush.msra.mxu0 %v2583
  %v2585 = vand.u32 %v1545, 4294901760
  %2586 = vmatpush.msra.mxu0 %v2585
  %v2587 = vand.u32 %v1541, 4294901760
  %2588 = vmatpush.msra.mxu0 %v2587
  %v2589 = vand.u32 %v1537, 4294901760
  %2590 = vmatpush.msra.mxu0 %v2589
  %v2591 = vand.u32 %v1533, 4294901760
  %2592 = vmatpush.msra.mxu0 %v2591
  %v2593 = vand.u32 %v1529, 4294901760
  %2594 = vmatpush.msra.mxu0 %v2593
  %v2595 = vand.u32 %v1525, 4294901760
  %2596 = vmatpush.msra.mxu0 %v2595
  %v2597 = vand.u32 %v1521, 4294901760
  %2598 = vmatpush.msra.mxu0 %v2597
  %v2599 = vand.u32 %v1517, 4294901760
  %2600 = vmatpush.msra.mxu0 %v2599
  %v2601 = vand.u32 %v1513, 4294901760
  %2602 = vmatpush.msra.mxu0 %v2601
  %v2603 = vand.u32 %v1510, 4294901760
  %2604 = vmatmul.f32.gmra.mxu0 %v2603
  %v2605 = vpop.f32.mrf.mxu0
  %v2606 = vadd.f32 %v2569, %v2605
  %2607 = vdwg.mxu0
  %v2608 = vand.u32 %v1574, 4294901760
  %2609 = vmatpush.msra.mxu0 %v2608
  %v2610 = vand.u32 %v1570, 4294901760
  %2611 = vmatpush.msra.mxu0 %v2610
  %v2612 = vand.u32 %v1566, 4294901760
  %2613 = vmatpush.msra.mxu0 %v2612
  %v2614 = vand.u32 %v1562, 4294901760
  %2615 = vmatpush.msra.mxu0 %v2614
  %v2616 = vand.u32 %v1558, 4294901760
  %2617 = vmatpush.msra.mxu0 %v2616
  %v2618 = vand.u32 %v1554, 4294901760
  %2619 = vmatpush.msra.mxu0 %v2618
  %v2620 = vand.u32 %v1550, 4294901760
  %2621 = vmatpush.msra.mxu0 %v2620
  %v2622 = vand.u32 %v1546, 4294901760
  %2623 = vmatpush.msra.mxu0 %v2622
  %v2624 = vand.u32 %v1542, 4294901760
  %2625 = vmatpush.msra.mxu0 %v2624
  %v2626 = vand.u32 %v1538, 4294901760
  %2627 = vmatpush.msra.mxu0 %v2626
  %v2628 = vand.u32 %v1534, 4294901760
  %2629 = vmatpush.msra.mxu0 %v2628
  %v2630 = vand.u32 %v1530, 4294901760
  %2631 = vmatpush.msra.mxu0 %v2630
  %v2632 = vand.u32 %v1526, 4294901760
  %2633 = vmatpush.msra.mxu0 %v2632
  %v2634 = vand.u32 %v1522, 4294901760
  %2635 = vmatpush.msra.mxu0 %v2634
  %v2636 = vand.u32 %v1518, 4294901760
  %2637 = vmatpush.msra.mxu0 %v2636
  %v2638 = vand.u32 %v1514, 4294901760
  %2639 = vmatpush.msra.mxu0 %v2638
  %v2640 = vand.u32 %v1510, 4294901760
  %v2641 = vsub.f32 %v1510, %v2640
  %v2642 = vand.u32 %v2641, 4294901760
  %v2643 = vsub.f32 %v2641, %v2642
  %v2644 = vand.u32 %v2643, 4294901760
  %2645 = vmatmul.f32.gmra.mxu0 %v2644
  %v2646 = vpop.f32.mrf.mxu0
  %v2647 = vadd.f32 %v1580, %v2646
  %2648 = vdwg.mxu0
  %v2649 = vand.u32 %v1574, 4294901760
  %v2650 = vsub.f32 %v1574, %v2649
  %v2651 = vand.u32 %v2650, 4294901760
  %v2652 = vsub.f32 %v2650, %v2651
  %v2653 = vand.u32 %v2652, 4294901760
  %2654 = vmatpush.msra.mxu0 %v2653
  %v2655 = vand.u32 %v1570, 4294901760
  %v2656 = vsub.f32 %v1570, %v2655
  %v2657 = vand.u32 %v2656, 4294901760
  %v2658 = vsub.f32 %v2656, %v2657
  %v2659 = vand.u32 %v2658, 4294901760
  %2660 = vmatpush.msra.mxu0 %v2659
  %v2661 = vand.u32 %v1566, 4294901760
  %v2662 = vsub.f32 %v1566, %v2661
  %v2663 = vand.u32 %v2662, 4294901760
  %v2664 = vsub.f32 %v2662, %v2663
  %v2665 = vand.u32 %v2664, 4294901760
  %2666 = vmatpush.msra.mxu0 %v2665
  %v2667 = vand.u32 %v1562, 4294901760
  %v2668 = vsub.f32 %v1562, %v2667
  %v2669 = vand.u32 %v2668, 4294901760
  %v2670 = vsub.f32 %v2668, %v2669
  %v2671 = vand.u32 %v2670, 4294901760
  %2672 = vmatpush.msra.mxu0 %v2671
  %v2673 = vand.u32 %v1558, 4294901760
  %v2674 = vsub.f32 %v1558, %v2673
  %v2675 = vand.u32 %v2674, 4294901760
  %v2676 = vsub.f32 %v2674, %v2675
  %v2677 = vand.u32 %v2676, 4294901760
  %2678 = vmatpush.msra.mxu0 %v2677
  %v2679 = vand.u32 %v1554, 4294901760
  %v2680 = vsub.f32 %v1554, %v2679
  %v2681 = vand.u32 %v2680, 4294901760
  %v2682 = vsub.f32 %v2680, %v2681
  %v2683 = vand.u32 %v2682, 4294901760
  %2684 = vmatpush.msra.mxu0 %v2683
  %v2685 = vand.u32 %v1550, 4294901760
  %v2686 = vsub.f32 %v1550, %v2685
  %v2687 = vand.u32 %v2686, 4294901760
  %v2688 = vsub.f32 %v2686, %v2687
  %v2689 = vand.u32 %v2688, 4294901760
  %2690 = vmatpush.msra.mxu0 %v2689
  %v2691 = vand.u32 %v1546, 4294901760
  %v2692 = vsub.f32 %v1546, %v2691
  %v2693 = vand.u32 %v2692, 4294901760
  %v2694 = vsub.f32 %v2692, %v2693
  %v2695 = vand.u32 %v2694, 4294901760
  %2696 = vmatpush.msra.mxu0 %v2695
  %v2697 = vand.u32 %v1542, 4294901760
  %v2698 = vsub.f32 %v1542, %v2697
  %v2699 = vand.u32 %v2698, 4294901760
  %v2700 = vsub.f32 %v2698, %v2699
  %v2701 = vand.u32 %v2700, 4294901760
  %2702 = vmatpush.msra.mxu0 %v2701
  %v2703 = vand.u32 %v1538, 4294901760
  %v2704 = vsub.f32 %v1538, %v2703
  %v2705 = vand.u32 %v2704, 4294901760
  %v2706 = vsub.f32 %v2704, %v2705
  %v2707 = vand.u32 %v2706, 4294901760
  %2708 = vmatpush.msra.mxu0 %v2707
  %v2709 = vand.u32 %v1534, 4294901760
  %v2710 = vsub.f32 %v1534, %v2709
  %v2711 = vand.u32 %v2710, 4294901760
  %v2712 = vsub.f32 %v2710, %v2711
  %v2713 = vand.u32 %v2712, 4294901760
  %2714 = vmatpush.msra.mxu0 %v2713
  %v2715 = vand.u32 %v1530, 4294901760
  %v2716 = vsub.f32 %v1530, %v2715
  %v2717 = vand.u32 %v2716, 4294901760
  %v2718 = vsub.f32 %v2716, %v2717
  %v2719 = vand.u32 %v2718, 4294901760
  %2720 = vmatpush.msra.mxu0 %v2719
  %v2721 = vand.u32 %v1526, 4294901760
  %v2722 = vsub.f32 %v1526, %v2721
  %v2723 = vand.u32 %v2722, 4294901760
  %v2724 = vsub.f32 %v2722, %v2723
  %v2725 = vand.u32 %v2724, 4294901760
  %2726 = vmatpush.msra.mxu0 %v2725
  %v2727 = vand.u32 %v1522, 4294901760
  %v2728 = vsub.f32 %v1522, %v2727
  %v2729 = vand.u32 %v2728, 4294901760
  %v2730 = vsub.f32 %v2728, %v2729
  %v2731 = vand.u32 %v2730, 4294901760
  %2732 = vmatpush.msra.mxu0 %v2731
  %v2733 = vand.u32 %v1518, 4294901760
  %v2734 = vsub.f32 %v1518, %v2733
  %v2735 = vand.u32 %v2734, 4294901760
  %v2736 = vsub.f32 %v2734, %v2735
  %v2737 = vand.u32 %v2736, 4294901760
  %2738 = vmatpush.msra.mxu0 %v2737
  %v2739 = vand.u32 %v1514, 4294901760
  %v2740 = vsub.f32 %v1514, %v2739
  %v2741 = vand.u32 %v2740, 4294901760
  %v2742 = vsub.f32 %v2740, %v2741
  %v2743 = vand.u32 %v2742, 4294901760
  %2744 = vmatpush.msra.mxu0 %v2743
  %v2745 = vand.u32 %v1510, 4294901760
  %2746 = vmatmul.f32.gmra.mxu0 %v2745
  %v2747 = vpop.f32.mrf.mxu0
  %v2748 = vadd.f32 %v2647, %v2747
  %2749 = vdwg.mxu0
  %v2750 = vand.u32 %v1574, 4294901760
  %v2751 = vsub.f32 %v1574, %v2750
  %2752 = vmatpush.msra.mxu0 %v2751
  %v2753 = vand.u32 %v1570, 4294901760
  %v2754 = vsub.f32 %v1570, %v2753
  %2755 = vmatpush.msra.mxu0 %v2754
  %v2756 = vand.u32 %v1566, 4294901760
  %v2757 = vsub.f32 %v1566, %v2756
  %2758 = vmatpush.msra.mxu0 %v2757
  %v2759 = vand.u32 %v1562, 4294901760
  %v2760 = vsub.f32 %v1562, %v2759
  %2761 = vmatpush.msra.mxu0 %v2760
  %v2762 = vand.u32 %v1558, 4294901760
  %v2763 = vsub.f32 %v1558, %v2762
  %2764 = vmatpush.msra.mxu0 %v2763
  %v2765 = vand.u32 %v1554, 4294901760
  %v2766 = vsub.f32 %v1554, %v2765
  %2767 = vmatpush.msra.mxu0 %v2766
  %v2768 = vand.u32 %v1550, 4294901760
  %v2769 = vsub.f32 %v1550, %v2768
  %2770 = vmatpush.msra.mxu0 %v2769
  %v2771 = vand.u32 %v1546, 4294901760
  %v2772 = vsub.f32 %v1546, %v2771
  %2773 = vmatpush.msra.mxu0 %v2772
  %v2774 = vand.u32 %v1542, 4294901760
  %v2775 = vsub.f32 %v1542, %v2774
  %2776 = vmatpush.msra.mxu0 %v2775
  %v2777 = vand.u32 %v1538, 4294901760
  %v2778 = vsub.f32 %v1538, %v2777
  %2779 = vmatpush.msra.mxu0 %v2778
  %v2780 = vand.u32 %v1534, 4294901760
  %v2781 = vsub.f32 %v1534, %v2780
  %2782 = vmatpush.msra.mxu0 %v2781
  %v2783 = vand.u32 %v1530, 4294901760
  %v2784 = vsub.f32 %v1530, %v2783
  %2785 = vmatpush.msra.mxu0 %v2784
  %v2786 = vand.u32 %v1526, 4294901760
  %v2787 = vsub.f32 %v1526, %v2786
  %2788 = vmatpush.msra.mxu0 %v2787
  %v2789 = vand.u32 %v1522, 4294901760
  %v2790 = vsub.f32 %v1522, %v2789
  %2791 = vmatpush.msra.mxu0 %v2790
  %v2792 = vand.u32 %v1518, 4294901760
  %v2793 = vsub.f32 %v1518, %v2792
  %2794 = vmatpush.msra.mxu0 %v2793
  %v2795 = vand.u32 %v1514, 4294901760
  %v2796 = vsub.f32 %v1514, %v2795
  %2797 = vmatpush.msra.mxu0 %v2796
  %v2798 = vand.u32 %v1510, 4294901760
  %v2799 = vsub.f32 %v1510, %v2798
  %2800 = vmatmul.f32.gmra.mxu0 %v2799
  %v2801 = vpop.f32.mrf.mxu0
  %v2802 = vadd.f32 %v2748, %v2801
  %2803 = vdwg.mxu0
  %v2804 = vand.u32 %v1574, 4294901760
  %2805 = vmatpush.msra.mxu0 %v2804
  %v2806 = vand.u32 %v1570, 4294901760
  %2807 = vmatpush.msra.mxu0 %v2806
  %v2808 = vand.u32 %v1566, 4294901760
  %2809 = vmatpush.msra.mxu0 %v2808
  %v2810 = vand.u32 %v1562, 4294901760
  %2811 = vmatpush.msra.mxu0 %v2810
  %v2812 = vand.u32 %v1558, 4294901760
  %2813 = vmatpush.msra.mxu0 %v2812
  %v2814 = vand.u32 %v1554, 4294901760
  %2815 = vmatpush.msra.mxu0 %v2814
  %v2816 = vand.u32 %v1550, 4294901760
  %2817 = vmatpush.msra.mxu0 %v2816
  %v2818 = vand.u32 %v1546, 4294901760
  %2819 = vmatpush.msra.mxu0 %v2818
  %v2820 = vand.u32 %v1542, 4294901760
  %2821 = vmatpush.msra.mxu0 %v2820
  %v2822 = vand.u32 %v1538, 4294901760
  %2823 = vmatpush.msra.mxu0 %v2822
  %v2824 = vand.u32 %v1534, 4294901760
  %2825 = vmatpush.msra.mxu0 %v2824
  %v2826 = vand.u32 %v1530, 4294901760
  %2827 = vmatpush.msra.mxu0 %v2826
  %v2828 = vand.u32 %v1526, 4294901760
  %2829 = vmatpush.msra.mxu0 %v2828
  %v2830 = vand.u32 %v1522, 4294901760
  %2831 = vmatpush.msra.mxu0 %v2830
  %v2832 = vand.u32 %v1518, 4294901760
  %2833 = vmatpush.msra.mxu0 %v2832
  %v2834 = vand.u32 %v1514, 4294901760
  %2835 = vmatpush.msra.mxu0 %v2834
  %v2836 = vand.u32 %v1510, 4294901760
  %v2837 = vsub.f32 %v1510, %v2836
  %v2838 = vand.u32 %v2837, 4294901760
  %2839 = vmatmul.f32.gmra.mxu0 %v2838
  %v2840 = vpop.f32.mrf.mxu0
  %v2841 = vadd.f32 %v2802, %v2840
  %2842 = vdwg.mxu0
  %v2843 = vand.u32 %v1574, 4294901760
  %v2844 = vsub.f32 %v1574, %v2843
  %v2845 = vand.u32 %v2844, 4294901760
  %2846 = vmatpush.msra.mxu0 %v2845
  %v2847 = vand.u32 %v1570, 4294901760
  %v2848 = vsub.f32 %v1570, %v2847
  %v2849 = vand.u32 %v2848, 4294901760
  %2850 = vmatpush.msra.mxu0 %v2849
  %v2851 = vand.u32 %v1566, 4294901760
  %v2852 = vsub.f32 %v1566, %v2851
  %v2853 = vand.u32 %v2852, 4294901760
  %2854 = vmatpush.msra.mxu0 %v2853
  %v2855 = vand.u32 %v1562, 4294901760
  %v2856 = vsub.f32 %v1562, %v2855
  %v2857 = vand.u32 %v2856, 4294901760
  %2858 = vmatpush.msra.mxu0 %v2857
  %v2859 = vand.u32 %v1558, 4294901760
  %v2860 = vsub.f32 %v1558, %v2859
  %v2861 = vand.u32 %v2860, 4294901760
  %2862 = vmatpush.msra.mxu0 %v2861
  %v2863 = vand.u32 %v1554, 4294901760
  %v2864 = vsub.f32 %v1554, %v2863
  %v2865 = vand.u32 %v2864, 4294901760
  %2866 = vmatpush.msra.mxu0 %v2865
  %v2867 = vand.u32 %v1550, 4294901760
  %v2868 = vsub.f32 %v1550, %v2867
  %v2869 = vand.u32 %v2868, 4294901760
  %2870 = vmatpush.msra.mxu0 %v2869
  %v2871 = vand.u32 %v1546, 4294901760
  %v2872 = vsub.f32 %v1546, %v2871
  %v2873 = vand.u32 %v2872, 4294901760
  %2874 = vmatpush.msra.mxu0 %v2873
  %v2875 = vand.u32 %v1542, 4294901760
  %v2876 = vsub.f32 %v1542, %v2875
  %v2877 = vand.u32 %v2876, 4294901760
  %2878 = vmatpush.msra.mxu0 %v2877
  %v2879 = vand.u32 %v1538, 4294901760
  %v2880 = vsub.f32 %v1538, %v2879
  %v2881 = vand.u32 %v2880, 4294901760
  %2882 = vmatpush.msra.mxu0 %v2881
  %v2883 = vand.u32 %v1534, 4294901760
  %v2884 = vsub.f32 %v1534, %v2883
  %v2885 = vand.u32 %v2884, 4294901760
  %2886 = vmatpush.msra.mxu0 %v2885
  %v2887 = vand.u32 %v1530, 4294901760
  %v2888 = vsub.f32 %v1530, %v2887
  %v2889 = vand.u32 %v2888, 4294901760
  %2890 = vmatpush.msra.mxu0 %v2889
  %v2891 = vand.u32 %v1526, 4294901760
  %v2892 = vsub.f32 %v1526, %v2891
  %v2893 = vand.u32 %v2892, 4294901760
  %2894 = vmatpush.msra.mxu0 %v2893
  %v2895 = vand.u32 %v1522, 4294901760
  %v2896 = vsub.f32 %v1522, %v2895
  %v2897 = vand.u32 %v2896, 4294901760
  %2898 = vmatpush.msra.mxu0 %v2897
  %v2899 = vand.u32 %v1518, 4294901760
  %v2900 = vsub.f32 %v1518, %v2899
  %v2901 = vand.u32 %v2900, 4294901760
  %2902 = vmatpush.msra.mxu0 %v2901
  %v2903 = vand.u32 %v1514, 4294901760
  %v2904 = vsub.f32 %v1514, %v2903
  %v2905 = vand.u32 %v2904, 4294901760
  %2906 = vmatpush.msra.mxu0 %v2905
  %v2907 = vand.u32 %v1510, 4294901760
  %2908 = vmatmul.f32.gmra.mxu0 %v2907
  %v2909 = vpop.f32.mrf.mxu0
  %v2910 = vadd.f32 %v2841, %v2909
  %2911 = vdwg.mxu0
  %v2912 = vand.u32 %v1574, 4294901760
  %2913 = vmatpush.msra.mxu0 %v2912
  %v2914 = vand.u32 %v1570, 4294901760
  %2915 = vmatpush.msra.mxu0 %v2914
  %v2916 = vand.u32 %v1566, 4294901760
  %2917 = vmatpush.msra.mxu0 %v2916
  %v2918 = vand.u32 %v1562, 4294901760
  %2919 = vmatpush.msra.mxu0 %v2918
  %v2920 = vand.u32 %v1558, 4294901760
  %2921 = vmatpush.msra.mxu0 %v2920
  %v2922 = vand.u32 %v1554, 4294901760
  %2923 = vmatpush.msra.mxu0 %v2922
  %v2924 = vand.u32 %v1550, 4294901760
  %2925 = vmatpush.msra.mxu0 %v2924
  %v2926 = vand.u32 %v1546, 4294901760
  %2927 = vmatpush.msra.mxu0 %v2926
  %v2928 = vand.u32 %v1542, 4294901760
  %2929 = vmatpush.msra.mxu0 %v2928
  %v2930 = vand.u32 %v1538, 4294901760
  %2931 = vmatpush.msra.mxu0 %v2930
  %v2932 = vand.u32 %v1534, 4294901760
  %2933 = vmatpush.msra.mxu0 %v2932
  %v2934 = vand.u32 %v1530, 4294901760
  %2935 = vmatpush.msra.mxu0 %v2934
  %v2936 = vand.u32 %v1526, 4294901760
  %2937 = vmatpush.msra.mxu0 %v2936
  %v2938 = vand.u32 %v1522, 4294901760
  %2939 = vmatpush.msra.mxu0 %v2938
  %v2940 = vand.u32 %v1518, 4294901760
  %2941 = vmatpush.msra.mxu0 %v2940
  %v2942 = vand.u32 %v1514, 4294901760
  %2943 = vmatpush.msra.mxu0 %v2942
  %v2944 = vand.u32 %v1510, 4294901760
  %2945 = vmatmul.f32.gmra.mxu0 %v2944
  %v2946 = vpop.f32.mrf.mxu0
  %v2947 = vadd.f32 %v2910, %v2946
  %2948 = vdwg.mxu0
  %v2949 = vmul.f32 %v1924, 0.5
  %v2950 = vmul.f32 %v2265, 0.5
  %v2951 = vmul.f32 %v2606, 0.5
  %v2952 = vmul.f32 %v2947, 0.5
  %v2953 = vmul.f32 %v1924, 0.70710677
  %v2954 = vmul.f32 %v2265, 0.70710677
  %v2955 = vmul.f32 %v2606, 0.70710677
  %v2956 = vmul.f32 %v2947, 0.70710677
  %v2957 = vmul.f32 %v2953, %v2953
  %v2958 = vmin.f32 16.0, %v2957
  %v2959 = vmul.f32 %v2958, 2.1237322e-06
  %v2960 = vadd.f32 %v2959, 0.00028619796
  %v2961 = vmul.f32 %v2958, %v2960
  %v2962 = vadd.f32 %v2961, 0.0036580483
  %v2963 = vmul.f32 %v2958, %v2962
  %v2964 = vadd.f32 %v2963, 0.05243302
  %v2965 = vmul.f32 %v2958, %v2964
  %v2966 = vadd.f32 %v2965, 0.18741608
  %v2967 = vmul.f32 %v2958, %v2966
  %v2968 = vadd.f32 %v2967, 1.1283791
  %v2969 = vmul.f32 %v2953, %v2968
  %v2970 = vmul.f32 %v2958, 3.8918573e-05
  %v2971 = vadd.f32 %v2970, 0.001143296
  %v2972 = vmul.f32 %v2958, %v2971
  %v2973 = vadd.f32 %v2972, 0.014752088
  %v2974 = vmul.f32 %v2958, %v2973
  %v2975 = vadd.f32 %v2974, 0.112945676
  %v2976 = vmul.f32 %v2958, %v2975
  %v2977 = vadd.f32 %v2976, 0.4994258
  %v2978 = vmul.f32 %v2958, %v2977
  %v2979 = vadd.f32 %v2978, 1.0
  %v2980 = vrcp.pop %v2979
  %v2981 = vmul.f32 %v2979, %v2980
  %v2982 = vsub.f32 1.0, %v2981
  %v2983 = vmul.f32 %v2980, %v2982
  %v2984 = vadd.f32 %v2980, %v2983
  %vm2985 = vweird.f32 %v2979
  %vm2986 = vweird.f32 %v2980
  %vm2987 = vmor %vm2985, %vm2986
  %v2988 = vsel %vm2987, %v2980, %v2984
  %v2989 = vand.u32 2147483647, %v2979
  %vm2990 = vcmp.eq.f32.partialorder %v2989, 8.507059e+37
  %v2991 = vand.u32 %v2979, 2147483648
  %v2992 = vor.u32 1.1754944e-38, %v2991
  %v2993 = vsel %vm2990, %v2992, %v2988
  %v2994 = vmul.f32 %v2969, %v2993
  %v2995 = vmin.f32 %v2994, 1.0
  %v2996 = vmax.f32 %v2995, -1.0
  %v2997 = vmul.f32 %v2954, %v2954
  %v2998 = vmin.f32 16.0, %v2997
  %v2999 = vmul.f32 %v2998, 2.1237322e-06
  %v3000 = vadd.f32 %v2999, 0.00028619796
  %v3001 = vmul.f32 %v2998, %v3000
  %v3002 = vadd.f32 %v3001, 0.0036580483
  %v3003 = vmul.f32 %v2998, %v3002
  %v3004 = vadd.f32 %v3003, 0.05243302
  %v3005 = vmul.f32 %v2998, %v3004
  %v3006 = vadd.f32 %v3005, 0.18741608
  %v3007 = vmul.f32 %v2998, %v3006
  %v3008 = vadd.f32 %v3007, 1.1283791
  %v3009 = vmul.f32 %v2954, %v3008
  %v3010 = vmul.f32 %v2998, 3.8918573e-05
  %v3011 = vadd.f32 %v3010, 0.001143296
  %v3012 = vmul.f32 %v2998, %v3011
  %v3013 = vadd.f32 %v3012, 0.014752088
  %v3014 = vmul.f32 %v2998, %v3013
  %v3015 = vadd.f32 %v3014, 0.112945676
  %v3016 = vmul.f32 %v2998, %v3015
  %v3017 = vadd.f32 %v3016, 0.4994258
  %v3018 = vmul.f32 %v2998, %v3017
  %v3019 = vadd.f32 %v3018, 1.0
  %v3020 = vrcp.pop %v3019
  %v3021 = vmul.f32 %v3019, %v3020
  %v3022 = vsub.f32 1.0, %v3021
  %v3023 = vmul.f32 %v3020, %v3022
  %v3024 = vadd.f32 %v3020, %v3023
  %vm3025 = vweird.f32 %v3019
  %vm3026 = vweird.f32 %v3020
  %vm3027 = vmor %vm3025, %vm3026
  %v3028 = vsel %vm3027, %v3020, %v3024
  %v3029 = vand.u32 2147483647, %v3019
  %vm3030 = vcmp.eq.f32.partialorder %v3029, 8.507059e+37
  %v3031 = vand.u32 %v3019, 2147483648
  %v3032 = vor.u32 1.1754944e-38, %v3031
  %v3033 = vsel %vm3030, %v3032, %v3028
  %v3034 = vmul.f32 %v3009, %v3033
  %v3035 = vmin.f32 %v3034, 1.0
  %v3036 = vmax.f32 %v3035, -1.0
  %v3037 = vmul.f32 %v2955, %v2955
  %v3038 = vmin.f32 16.0, %v3037
  %v3039 = vmul.f32 %v3038, 2.1237322e-06
  %v3040 = vadd.f32 %v3039, 0.00028619796
  %v3041 = vmul.f32 %v3038, %v3040
  %v3042 = vadd.f32 %v3041, 0.0036580483
  %v3043 = vmul.f32 %v3038, %v3042
  %v3044 = vadd.f32 %v3043, 0.05243302
  %v3045 = vmul.f32 %v3038, %v3044
  %v3046 = vadd.f32 %v3045, 0.18741608
  %v3047 = vmul.f32 %v3038, %v3046
  %v3048 = vadd.f32 %v3047, 1.1283791
  %v3049 = vmul.f32 %v2955, %v3048
  %v3050 = vmul.f32 %v3038, 3.8918573e-05
  %v3051 = vadd.f32 %v3050, 0.001143296
  %v3052 = vmul.f32 %v3038, %v3051
  %v3053 = vadd.f32 %v3052, 0.014752088
  %v3054 = vmul.f32 %v3038, %v3053
  %v3055 = vadd.f32 %v3054, 0.112945676
  %v3056 = vmul.f32 %v3038, %v3055
  %v3057 = vadd.f32 %v3056, 0.4994258
  %v3058 = vmul.f32 %v3038, %v3057
  %v3059 = vadd.f32 %v3058, 1.0
  %v3060 = vrcp.pop %v3059
  %v3061 = vmul.f32 %v3059, %v3060
  %v3062 = vsub.f32 1.0, %v3061
  %v3063 = vmul.f32 %v3060, %v3062
  %v3064 = vadd.f32 %v3060, %v3063
  %vm3065 = vweird.f32 %v3059
  %vm3066 = vweird.f32 %v3060
  %vm3067 = vmor %vm3065, %vm3066
  %v3068 = vsel %vm3067, %v3060, %v3064
  %v3069 = vand.u32 2147483647, %v3059
  %vm3070 = vcmp.eq.f32.partialorder %v3069, 8.507059e+37
  %v3071 = vand.u32 %v3059, 2147483648
  %v3072 = vor.u32 1.1754944e-38, %v3071
  %v3073 = vsel %vm3070, %v3072, %v3068
  %v3074 = vmul.f32 %v3049, %v3073
  %v3075 = vmin.f32 %v3074, 1.0
  %v3076 = vmax.f32 %v3075, -1.0
  %v3077 = vmul.f32 %v2956, %v2956
  %v3078 = vmin.f32 16.0, %v3077
  %v3079 = vmul.f32 %v3078, 2.1237322e-06
  %v3080 = vadd.f32 %v3079, 0.00028619796
  %v3081 = vmul.f32 %v3078, %v3080
  %v3082 = vadd.f32 %v3081, 0.0036580483
  %v3083 = vmul.f32 %v3078, %v3082
  %v3084 = vadd.f32 %v3083, 0.05243302
  %v3085 = vmul.f32 %v3078, %v3084
  %v3086 = vadd.f32 %v3085, 0.18741608
  %v3087 = vmul.f32 %v3078, %v3086
  %v3088 = vadd.f32 %v3087, 1.1283791
  %v3089 = vmul.f32 %v2956, %v3088
  %v3090 = vmul.f32 %v3078, 3.8918573e-05
  %v3091 = vadd.f32 %v3090, 0.001143296
  %v3092 = vmul.f32 %v3078, %v3091
  %v3093 = vadd.f32 %v3092, 0.014752088
  %v3094 = vmul.f32 %v3078, %v3093
  %v3095 = vadd.f32 %v3094, 0.112945676
  %v3096 = vmul.f32 %v3078, %v3095
  %v3097 = vadd.f32 %v3096, 0.4994258
  %v3098 = vmul.f32 %v3078, %v3097
  %v3099 = vadd.f32 %v3098, 1.0
  %v3100 = vrcp.pop %v3099
  %v3101 = vmul.f32 %v3099, %v3100
  %v3102 = vsub.f32 1.0, %v3101
  %v3103 = vmul.f32 %v3100, %v3102
  %v3104 = vadd.f32 %v3100, %v3103
  %vm3105 = vweird.f32 %v3099
  %vm3106 = vweird.f32 %v3100
  %vm3107 = vmor %vm3105, %vm3106
  %v3108 = vsel %vm3107, %v3100, %v3104
  %v3109 = vand.u32 2147483647, %v3099
  %vm3110 = vcmp.eq.f32.partialorder %v3109, 8.507059e+37
  %v3111 = vand.u32 %v3099, 2147483648
  %v3112 = vor.u32 1.1754944e-38, %v3111
  %v3113 = vsel %vm3110, %v3112, %v3108
  %v3114 = vmul.f32 %v3089, %v3113
  %v3115 = vmin.f32 %v3114, 1.0
  %v3116 = vmax.f32 %v3115, -1.0
  %v3117 = vadd.f32 %v2996, 1.0
  %v3118 = vadd.f32 %v3036, 1.0
  %v3119 = vadd.f32 %v3076, 1.0
  %v3120 = vadd.f32 %v3116, 1.0
  %v3121 = vmul.f32 %v2949, %v3117
  %v3122 = vmul.f32 %v2950, %v3118
  %v3123 = vmul.f32 %v2951, %v3119
  %v3124 = vmul.f32 %v2952, %v3120
  %s3125 = sld [smem:[#allocation2]]
  %3126 = vst [vmem:[#allocation1] ss:$4 sm:$0xff] %v24
  %v3127 = vld.sshfl [vmem:[#allocation1] sm:$0xff pattern:$0x73625140]
  %v3128 = vld.sshfl [vmem:[#allocation1 + $0x8] sm:$0xff pattern:$0x73625140]
  %v3129 = vld.sshfl [vmem:[#allocation1 + $0x10] sm:$0xff pattern:$0x73625140]
  %v3130 = vld.sshfl [vmem:[#allocation1 + $0x18] sm:$0xff pattern:$0x73625140]
  %v3135 = vsub.f32 %v3121, %v3127
  %v3136 = vsub.f32 %v3122, %v3128
  %v3137 = vsub.f32 %v3123, %v3129
  %v3138 = vsub.f32 %v3124, %v3130
  %v3139 = vstv %s3125
  %v3140 = vmul.f32 %v3139, %v3135
  %v3141 = vmul.f32 %v3139, %v3136
  %v3142 = vmul.f32 %v3139, %v3137
  %v3143 = vmul.f32 %v3139, %v3138
  %v3148 = vrot.slane %v3141, 6
  %v3149 = vrot.slane %v3142, 4
  %v3150 = vrot.slane %v3143, 2
  %vm3151 = vcmask 1041408
  %v3152 = vsel %vm3151, %v3140, %v3148
  %vm3153 = vcmask 1045508
  %v3154 = vsel %vm3153, %v3149, %v3150
  %vm3155 = vcmask 1043456
  %v3156 = vsel %vm3155, %v3152, %v3154
  %v3158 = vadd.f32 %v24, %v3156
  %3159 = vst [vmem:[%s6] sm:$0xff] %v3158
  // Predicated region
  $region26: #{residual_mlp.1} parent=0 // pred_check
    _
  $region27: #{residual_mlp.1} parent=0 // pred_check_branch
    %3161 = sbr.rel (0) target = $region29
  $region28: #{residual_mlp.1} parent=0 // pred_region
    _
  $region29: #{residual_mlp.1} parent=0 // pred_fallthru
    _
  // Predicated region
  $region30: #{residual_mlp.1} parent=0 // pred_check
    _
  $region31: #{residual_mlp.1} parent=0 // pred_check_branch
    %3163 = sbr.rel (0) target = $region33
  $region32: #{residual_mlp.1} parent=0 // pred_region
    _
  $region33: #{residual_mlp.1} parent=0 // pred_fallthru
    _

</llo_original>
